<compile_context>
chip_gen: v7x
topology: tpu7x:2x2x1
jax: 0.10.0
libtpu: 0.0.40
codegen_flags: <defaults>
</compile_context>

<pallas_src>
import jax
import jax.numpy as jnp
from jax import lax
from jax.experimental import pallas as pl
from jax.experimental.pallas import tpu as pltpu


# ----------------------------- Pallas kernel ------------------------------ #
def _bilstm_cls_kernel(x_ref,        # (S, BT, E)    bf16, time-major doc tile
                       win_ref,      # (E, 8*H2)     bf16, fused input->gates [fwd | bwd], gate order i,f,o,g
                       bin_ref,      # (1, 8*H2)     f32,  fused b_ih + b_hh
                       whh_ref,      # (2*H2, 8*H2)  f32,  block_diag(whh_f, whh_b)
                       woutf_ref,    # (H2, C)       f32,  classifier rows for h_fwd
                       woutb_ref,    # (H2, C)       f32,  classifier rows for h_bwd
                       bout_ref,     # (1, C)        f32
                       o_ref,        # (S, BT, C)    f32 logits for this doc tile
                       xproj_ref,    # scratch (S, BT, 8*H2) f32: hoisted input projection (+bias)
                       hf_ref,       # scratch (S, BT, H2) f32: forward hidden states
                       hb_ref):      # scratch (S, BT, H2) f32: backward hidden states
    S, BT, _ = x_ref.shape
    H2, C = woutf_ref.shape
    G = 4 * H2                                   # per-direction gate width

    # ---- Hoisted, time-invariant input projection: one big GEMM, bias folded.
    x_flat = x_ref[...].reshape(S * BT, x_ref.shape[2])          # (S*BT, E)
    proj = jnp.dot(x_flat, win_ref[...], preferred_element_type=jnp.float32)
    xproj_ref[...] = (proj + bin_ref[...]).reshape(S, BT, 2 * G)

    whh = whh_ref[...]                           # small; stays resident

    def gate_math(g, c):
        # gate order i, f, o, g (host-side reorder): one sigmoid over the
        # contiguous [i|f|o] block, one tanh for g, one tanh for c.
        sig = jax.nn.sigmoid(g[:, 0:3 * H2])
        gg = jnp.tanh(g[:, 3 * H2:4 * H2])
        c = sig[:, H2:2 * H2] * c + sig[:, 0:H2] * gg
        h = sig[:, 2 * H2:3 * H2] * jnp.tanh(c)
        return h, c

    def step(t, carry):
        # Fused forward (time t) / backward (time S-1-t) step: one 128-lane
        # block-diagonal recurrence matmul serves both directions.
        h, c_f, c_b = carry                      # h = [h_f | h_b] : (BT, 2*H2)
        tb = S - 1 - t

        recur = jnp.dot(h, whh, preferred_element_type=jnp.float32)   # (BT, 8*H2)
        g_f = xproj_ref[t, :, 0:G] + recur[:, 0:G]
        g_b = xproj_ref[tb, :, G:2 * G] + recur[:, G:2 * G]

        h_f, c_f = gate_math(g_f, c_f)
        h_b, c_b = gate_math(g_b, c_b)

        hf_ref[t] = h_f                          # lane-offset-0 stores
        hb_ref[tb] = h_b
        return jnp.concatenate([h_f, h_b], axis=-1), c_f, c_b

    h0 = jnp.zeros((BT, 2 * H2), jnp.float32)
    c0 = jnp.zeros((BT, H2), jnp.float32)
    # S is small and static: unroll so the LLO scheduler overlaps consecutive
    # steps' gate math with the recurrence matmul.
    lax.fori_loop(0, S, step, (h0, c0, c0), unroll=True)

    # ---- Classifier (Linear; dropout = identity at eval): two GEMMs with
    # contiguous K slices over the fwd / bwd feature scratches.
    hf = hf_ref[...].reshape(S * BT, H2)
    hb = hb_ref[...].reshape(S * BT, H2)
    logits = (jnp.dot(hf, woutf_ref[...], preferred_element_type=jnp.float32)
              + jnp.dot(hb, woutb_ref[...], preferred_element_type=jnp.float32)
              + bout_ref[...])                                   # (S*BT, C)
    o_ref[...] = logits.reshape(S, BT, C)


# ------------------------------ host wrapper ------------------------------ #
def _round_up(n, m):
    return ((n + m - 1) // m) * m


def _pick_b_tile(B, S, E, C, H2, budget_bytes=10 << 20):
    """Largest doc tile (multiple of 16 for bf16 sublane packing, <=256) whose
    per-tile VMEM footprint fits a conservative budget that works on every
    generation's scoped-VMEM default (incl. v7x's 64 MiB physical VMEM)."""
    want = _round_up(B, 16)
    for bt in (256, 128, 64, 32, 16):
        if bt > want:
            continue
        footprint = (2 * S * bt * E * 2        # x block (bf16), double-buffered
                     + 2 * S * bt * C * 4      # out block (f32), double-buffered
                     + S * bt * 8 * H2 * 4     # xproj scratch (f32)
                     + 2 * S * bt * H2 * 4)    # hf + hb scratches (f32)
        if footprint <= budget_bytes:
            return bt
    return 16


def _prepare_fused_weights(p):
    """Build the fused/reordered weights used by the kernel.

    Per direction the PyTorch gate order (i, f, g, o) is reordered to
    (i, f, o, g) so the sigmoid gates are contiguous.  The two directions'
    input projections are concatenated along the output axis; the hidden
    recurrences become one block-diagonal matrix.
    """
    H2 = p["whh_f"].shape[0]

    def reorder(w):                      # (..., 4*H2) i,f,g,o -> i,f,o,g
        i, f, g, o = jnp.split(w, 4, axis=-1)
        return jnp.concatenate([i, f, o, g], axis=-1)

    win = jnp.concatenate([reorder(p["wih_f"]), reorder(p["wih_b"])], axis=1)
    b_in = jnp.concatenate([reorder(p["b_f"]), reorder(p["b_b"])], axis=1)
    whh = jnp.zeros((2 * H2, 8 * H2), jnp.float32)
    whh = whh.at[:H2, :4 * H2].set(reorder(p["whh_f"]))
    whh = whh.at[H2:, 4 * H2:].set(reorder(p["whh_b"]))
    return win, b_in, whh


def hierarchical_sc_forward(x, params):
    """x: (B, S, E) padded sentence embeddings -> logits (B*S, C)."""
    B, S, E = x.shape
    H2 = params["whh_f"].shape[0]
    C = params["wout"].shape[1]

    win, b_in, whh = _prepare_fused_weights(params)
    woutf = params["wout"][:H2]
    woutb = params["wout"][H2:]
    bout = params["bout"]

    b_tile = _pick_b_tile(B, S, E, C, H2)
    B_pad16 = _round_up(B, 16)
    # v7x has 2 TensorCores; keep >=2 steps on the 'parallel' doc-tile axis
    # whenever the batch allows it (neutral on 1-TC v5e/v6e).
    if B_pad16 >= 32 and 2 * b_tile > B_pad16:
        b_tile = max(16, b_tile // 2)
    B_pad = _round_up(B, b_tile)

    # Time-major, doc-padded, bf16 layout: (S, B_pad, E).  Padding docs are
    # zeros; their logits are sliced off below.  bf16 halves HBM->VMEM traffic
    # for the only large input; accumulation and gate math stay f32.
    x_tm = jnp.zeros((S, B_pad, E), jnp.bfloat16)
    x_tm = x_tm.at[:, :B, :].set(jnp.transpose(x, (1, 0, 2)).astype(jnp.bfloat16))

    full = lambda a: pl.BlockSpec(a.shape, lambda g: tuple(0 for _ in a.shape))

    out = pl.pallas_call(
        _bilstm_cls_kernel,
        out_shape=jax.ShapeDtypeStruct((S, B_pad, C), jnp.float32),
        grid_spec=pltpu.PrefetchScalarGridSpec(
            num_scalar_prefetch=0,
            grid=(B_pad // b_tile,),
            in_specs=[
                pl.BlockSpec((S, b_tile, E), lambda g: (0, g, 0)),
                full(win), full(b_in), full(whh),
                full(woutf), full(woutb), full(bout),
            ],
            out_specs=pl.BlockSpec((S, b_tile, C), lambda g: (0, g, 0)),
            scratch_shapes=[
                pltpu.VMEM((S, b_tile, 8 * H2), jnp.float32),   # xproj
                pltpu.VMEM((S, b_tile, H2), jnp.float32),       # h_fwd
                pltpu.VMEM((S, b_tile, H2), jnp.float32),       # h_bwd
            ],
        ),
        compiler_params=pltpu.CompilerParams(
            dimension_semantics=("parallel",),
            # Explicit scoped-VMEM limit: above v5e's 16 MiB default, within
            # v7x's 64 MiB physical VMEM.
            vmem_limit_bytes=32 << 20),
    )(
        x_tm, win.astype(jnp.bfloat16), b_in, whh, woutf, woutb, bout,
    )

    # Back to doc-major and flatten, matching the original pad+pack+unpad
    # (which classifies every padded row of every doc).
    out = jnp.transpose(out, (1, 0, 2))[:B]          # (B, S, C)
    return out.reshape(B * S, C)


# --------------------------- pure-JAX reference ---------------------------- #
def _ref_forward(x, p):
    H2 = p["whh_f"].shape[0]

    def lstm_dir(x_doc, wih, whh, b, reverse):
        def step(carry, xt):
            h, c = carry
            gates = xt @ wih + h @ whh + b[0]
            i = jax.nn.sigmoid(gates[0 * H2:1 * H2])
            f = jax.nn.sigmoid(gates[1 * H2:2 * H2])
            g = jnp.tanh(gates[2 * H2:3 * H2])
            o = jax.nn.sigmoid(gates[3 * H2:4 * H2])
            c = f * c + i * g
            h = o * jnp.tanh(c)
            return (h, c), h

        xs = x_doc[::-1] if reverse else x_doc
        _, hs = lax.scan(step, (jnp.zeros(H2), jnp.zeros(H2)), xs)
        return hs[::-1] if reverse else hs

    def per_doc(x_doc):
        hf = lstm_dir(x_doc, p["wih_f"], p["whh_f"], p["b_f"], False)
        hb = lstm_dir(x_doc, p["wih_b"], p["whh_b"], p["b_b"], True)
        feats = jnp.concatenate([hf, hb], axis=-1)
        return feats @ p["wout"] + p["bout"][0]

    out = jax.vmap(per_doc)(x)
    return out.reshape(-1, out.shape[-1])


# --------------------------------- main ------------------------------------ #
def _init_params(key, E, lstm_hidden_dim, C):
    H2 = lstm_hidden_dim // 2
    ks = jax.random.split(key, 9)
    s = 1.0 / jnp.sqrt(H2)
    u = lambda k, shape, lim: jax.random.uniform(k, shape, jnp.float32, -lim, lim)
    # Xavier-uniform for the classifier weight (fan_in=2*H2, fan_out=C).
    xav = jnp.sqrt(6.0 / (2 * H2 + C))
    return {
        "wih_f": u(ks[0], (E, 4 * H2), s),
        "whh_f": u(ks[1], (H2, 4 * H2), s),
        "b_f":   u(ks[2], (1, 4 * H2), s),   # b_ih + b_hh folded together
        "wih_b": u(ks[3], (E, 4 * H2), s),
        "whh_b": u(ks[4], (H2, 4 * H2), s),
        "b_b":   u(ks[5], (1, 4 * H2), s),
        "wout":  u(ks[6], (2 * H2, C), xav),
        "bout":  u(ks[7], (1, C), s),
    }


if __name__ == "__main__":
    # Small shapes: 2 documents x 8 sentences, embedding_dim=32,
    # lstm_hidden_dim=32 (-> per-direction hidden 16), n_classes=4.
    B, S, E, LSTM_H, C = 2, 8, 32, 32, 4

    key = jax.random.PRNGKey(0)
    k_x, k_p = jax.random.split(key)

    # TODO(synk): the first-level transformer encoder (encode_batch) is frozen
    # and outside forward(); its output is modeled here as random embeddings.
    # Quantize x and the input-projection weights to bf16-representable values
    # so the kernel's bf16 MXU path sees exactly what the f32 reference sees.
    q = lambda a: a.astype(jnp.bfloat16).astype(jnp.float32)
    sent_embeddings = q(jax.random.normal(k_x, (B, S, E), jnp.float32))
    params = _init_params(k_p, E, LSTM_H, C)
    params["wih_f"] = q(params["wih_f"])
    params["wih_b"] = q(params["wih_b"])

    logits = jax.block_until_ready(hierarchical_sc_forward(sent_embeddings, params))
    ref = _ref_forward(sent_embeddings, params)

    assert logits.shape == (B * S, C), logits.shape
    assert jnp.allclose(logits, ref, atol=2e-4, rtol=2e-4), (
        float(jnp.max(jnp.abs(logits - ref))))
    print("KERNEL_OK")
</pallas_src>

<mosaic_0001>
module attributes {stable_mosaic.version = 11 : i64} {
  func.func @_bilstm_cls_kernel(%arg0: i32, %arg1: memref<8x16x32xbf16, #tpu.memory_space<vmem>>, %arg2: memref<32x128xbf16, #tpu.memory_space<vmem>>, %arg3: memref<1x128xf32, #tpu.memory_space<vmem>>, %arg4: memref<32x128xf32, #tpu.memory_space<vmem>>, %arg5: memref<16x4xf32, #tpu.memory_space<vmem>>, %arg6: memref<16x4xf32, #tpu.memory_space<vmem>>, %arg7: memref<1x4xf32, #tpu.memory_space<vmem>>, %arg8: memref<8x16x4xf32, #tpu.memory_space<vmem>>, %arg9: memref<8x16x128xf32, #tpu.memory_space<vmem>>, %arg10: memref<8x16x16xf32, #tpu.memory_space<vmem>>, %arg11: memref<8x16x16xf32, #tpu.memory_space<vmem>>) attributes {dimension_semantics = [#tpu.dimension_semantics<parallel>], iteration_bounds = array<i64: 1>, scalar_prefetch = 0 : i64, scratch_operands = 3 : i64, tpu.core_type = #tpu.core_type<tc>, window_params = [{transform_indices = @transform_0, window_bounds = array<i64: 8, 16, 32>}, {pipeline_mode = #tpu.pipeline_mode<synchronous>, transform_indices = @transform_1, window_bounds = array<i64: 32, 128>}, {pipeline_mode = #tpu.pipeline_mode<synchronous>, transform_indices = @transform_2, window_bounds = array<i64: 1, 128>}, {pipeline_mode = #tpu.pipeline_mode<synchronous>, transform_indices = @transform_3, window_bounds = array<i64: 32, 128>}, {pipeline_mode = #tpu.pipeline_mode<synchronous>, transform_indices = @transform_4, window_bounds = array<i64: 16, 4>}, {pipeline_mode = #tpu.pipeline_mode<synchronous>, transform_indices = @transform_5, window_bounds = array<i64: 16, 4>}, {pipeline_mode = #tpu.pipeline_mode<synchronous>, transform_indices = @transform_6, window_bounds = array<i64: 1, 4>}, {transform_indices = @transform_7, window_bounds = array<i64: 8, 16, 4>}]} {
    %c0 = arith.constant 0 : index
    %c0_0 = arith.constant 0 : index
    %c0_1 = arith.constant 0 : index
    %0 = vector.load %arg1[%c0, %c0_0, %c0_1] : memref<8x16x32xbf16, #tpu.memory_space<vmem>>, vector<8x16x32xbf16>
    %1 = vector.shape_cast %0 : vector<8x16x32xbf16> to vector<128x32xbf16>
    %c0_2 = arith.constant 0 : index
    %c0_3 = arith.constant 0 : index
    %2 = vector.load %arg2[%c0_2, %c0_3] : memref<32x128xbf16, #tpu.memory_space<vmem>>, vector<32x128xbf16>
    %cst = arith.constant dense<0.000000e+00> : vector<128x128xf32>
    %3 = tpu.matmul %1, %2, %cst {dimension_numbers = #tpu.dot_dimension_numbers<[1], [0], [0], [1], [0, 0, 1, 1], [], []>} : vector<128x32xbf16>, vector<32x128xbf16>, vector<128x128xf32> -> vector<128x128xf32>
    %c0_4 = arith.constant 0 : index
    %c0_5 = arith.constant 0 : index
    %4 = vector.load %arg3[%c0_4, %c0_5] : memref<1x128xf32, #tpu.memory_space<vmem>>, vector<1x128xf32>
    %5 = vector.broadcast %4 : vector<1x128xf32> to vector<128x128xf32>
    %6 = arith.addf %3, %5 : vector<128x128xf32>
    %7 = vector.shape_cast %6 : vector<128x128xf32> to vector<8x16x128xf32>
    %c0_6 = arith.constant 0 : index
    %c0_7 = arith.constant 0 : index
    %c0_8 = arith.constant 0 : index
    %8 = vector.load %arg9[%c0_6, %c0_7, %c0_8] : memref<8x16x128xf32, #tpu.memory_space<vmem>>, vector<8x16x128xf32>
    tpu.vector_store %arg9[%c0_6, %c0_7, %c0_8], %7 {strides = array<i32>} : memref<8x16x128xf32, #tpu.memory_space<vmem>>, vector<8x16x128xf32>,
    %c0_9 = arith.constant 0 : index
    %c0_10 = arith.constant 0 : index
    %9 = vector.load %arg4[%c0_9, %c0_10] : memref<32x128xf32, #tpu.memory_space<vmem>>, vector<32x128xf32>
    %cst_11 = arith.constant 0.000000e+00 : f32
    %10 = vector.broadcast %cst_11 : f32 to vector<16x32xf32>
    %cst_12 = arith.constant 0.000000e+00 : f32
    %11 = vector.broadcast %cst_12 : f32 to vector<16x16xf32>
    %c0_i32 = arith.constant 0 : i32
    %c7_i32 = arith.constant 7 : i32
    %12 = arith.subi %c7_i32, %c0_i32 : i32
    %cst_13 = arith.constant dense<0.000000e+00> : vector<16x128xf32>
    %13 = tpu.matmul %10, %9, %cst_13 {dimension_numbers = #tpu.dot_dimension_numbers<[1], [0], [0], [1], [0, 0, 1, 1], [], []>} : vector<16x32xf32>, vector<32x128xf32>, vector<16x128xf32> -> vector<16x128xf32>
    %14 = arith.index_cast %c0_i32 : i32 to index
    %c0_14 = arith.constant 0 : index
    %c0_15 = arith.constant 0 : index
    %15 = vector.load %arg9[%14, %c0_14, %c0_15] : memref<8x16x128xf32, #tpu.memory_space<vmem>>, vector<1x16x64xf32>
    %16 = vector.shape_cast %15 : vector<1x16x64xf32> to vector<16x64xf32>
    %17 = vector.extract_strided_slice %13 {offsets = [0, 0], sizes = [16, 64], strides = [1, 1]} : vector<16x128xf32> to vector<16x64xf32>
    %18 = arith.addf %16, %17 : vector<16x64xf32>
    %19 = arith.index_cast %12 : i32 to index
    %c0_16 = arith.constant 0 : index
    %c64 = arith.constant 64 : index
    %20 = vector.load %arg9[%19, %c0_16, %c64] : memref<8x16x128xf32, #tpu.memory_space<vmem>>, vector<1x16x64xf32>
    %21 = vector.shape_cast %20 : vector<1x16x64xf32> to vector<16x64xf32>
    %22 = vector.extract_strided_slice %13 {offsets = [0, 64], sizes = [16, 64], strides = [1, 1]} : vector<16x128xf32> to vector<16x64xf32>
    %23 = arith.addf %21, %22 : vector<16x64xf32>
    %24 = vector.extract_strided_slice %18 {offsets = [0, 0], sizes = [16, 48], strides = [1, 1]} : vector<16x64xf32> to vector<16x48xf32>
    %25 = arith.negf %24 : vector<16x48xf32>
    %26 = math.exp %25 : vector<16x48xf32>
    %cst_17 = arith.constant 1.000000e+00 : f32
    %27 = vector.broadcast %cst_17 : f32 to vector<16x48xf32>
    %28 = arith.addf %27, %26 : vector<16x48xf32>
    %29 = arith.divf %27, %28 : vector<16x48xf32>
    %30 = vector.extract_strided_slice %18 {offsets = [0, 48], sizes = [16, 16], strides = [1, 1]} : vector<16x64xf32> to vector<16x16xf32>
    %31 = math.tanh %30 : vector<16x16xf32>
    %32 = vector.extract_strided_slice %29 {offsets = [0, 16], sizes = [16, 16], strides = [1, 1]} : vector<16x48xf32> to vector<16x16xf32>
    %33 = arith.mulf %32, %11 : vector<16x16xf32>
    %34 = vector.extract_strided_slice %29 {offsets = [0, 0], sizes = [16, 16], strides = [1, 1]} : vector<16x48xf32> to vector<16x16xf32>
    %35 = arith.mulf %34, %31 : vector<16x16xf32>
    %36 = arith.addf %33, %35 : vector<16x16xf32>
    %37 = vector.extract_strided_slice %29 {offsets = [0, 32], sizes = [16, 16], strides = [1, 1]} : vector<16x48xf32> to vector<16x16xf32>
    %38 = math.tanh %36 : vector<16x16xf32>
    %39 = arith.mulf %37, %38 : vector<16x16xf32>
    %40 = vector.extract_strided_slice %23 {offsets = [0, 0], sizes = [16, 48], strides = [1, 1]} : vector<16x64xf32> to vector<16x48xf32>
    %41 = arith.negf %40 : vector<16x48xf32>
    %42 = math.exp %41 : vector<16x48xf32>
    %cst_18 = arith.constant 1.000000e+00 : f32
    %43 = vector.broadcast %cst_18 : f32 to vector<16x48xf32>
    %44 = arith.addf %43, %42 : vector<16x48xf32>
    %45 = arith.divf %43, %44 : vector<16x48xf32>
    %46 = vector.extract_strided_slice %23 {offsets = [0, 48], sizes = [16, 16], strides = [1, 1]} : vector<16x64xf32> to vector<16x16xf32>
    %47 = math.tanh %46 : vector<16x16xf32>
    %48 = vector.extract_strided_slice %45 {offsets = [0, 16], sizes = [16, 16], strides = [1, 1]} : vector<16x48xf32> to vector<16x16xf32>
    %49 = arith.mulf %48, %11 : vector<16x16xf32>
    %50 = vector.extract_strided_slice %45 {offsets = [0, 0], sizes = [16, 16], strides = [1, 1]} : vector<16x48xf32> to vector<16x16xf32>
    %51 = arith.mulf %50, %47 : vector<16x16xf32>
    %52 = arith.addf %49, %51 : vector<16x16xf32>
    %53 = vector.extract_strided_slice %45 {offsets = [0, 32], sizes = [16, 16], strides = [1, 1]} : vector<16x48xf32> to vector<16x16xf32>
    %54 = math.tanh %52 : vector<16x16xf32>
    %55 = arith.mulf %53, %54 : vector<16x16xf32>
    %56 = arith.index_cast %c0_i32 : i32 to index
    %c0_19 = arith.constant 0 : index
    %c0_20 = arith.constant 0 : index
    %57 = vector.load %arg10[%56, %c0_19, %c0_20] : memref<8x16x16xf32, #tpu.memory_space<vmem>>, vector<1x16x16xf32>
    %58 = vector.shape_cast %57 : vector<1x16x16xf32> to vector<16x16xf32>
    %59 = vector.shape_cast %39 : vector<16x16xf32> to vector<1x16x16xf32>
    tpu.vector_store %arg10[%56, %c0_19, %c0_20], %59 {strides = array<i32>} : memref<8x16x16xf32, #tpu.memory_space<vmem>>, vector<1x16x16xf32>,
    %60 = arith.index_cast %12 : i32 to index
    %c0_21 = arith.constant 0 : index
    %c0_22 = arith.constant 0 : index
    %61 = vector.load %arg11[%60, %c0_21, %c0_22] : memref<8x16x16xf32, #tpu.memory_space<vmem>>, vector<1x16x16xf32>
    %62 = vector.shape_cast %61 : vector<1x16x16xf32> to vector<16x16xf32>
    %63 = vector.shape_cast %55 : vector<16x16xf32> to vector<1x16x16xf32>
    tpu.vector_store %arg11[%60, %c0_21, %c0_22], %63 {strides = array<i32>} : memref<8x16x16xf32, #tpu.memory_space<vmem>>, vector<1x16x16xf32>,
    %64 = tpu.concatenate %39, %55 in 1 : vector<16x16xf32>, vector<16x16xf32> -> vector<16x32xf32>
    %c1_i32 = arith.constant 1 : i32
    %c7_i32_23 = arith.constant 7 : i32
    %65 = arith.subi %c7_i32_23, %c1_i32 : i32
    %cst_24 = arith.constant dense<0.000000e+00> : vector<16x128xf32>
    %66 = tpu.matmul %64, %9, %cst_24 {dimension_numbers = #tpu.dot_dimension_numbers<[1], [0], [0], [1], [0, 0, 1, 1], [], []>} : vector<16x32xf32>, vector<32x128xf32>, vector<16x128xf32> -> vector<16x128xf32>
    %67 = arith.index_cast %c1_i32 : i32 to index
    %c0_25 = arith.constant 0 : index
    %c0_26 = arith.constant 0 : index
    %68 = vector.load %arg9[%67, %c0_25, %c0_26] : memref<8x16x128xf32, #tpu.memory_space<vmem>>, vector<1x16x64xf32>
    %69 = vector.shape_cast %68 : vector<1x16x64xf32> to vector<16x64xf32>
    %70 = vector.extract_strided_slice %66 {offsets = [0, 0], sizes = [16, 64], strides = [1, 1]} : vector<16x128xf32> to vector<16x64xf32>
    %71 = arith.addf %69, %70 : vector<16x64xf32>
    %72 = arith.index_cast %65 : i32 to index
    %c0_27 = arith.constant 0 : index
    %c64_28 = arith.constant 64 : index
    %73 = vector.load %arg9[%72, %c0_27, %c64_28] : memref<8x16x128xf32, #tpu.memory_space<vmem>>, vector<1x16x64xf32>
    %74 = vector.shape_cast %73 : vector<1x16x64xf32> to vector<16x64xf32>
    %75 = vector.extract_strided_slice %66 {offsets = [0, 64], sizes = [16, 64], strides = [1, 1]} : vector<16x128xf32> to vector<16x64xf32>
    %76 = arith.addf %74, %75 : vector<16x64xf32>
    %77 = vector.extract_strided_slice %71 {offsets = [0, 0], sizes = [16, 48], strides = [1, 1]} : vector<16x64xf32> to vector<16x48xf32>
    %78 = arith.negf %77 : vector<16x48xf32>
    %79 = math.exp %78 : vector<16x48xf32>
    %cst_29 = arith.constant 1.000000e+00 : f32
    %80 = vector.broadcast %cst_29 : f32 to vector<16x48xf32>
    %81 = arith.addf %80, %79 : vector<16x48xf32>
    %82 = arith.divf %80, %81 : vector<16x48xf32>
    %83 = vector.extract_strided_slice %71 {offsets = [0, 48], sizes = [16, 16], strides = [1, 1]} : vector<16x64xf32> to vector<16x16xf32>
    %84 = math.tanh %83 : vector<16x16xf32>
    %85 = vector.extract_strided_slice %82 {offsets = [0, 16], sizes = [16, 16], strides = [1, 1]} : vector<16x48xf32> to vector<16x16xf32>
    %86 = arith.mulf %85, %36 : vector<16x16xf32>
    %87 = vector.extract_strided_slice %82 {offsets = [0, 0], sizes = [16, 16], strides = [1, 1]} : vector<16x48xf32> to vector<16x16xf32>
    %88 = arith.mulf %87, %84 : vector<16x16xf32>
    %89 = arith.addf %86, %88 : vector<16x16xf32>
    %90 = vector.extract_strided_slice %82 {offsets = [0, 32], sizes = [16, 16], strides = [1, 1]} : vector<16x48xf32> to vector<16x16xf32>
    %91 = math.tanh %89 : vector<16x16xf32>
    %92 = arith.mulf %90, %91 : vector<16x16xf32>
    %93 = vector.extract_strided_slice %76 {offsets = [0, 0], sizes = [16, 48], strides = [1, 1]} : vector<16x64xf32> to vector<16x48xf32>
    %94 = arith.negf %93 : vector<16x48xf32>
    %95 = math.exp %94 : vector<16x48xf32>
    %cst_30 = arith.constant 1.000000e+00 : f32
    %96 = vector.broadcast %cst_30 : f32 to vector<16x48xf32>
    %97 = arith.addf %96, %95 : vector<16x48xf32>
    %98 = arith.divf %96, %97 : vector<16x48xf32>
    %99 = vector.extract_strided_slice %76 {offsets = [0, 48], sizes = [16, 16], strides = [1, 1]} : vector<16x64xf32> to vector<16x16xf32>
    %100 = math.tanh %99 : vector<16x16xf32>
    %101 = vector.extract_strided_slice %98 {offsets = [0, 16], sizes = [16, 16], strides = [1, 1]} : vector<16x48xf32> to vector<16x16xf32>
    %102 = arith.mulf %101, %52 : vector<16x16xf32>
    %103 = vector.extract_strided_slice %98 {offsets = [0, 0], sizes = [16, 16], strides = [1, 1]} : vector<16x48xf32> to vector<16x16xf32>
    %104 = arith.mulf %103, %100 : vector<16x16xf32>
    %105 = arith.addf %102, %104 : vector<16x16xf32>
    %106 = vector.extract_strided_slice %98 {offsets = [0, 32], sizes = [16, 16], strides = [1, 1]} : vector<16x48xf32> to vector<16x16xf32>
    %107 = math.tanh %105 : vector<16x16xf32>
    %108 = arith.mulf %106, %107 : vector<16x16xf32>
    %109 = arith.index_cast %c1_i32 : i32 to index
    %c0_31 = arith.constant 0 : index
    %c0_32 = arith.constant 0 : index
    %110 = vector.load %arg10[%109, %c0_31, %c0_32] : memref<8x16x16xf32, #tpu.memory_space<vmem>>, vector<1x16x16xf32>
    %111 = vector.shape_cast %110 : vector<1x16x16xf32> to vector<16x16xf32>
    %112 = vector.shape_cast %92 : vector<16x16xf32> to vector<1x16x16xf32>
    tpu.vector_store %arg10[%109, %c0_31, %c0_32], %112 {strides = array<i32>} : memref<8x16x16xf32, #tpu.memory_space<vmem>>, vector<1x16x16xf32>,
    %113 = arith.index_cast %65 : i32 to index
    %c0_33 = arith.constant 0 : index
    %c0_34 = arith.constant 0 : index
    %114 = vector.load %arg11[%113, %c0_33, %c0_34] : memref<8x16x16xf32, #tpu.memory_space<vmem>>, vector<1x16x16xf32>
    %115 = vector.shape_cast %114 : vector<1x16x16xf32> to vector<16x16xf32>
    %116 = vector.shape_cast %108 : vector<16x16xf32> to vector<1x16x16xf32>
    tpu.vector_store %arg11[%113, %c0_33, %c0_34], %116 {strides = array<i32>} : memref<8x16x16xf32, #tpu.memory_space<vmem>>, vector<1x16x16xf32>,
    %117 = tpu.concatenate %92, %108 in 1 : vector<16x16xf32>, vector<16x16xf32> -> vector<16x32xf32>
    %c2_i32 = arith.constant 2 : i32
    %c7_i32_35 = arith.constant 7 : i32
    %118 = arith.subi %c7_i32_35, %c2_i32 : i32
    %cst_36 = arith.constant dense<0.000000e+00> : vector<16x128xf32>
    %119 = tpu.matmul %117, %9, %cst_36 {dimension_numbers = #tpu.dot_dimension_numbers<[1], [0], [0], [1], [0, 0, 1, 1], [], []>} : vector<16x32xf32>, vector<32x128xf32>, vector<16x128xf32> -> vector<16x128xf32>
    %120 = arith.index_cast %c2_i32 : i32 to index
    %c0_37 = arith.constant 0 : index
    %c0_38 = arith.constant 0 : index
    %121 = vector.load %arg9[%120, %c0_37, %c0_38] : memref<8x16x128xf32, #tpu.memory_space<vmem>>, vector<1x16x64xf32>
    %122 = vector.shape_cast %121 : vector<1x16x64xf32> to vector<16x64xf32>
    %123 = vector.extract_strided_slice %119 {offsets = [0, 0], sizes = [16, 64], strides = [1, 1]} : vector<16x128xf32> to vector<16x64xf32>
    %124 = arith.addf %122, %123 : vector<16x64xf32>
    %125 = arith.index_cast %118 : i32 to index
    %c0_39 = arith.constant 0 : index
    %c64_40 = arith.constant 64 : index
    %126 = vector.load %arg9[%125, %c0_39, %c64_40] : memref<8x16x128xf32, #tpu.memory_space<vmem>>, vector<1x16x64xf32>
    %127 = vector.shape_cast %126 : vector<1x16x64xf32> to vector<16x64xf32>
    %128 = vector.extract_strided_slice %119 {offsets = [0, 64], sizes = [16, 64], strides = [1, 1]} : vector<16x128xf32> to vector<16x64xf32>
    %129 = arith.addf %127, %128 : vector<16x64xf32>
    %130 = vector.extract_strided_slice %124 {offsets = [0, 0], sizes = [16, 48], strides = [1, 1]} : vector<16x64xf32> to vector<16x48xf32>
    %131 = arith.negf %130 : vector<16x48xf32>
    %132 = math.exp %131 : vector<16x48xf32>
    %cst_41 = arith.constant 1.000000e+00 : f32
    %133 = vector.broadcast %cst_41 : f32 to vector<16x48xf32>
    %134 = arith.addf %133, %132 : vector<16x48xf32>
    %135 = arith.divf %133, %134 : vector<16x48xf32>
    %136 = vector.extract_strided_slice %124 {offsets = [0, 48], sizes = [16, 16], strides = [1, 1]} : vector<16x64xf32> to vector<16x16xf32>
    %137 = math.tanh %136 : vector<16x16xf32>
    %138 = vector.extract_strided_slice %135 {offsets = [0, 16], sizes = [16, 16], strides = [1, 1]} : vector<16x48xf32> to vector<16x16xf32>
    %139 = arith.mulf %138, %89 : vector<16x16xf32>
    %140 = vector.extract_strided_slice %135 {offsets = [0, 0], sizes = [16, 16], strides = [1, 1]} : vector<16x48xf32> to vector<16x16xf32>
    %141 = arith.mulf %140, %137 : vector<16x16xf32>
    %142 = arith.addf %139, %141 : vector<16x16xf32>
    %143 = vector.extract_strided_slice %135 {offsets = [0, 32], sizes = [16, 16], strides = [1, 1]} : vector<16x48xf32> to vector<16x16xf32>
    %144 = math.tanh %142 : vector<16x16xf32>
    %145 = arith.mulf %143, %144 : vector<16x16xf32>
    %146 = vector.extract_strided_slice %129 {offsets = [0, 0], sizes = [16, 48], strides = [1, 1]} : vector<16x64xf32> to vector<16x48xf32>
    %147 = arith.negf %146 : vector<16x48xf32>
    %148 = math.exp %147 : vector<16x48xf32>
    %cst_42 = arith.constant 1.000000e+00 : f32
    %149 = vector.broadcast %cst_42 : f32 to vector<16x48xf32>
    %150 = arith.addf %149, %148 : vector<16x48xf32>
    %151 = arith.divf %149, %150 : vector<16x48xf32>
    %152 = vector.extract_strided_slice %129 {offsets = [0, 48], sizes = [16, 16], strides = [1, 1]} : vector<16x64xf32> to vector<16x16xf32>
    %153 = math.tanh %152 : vector<16x16xf32>
    %154 = vector.extract_strided_slice %151 {offsets = [0, 16], sizes = [16, 16], strides = [1, 1]} : vector<16x48xf32> to vector<16x16xf32>
    %155 = arith.mulf %154, %105 : vector<16x16xf32>
    %156 = vector.extract_strided_slice %151 {offsets = [0, 0], sizes = [16, 16], strides = [1, 1]} : vector<16x48xf32> to vector<16x16xf32>
    %157 = arith.mulf %156, %153 : vector<16x16xf32>
    %158 = arith.addf %155, %157 : vector<16x16xf32>
    %159 = vector.extract_strided_slice %151 {offsets = [0, 32], sizes = [16, 16], strides = [1, 1]} : vector<16x48xf32> to vector<16x16xf32>
    %160 = math.tanh %158 : vector<16x16xf32>
    %161 = arith.mulf %159, %160 : vector<16x16xf32>
    %162 = arith.index_cast %c2_i32 : i32 to index
    %c0_43 = arith.constant 0 : index
    %c0_44 = arith.constant 0 : index
    %163 = vector.load %arg10[%162, %c0_43, %c0_44] : memref<8x16x16xf32, #tpu.memory_space<vmem>>, vector<1x16x16xf32>
    %164 = vector.shape_cast %163 : vector<1x16x16xf32> to vector<16x16xf32>
    %165 = vector.shape_cast %145 : vector<16x16xf32> to vector<1x16x16xf32>
    tpu.vector_store %arg10[%162, %c0_43, %c0_44], %165 {strides = array<i32>} : memref<8x16x16xf32, #tpu.memory_space<vmem>>, vector<1x16x16xf32>,
    %166 = arith.index_cast %118 : i32 to index
    %c0_45 = arith.constant 0 : index
    %c0_46 = arith.constant 0 : index
    %167 = vector.load %arg11[%166, %c0_45, %c0_46] : memref<8x16x16xf32, #tpu.memory_space<vmem>>, vector<1x16x16xf32>
    %168 = vector.shape_cast %167 : vector<1x16x16xf32> to vector<16x16xf32>
    %169 = vector.shape_cast %161 : vector<16x16xf32> to vector<1x16x16xf32>
    tpu.vector_store %arg11[%166, %c0_45, %c0_46], %169 {strides = array<i32>} : memref<8x16x16xf32, #tpu.memory_space<vmem>>, vector<1x16x16xf32>,
    %170 = tpu.concatenate %145, %161 in 1 : vector<16x16xf32>, vector<16x16xf32> -> vector<16x32xf32>
    %c3_i32 = arith.constant 3 : i32
    %c7_i32_47 = arith.constant 7 : i32
    %171 = arith.subi %c7_i32_47, %c3_i32 : i32
    %cst_48 = arith.constant dense<0.000000e+00> : vector<16x128xf32>
    %172 = tpu.matmul %170, %9, %cst_48 {dimension_numbers = #tpu.dot_dimension_numbers<[1], [0], [0], [1], [0, 0, 1, 1], [], []>} : vector<16x32xf32>, vector<32x128xf32>, vector<16x128xf32> -> vector<16x128xf32>
    %173 = arith.index_cast %c3_i32 : i32 to index
    %c0_49 = arith.constant 0 : index
    %c0_50 = arith.constant 0 : index
    %174 = vector.load %arg9[%173, %c0_49, %c0_50] : memref<8x16x128xf32, #tpu.memory_space<vmem>>, vector<1x16x64xf32>
    %175 = vector.shape_cast %174 : vector<1x16x64xf32> to vector<16x64xf32>
    %176 = vector.extract_strided_slice %172 {offsets = [0, 0], sizes = [16, 64], strides = [1, 1]} : vector<16x128xf32> to vector<16x64xf32>
    %177 = arith.addf %175, %176 : vector<16x64xf32>
    %178 = arith.index_cast %171 : i32 to index
    %c0_51 = arith.constant 0 : index
    %c64_52 = arith.constant 64 : index
    %179 = vector.load %arg9[%178, %c0_51, %c64_52] : memref<8x16x128xf32, #tpu.memory_space<vmem>>, vector<1x16x64xf32>
    %180 = vector.shape_cast %179 : vector<1x16x64xf32> to vector<16x64xf32>
    %181 = vector.extract_strided_slice %172 {offsets = [0, 64], sizes = [16, 64], strides = [1, 1]} : vector<16x128xf32> to vector<16x64xf32>
    %182 = arith.addf %180, %181 : vector<16x64xf32>
    %183 = vector.extract_strided_slice %177 {offsets = [0, 0], sizes = [16, 48], strides = [1, 1]} : vector<16x64xf32> to vector<16x48xf32>
    %184 = arith.negf %183 : vector<16x48xf32>
    %185 = math.exp %184 : vector<16x48xf32>
    %cst_53 = arith.constant 1.000000e+00 : f32
    %186 = vector.broadcast %cst_53 : f32 to vector<16x48xf32>
    %187 = arith.addf %186, %185 : vector<16x48xf32>
    %188 = arith.divf %186, %187 : vector<16x48xf32>
    %189 = vector.extract_strided_slice %177 {offsets = [0, 48], sizes = [16, 16], strides = [1, 1]} : vector<16x64xf32> to vector<16x16xf32>
    %190 = math.tanh %189 : vector<16x16xf32>
    %191 = vector.extract_strided_slice %188 {offsets = [0, 16], sizes = [16, 16], strides = [1, 1]} : vector<16x48xf32> to vector<16x16xf32>
    %192 = arith.mulf %191, %142 : vector<16x16xf32>
    %193 = vector.extract_strided_slice %188 {offsets = [0, 0], sizes = [16, 16], strides = [1, 1]} : vector<16x48xf32> to vector<16x16xf32>
    %194 = arith.mulf %193, %190 : vector<16x16xf32>
    %195 = arith.addf %192, %194 : vector<16x16xf32>
    %196 = vector.extract_strided_slice %188 {offsets = [0, 32], sizes = [16, 16], strides = [1, 1]} : vector<16x48xf32> to vector<16x16xf32>
    %197 = math.tanh %195 : vector<16x16xf32>
    %198 = arith.mulf %196, %197 : vector<16x16xf32>
    %199 = vector.extract_strided_slice %182 {offsets = [0, 0], sizes = [16, 48], strides = [1, 1]} : vector<16x64xf32> to vector<16x48xf32>
    %200 = arith.negf %199 : vector<16x48xf32>
    %201 = math.exp %200 : vector<16x48xf32>
    %cst_54 = arith.constant 1.000000e+00 : f32
    %202 = vector.broadcast %cst_54 : f32 to vector<16x48xf32>
    %203 = arith.addf %202, %201 : vector<16x48xf32>
    %204 = arith.divf %202, %203 : vector<16x48xf32>
    %205 = vector.extract_strided_slice %182 {offsets = [0, 48], sizes = [16, 16], strides = [1, 1]} : vector<16x64xf32> to vector<16x16xf32>
    %206 = math.tanh %205 : vector<16x16xf32>
    %207 = vector.extract_strided_slice %204 {offsets = [0, 16], sizes = [16, 16], strides = [1, 1]} : vector<16x48xf32> to vector<16x16xf32>
    %208 = arith.mulf %207, %158 : vector<16x16xf32>
    %209 = vector.extract_strided_slice %204 {offsets = [0, 0], sizes = [16, 16], strides = [1, 1]} : vector<16x48xf32> to vector<16x16xf32>
    %210 = arith.mulf %209, %206 : vector<16x16xf32>
    %211 = arith.addf %208, %210 : vector<16x16xf32>
    %212 = vector.extract_strided_slice %204 {offsets = [0, 32], sizes = [16, 16], strides = [1, 1]} : vector<16x48xf32> to vector<16x16xf32>
    %213 = math.tanh %211 : vector<16x16xf32>
    %214 = arith.mulf %212, %213 : vector<16x16xf32>
    %215 = arith.index_cast %c3_i32 : i32 to index
    %c0_55 = arith.constant 0 : index
    %c0_56 = arith.constant 0 : index
    %216 = vector.load %arg10[%215, %c0_55, %c0_56] : memref<8x16x16xf32, #tpu.memory_space<vmem>>, vector<1x16x16xf32>
    %217 = vector.shape_cast %216 : vector<1x16x16xf32> to vector<16x16xf32>
    %218 = vector.shape_cast %198 : vector<16x16xf32> to vector<1x16x16xf32>
    tpu.vector_store %arg10[%215, %c0_55, %c0_56], %218 {strides = array<i32>} : memref<8x16x16xf32, #tpu.memory_space<vmem>>, vector<1x16x16xf32>,
    %219 = arith.index_cast %171 : i32 to index
    %c0_57 = arith.constant 0 : index
    %c0_58 = arith.constant 0 : index
    %220 = vector.load %arg11[%219, %c0_57, %c0_58] : memref<8x16x16xf32, #tpu.memory_space<vmem>>, vector<1x16x16xf32>
    %221 = vector.shape_cast %220 : vector<1x16x16xf32> to vector<16x16xf32>
    %222 = vector.shape_cast %214 : vector<16x16xf32> to vector<1x16x16xf32>
    tpu.vector_store %arg11[%219, %c0_57, %c0_58], %222 {strides = array<i32>} : memref<8x16x16xf32, #tpu.memory_space<vmem>>, vector<1x16x16xf32>,
    %223 = tpu.concatenate %198, %214 in 1 : vector<16x16xf32>, vector<16x16xf32> -> vector<16x32xf32>
    %c4_i32 = arith.constant 4 : i32
    %c7_i32_59 = arith.constant 7 : i32
    %224 = arith.subi %c7_i32_59, %c4_i32 : i32
    %cst_60 = arith.constant dense<0.000000e+00> : vector<16x128xf32>
    %225 = tpu.matmul %223, %9, %cst_60 {dimension_numbers = #tpu.dot_dimension_numbers<[1], [0], [0], [1], [0, 0, 1, 1], [], []>} : vector<16x32xf32>, vector<32x128xf32>, vector<16x128xf32> -> vector<16x128xf32>
    %226 = arith.index_cast %c4_i32 : i32 to index
    %c0_61 = arith.constant 0 : index
    %c0_62 = arith.constant 0 : index
    %227 = vector.load %arg9[%226, %c0_61, %c0_62] : memref<8x16x128xf32, #tpu.memory_space<vmem>>, vector<1x16x64xf32>
    %228 = vector.shape_cast %227 : vector<1x16x64xf32> to vector<16x64xf32>
    %229 = vector.extract_strided_slice %225 {offsets = [0, 0], sizes = [16, 64], strides = [1, 1]} : vector<16x128xf32> to vector<16x64xf32>
    %230 = arith.addf %228, %229 : vector<16x64xf32>
    %231 = arith.index_cast %224 : i32 to index
    %c0_63 = arith.constant 0 : index
    %c64_64 = arith.constant 64 : index
    %232 = vector.load %arg9[%231, %c0_63, %c64_64] : memref<8x16x128xf32, #tpu.memory_space<vmem>>, vector<1x16x64xf32>
    %233 = vector.shape_cast %232 : vector<1x16x64xf32> to vector<16x64xf32>
    %234 = vector.extract_strided_slice %225 {offsets = [0, 64], sizes = [16, 64], strides = [1, 1]} : vector<16x128xf32> to vector<16x64xf32>
    %235 = arith.addf %233, %234 : vector<16x64xf32>
    %236 = vector.extract_strided_slice %230 {offsets = [0, 0], sizes = [16, 48], strides = [1, 1]} : vector<16x64xf32> to vector<16x48xf32>
    %237 = arith.negf %236 : vector<16x48xf32>
    %238 = math.exp %237 : vector<16x48xf32>
    %cst_65 = arith.constant 1.000000e+00 : f32
    %239 = vector.broadcast %cst_65 : f32 to vector<16x48xf32>
    %240 = arith.addf %239, %238 : vector<16x48xf32>
    %241 = arith.divf %239, %240 : vector<16x48xf32>
    %242 = vector.extract_strided_slice %230 {offsets = [0, 48], sizes = [16, 16], strides = [1, 1]} : vector<16x64xf32> to vector<16x16xf32>
    %243 = math.tanh %242 : vector<16x16xf32>
    %244 = vector.extract_strided_slice %241 {offsets = [0, 16], sizes = [16, 16], strides = [1, 1]} : vector<16x48xf32> to vector<16x16xf32>
    %245 = arith.mulf %244, %195 : vector<16x16xf32>
    %246 = vector.extract_strided_slice %241 {offsets = [0, 0], sizes = [16, 16], strides = [1, 1]} : vector<16x48xf32> to vector<16x16xf32>
    %247 = arith.mulf %246, %243 : vector<16x16xf32>
    %248 = arith.addf %245, %247 : vector<16x16xf32>
    %249 = vector.extract_strided_slice %241 {offsets = [0, 32], sizes = [16, 16], strides = [1, 1]} : vector<16x48xf32> to vector<16x16xf32>
    %250 = math.tanh %248 : vector<16x16xf32>
    %251 = arith.mulf %249, %250 : vector<16x16xf32>
    %252 = vector.extract_strided_slice %235 {offsets = [0, 0], sizes = [16, 48], strides = [1, 1]} : vector<16x64xf32> to vector<16x48xf32>
    %253 = arith.negf %252 : vector<16x48xf32>
    %254 = math.exp %253 : vector<16x48xf32>
    %cst_66 = arith.constant 1.000000e+00 : f32
    %255 = vector.broadcast %cst_66 : f32 to vector<16x48xf32>
    %256 = arith.addf %255, %254 : vector<16x48xf32>
    %257 = arith.divf %255, %256 : vector<16x48xf32>
    %258 = vector.extract_strided_slice %235 {offsets = [0, 48], sizes = [16, 16], strides = [1, 1]} : vector<16x64xf32> to vector<16x16xf32>
    %259 = math.tanh %258 : vector<16x16xf32>
    %260 = vector.extract_strided_slice %257 {offsets = [0, 16], sizes = [16, 16], strides = [1, 1]} : vector<16x48xf32> to vector<16x16xf32>
    %261 = arith.mulf %260, %211 : vector<16x16xf32>
    %262 = vector.extract_strided_slice %257 {offsets = [0, 0], sizes = [16, 16], strides = [1, 1]} : vector<16x48xf32> to vector<16x16xf32>
    %263 = arith.mulf %262, %259 : vector<16x16xf32>
    %264 = arith.addf %261, %263 : vector<16x16xf32>
    %265 = vector.extract_strided_slice %257 {offsets = [0, 32], sizes = [16, 16], strides = [1, 1]} : vector<16x48xf32> to vector<16x16xf32>
    %266 = math.tanh %264 : vector<16x16xf32>
    %267 = arith.mulf %265, %266 : vector<16x16xf32>
    %268 = arith.index_cast %c4_i32 : i32 to index
    %c0_67 = arith.constant 0 : index
    %c0_68 = arith.constant 0 : index
    %269 = vector.load %arg10[%268, %c0_67, %c0_68] : memref<8x16x16xf32, #tpu.memory_space<vmem>>, vector<1x16x16xf32>
    %270 = vector.shape_cast %269 : vector<1x16x16xf32> to vector<16x16xf32>
    %271 = vector.shape_cast %251 : vector<16x16xf32> to vector<1x16x16xf32>
    tpu.vector_store %arg10[%268, %c0_67, %c0_68], %271 {strides = array<i32>} : memref<8x16x16xf32, #tpu.memory_space<vmem>>, vector<1x16x16xf32>,
    %272 = arith.index_cast %224 : i32 to index
    %c0_69 = arith.constant 0 : index
    %c0_70 = arith.constant 0 : index
    %273 = vector.load %arg11[%272, %c0_69, %c0_70] : memref<8x16x16xf32, #tpu.memory_space<vmem>>, vector<1x16x16xf32>
    %274 = vector.shape_cast %273 : vector<1x16x16xf32> to vector<16x16xf32>
    %275 = vector.shape_cast %267 : vector<16x16xf32> to vector<1x16x16xf32>
    tpu.vector_store %arg11[%272, %c0_69, %c0_70], %275 {strides = array<i32>} : memref<8x16x16xf32, #tpu.memory_space<vmem>>, vector<1x16x16xf32>,
    %276 = tpu.concatenate %251, %267 in 1 : vector<16x16xf32>, vector<16x16xf32> -> vector<16x32xf32>
    %c5_i32 = arith.constant 5 : i32
    %c7_i32_71 = arith.constant 7 : i32
    %277 = arith.subi %c7_i32_71, %c5_i32 : i32
    %cst_72 = arith.constant dense<0.000000e+00> : vector<16x128xf32>
    %278 = tpu.matmul %276, %9, %cst_72 {dimension_numbers = #tpu.dot_dimension_numbers<[1], [0], [0], [1], [0, 0, 1, 1], [], []>} : vector<16x32xf32>, vector<32x128xf32>, vector<16x128xf32> -> vector<16x128xf32>
    %279 = arith.index_cast %c5_i32 : i32 to index
    %c0_73 = arith.constant 0 : index
    %c0_74 = arith.constant 0 : index
    %280 = vector.load %arg9[%279, %c0_73, %c0_74] : memref<8x16x128xf32, #tpu.memory_space<vmem>>, vector<1x16x64xf32>
    %281 = vector.shape_cast %280 : vector<1x16x64xf32> to vector<16x64xf32>
    %282 = vector.extract_strided_slice %278 {offsets = [0, 0], sizes = [16, 64], strides = [1, 1]} : vector<16x128xf32> to vector<16x64xf32>
    %283 = arith.addf %281, %282 : vector<16x64xf32>
    %284 = arith.index_cast %277 : i32 to index
    %c0_75 = arith.constant 0 : index
    %c64_76 = arith.constant 64 : index
    %285 = vector.load %arg9[%284, %c0_75, %c64_76] : memref<8x16x128xf32, #tpu.memory_space<vmem>>, vector<1x16x64xf32>
    %286 = vector.shape_cast %285 : vector<1x16x64xf32> to vector<16x64xf32>
    %287 = vector.extract_strided_slice %278 {offsets = [0, 64], sizes = [16, 64], strides = [1, 1]} : vector<16x128xf32> to vector<16x64xf32>
    %288 = arith.addf %286, %287 : vector<16x64xf32>
    %289 = vector.extract_strided_slice %283 {offsets = [0, 0], sizes = [16, 48], strides = [1, 1]} : vector<16x64xf32> to vector<16x48xf32>
    %290 = arith.negf %289 : vector<16x48xf32>
    %291 = math.exp %290 : vector<16x48xf32>
    %cst_77 = arith.constant 1.000000e+00 : f32
    %292 = vector.broadcast %cst_77 : f32 to vector<16x48xf32>
    %293 = arith.addf %292, %291 : vector<16x48xf32>
    %294 = arith.divf %292, %293 : vector<16x48xf32>
    %295 = vector.extract_strided_slice %283 {offsets = [0, 48], sizes = [16, 16], strides = [1, 1]} : vector<16x64xf32> to vector<16x16xf32>
    %296 = math.tanh %295 : vector<16x16xf32>
    %297 = vector.extract_strided_slice %294 {offsets = [0, 16], sizes = [16, 16], strides = [1, 1]} : vector<16x48xf32> to vector<16x16xf32>
    %298 = arith.mulf %297, %248 : vector<16x16xf32>
    %299 = vector.extract_strided_slice %294 {offsets = [0, 0], sizes = [16, 16], strides = [1, 1]} : vector<16x48xf32> to vector<16x16xf32>
    %300 = arith.mulf %299, %296 : vector<16x16xf32>
    %301 = arith.addf %298, %300 : vector<16x16xf32>
    %302 = vector.extract_strided_slice %294 {offsets = [0, 32], sizes = [16, 16], strides = [1, 1]} : vector<16x48xf32> to vector<16x16xf32>
    %303 = math.tanh %301 : vector<16x16xf32>
    %304 = arith.mulf %302, %303 : vector<16x16xf32>
    %305 = vector.extract_strided_slice %288 {offsets = [0, 0], sizes = [16, 48], strides = [1, 1]} : vector<16x64xf32> to vector<16x48xf32>
    %306 = arith.negf %305 : vector<16x48xf32>
    %307 = math.exp %306 : vector<16x48xf32>
    %cst_78 = arith.constant 1.000000e+00 : f32
    %308 = vector.broadcast %cst_78 : f32 to vector<16x48xf32>
    %309 = arith.addf %308, %307 : vector<16x48xf32>
    %310 = arith.divf %308, %309 : vector<16x48xf32>
    %311 = vector.extract_strided_slice %288 {offsets = [0, 48], sizes = [16, 16], strides = [1, 1]} : vector<16x64xf32> to vector<16x16xf32>
    %312 = math.tanh %311 : vector<16x16xf32>
    %313 = vector.extract_strided_slice %310 {offsets = [0, 16], sizes = [16, 16], strides = [1, 1]} : vector<16x48xf32> to vector<16x16xf32>
    %314 = arith.mulf %313, %264 : vector<16x16xf32>
    %315 = vector.extract_strided_slice %310 {offsets = [0, 0], sizes = [16, 16], strides = [1, 1]} : vector<16x48xf32> to vector<16x16xf32>
    %316 = arith.mulf %315, %312 : vector<16x16xf32>
    %317 = arith.addf %314, %316 : vector<16x16xf32>
    %318 = vector.extract_strided_slice %310 {offsets = [0, 32], sizes = [16, 16], strides = [1, 1]} : vector<16x48xf32> to vector<16x16xf32>
    %319 = math.tanh %317 : vector<16x16xf32>
    %320 = arith.mulf %318, %319 : vector<16x16xf32>
    %321 = arith.index_cast %c5_i32 : i32 to index
    %c0_79 = arith.constant 0 : index
    %c0_80 = arith.constant 0 : index
    %322 = vector.load %arg10[%321, %c0_79, %c0_80] : memref<8x16x16xf32, #tpu.memory_space<vmem>>, vector<1x16x16xf32>
    %323 = vector.shape_cast %322 : vector<1x16x16xf32> to vector<16x16xf32>
    %324 = vector.shape_cast %304 : vector<16x16xf32> to vector<1x16x16xf32>
    tpu.vector_store %arg10[%321, %c0_79, %c0_80], %324 {strides = array<i32>} : memref<8x16x16xf32, #tpu.memory_space<vmem>>, vector<1x16x16xf32>,
    %325 = arith.index_cast %277 : i32 to index
    %c0_81 = arith.constant 0 : index
    %c0_82 = arith.constant 0 : index
    %326 = vector.load %arg11[%325, %c0_81, %c0_82] : memref<8x16x16xf32, #tpu.memory_space<vmem>>, vector<1x16x16xf32>
    %327 = vector.shape_cast %326 : vector<1x16x16xf32> to vector<16x16xf32>
    %328 = vector.shape_cast %320 : vector<16x16xf32> to vector<1x16x16xf32>
    tpu.vector_store %arg11[%325, %c0_81, %c0_82], %328 {strides = array<i32>} : memref<8x16x16xf32, #tpu.memory_space<vmem>>, vector<1x16x16xf32>,
    %329 = tpu.concatenate %304, %320 in 1 : vector<16x16xf32>, vector<16x16xf32> -> vector<16x32xf32>
    %c6_i32 = arith.constant 6 : i32
    %c7_i32_83 = arith.constant 7 : i32
    %330 = arith.subi %c7_i32_83, %c6_i32 : i32
    %cst_84 = arith.constant dense<0.000000e+00> : vector<16x128xf32>
    %331 = tpu.matmul %329, %9, %cst_84 {dimension_numbers = #tpu.dot_dimension_numbers<[1], [0], [0], [1], [0, 0, 1, 1], [], []>} : vector<16x32xf32>, vector<32x128xf32>, vector<16x128xf32> -> vector<16x128xf32>
    %332 = arith.index_cast %c6_i32 : i32 to index
    %c0_85 = arith.constant 0 : index
    %c0_86 = arith.constant 0 : index
    %333 = vector.load %arg9[%332, %c0_85, %c0_86] : memref<8x16x128xf32, #tpu.memory_space<vmem>>, vector<1x16x64xf32>
    %334 = vector.shape_cast %333 : vector<1x16x64xf32> to vector<16x64xf32>
    %335 = vector.extract_strided_slice %331 {offsets = [0, 0], sizes = [16, 64], strides = [1, 1]} : vector<16x128xf32> to vector<16x64xf32>
    %336 = arith.addf %334, %335 : vector<16x64xf32>
    %337 = arith.index_cast %330 : i32 to index
    %c0_87 = arith.constant 0 : index
    %c64_88 = arith.constant 64 : index
    %338 = vector.load %arg9[%337, %c0_87, %c64_88] : memref<8x16x128xf32, #tpu.memory_space<vmem>>, vector<1x16x64xf32>
    %339 = vector.shape_cast %338 : vector<1x16x64xf32> to vector<16x64xf32>
    %340 = vector.extract_strided_slice %331 {offsets = [0, 64], sizes = [16, 64], strides = [1, 1]} : vector<16x128xf32> to vector<16x64xf32>
    %341 = arith.addf %339, %340 : vector<16x64xf32>
    %342 = vector.extract_strided_slice %336 {offsets = [0, 0], sizes = [16, 48], strides = [1, 1]} : vector<16x64xf32> to vector<16x48xf32>
    %343 = arith.negf %342 : vector<16x48xf32>
    %344 = math.exp %343 : vector<16x48xf32>
    %cst_89 = arith.constant 1.000000e+00 : f32
    %345 = vector.broadcast %cst_89 : f32 to vector<16x48xf32>
    %346 = arith.addf %345, %344 : vector<16x48xf32>
    %347 = arith.divf %345, %346 : vector<16x48xf32>
    %348 = vector.extract_strided_slice %336 {offsets = [0, 48], sizes = [16, 16], strides = [1, 1]} : vector<16x64xf32> to vector<16x16xf32>
    %349 = math.tanh %348 : vector<16x16xf32>
    %350 = vector.extract_strided_slice %347 {offsets = [0, 16], sizes = [16, 16], strides = [1, 1]} : vector<16x48xf32> to vector<16x16xf32>
    %351 = arith.mulf %350, %301 : vector<16x16xf32>
    %352 = vector.extract_strided_slice %347 {offsets = [0, 0], sizes = [16, 16], strides = [1, 1]} : vector<16x48xf32> to vector<16x16xf32>
    %353 = arith.mulf %352, %349 : vector<16x16xf32>
    %354 = arith.addf %351, %353 : vector<16x16xf32>
    %355 = vector.extract_strided_slice %347 {offsets = [0, 32], sizes = [16, 16], strides = [1, 1]} : vector<16x48xf32> to vector<16x16xf32>
    %356 = math.tanh %354 : vector<16x16xf32>
    %357 = arith.mulf %355, %356 : vector<16x16xf32>
    %358 = vector.extract_strided_slice %341 {offsets = [0, 0], sizes = [16, 48], strides = [1, 1]} : vector<16x64xf32> to vector<16x48xf32>
    %359 = arith.negf %358 : vector<16x48xf32>
    %360 = math.exp %359 : vector<16x48xf32>
    %cst_90 = arith.constant 1.000000e+00 : f32
    %361 = vector.broadcast %cst_90 : f32 to vector<16x48xf32>
    %362 = arith.addf %361, %360 : vector<16x48xf32>
    %363 = arith.divf %361, %362 : vector<16x48xf32>
    %364 = vector.extract_strided_slice %341 {offsets = [0, 48], sizes = [16, 16], strides = [1, 1]} : vector<16x64xf32> to vector<16x16xf32>
    %365 = math.tanh %364 : vector<16x16xf32>
    %366 = vector.extract_strided_slice %363 {offsets = [0, 16], sizes = [16, 16], strides = [1, 1]} : vector<16x48xf32> to vector<16x16xf32>
    %367 = arith.mulf %366, %317 : vector<16x16xf32>
    %368 = vector.extract_strided_slice %363 {offsets = [0, 0], sizes = [16, 16], strides = [1, 1]} : vector<16x48xf32> to vector<16x16xf32>
    %369 = arith.mulf %368, %365 : vector<16x16xf32>
    %370 = arith.addf %367, %369 : vector<16x16xf32>
    %371 = vector.extract_strided_slice %363 {offsets = [0, 32], sizes = [16, 16], strides = [1, 1]} : vector<16x48xf32> to vector<16x16xf32>
    %372 = math.tanh %370 : vector<16x16xf32>
    %373 = arith.mulf %371, %372 : vector<16x16xf32>
    %374 = arith.index_cast %c6_i32 : i32 to index
    %c0_91 = arith.constant 0 : index
    %c0_92 = arith.constant 0 : index
    %375 = vector.load %arg10[%374, %c0_91, %c0_92] : memref<8x16x16xf32, #tpu.memory_space<vmem>>, vector<1x16x16xf32>
    %376 = vector.shape_cast %375 : vector<1x16x16xf32> to vector<16x16xf32>
    %377 = vector.shape_cast %357 : vector<16x16xf32> to vector<1x16x16xf32>
    tpu.vector_store %arg10[%374, %c0_91, %c0_92], %377 {strides = array<i32>} : memref<8x16x16xf32, #tpu.memory_space<vmem>>, vector<1x16x16xf32>,
    %378 = arith.index_cast %330 : i32 to index
    %c0_93 = arith.constant 0 : index
    %c0_94 = arith.constant 0 : index
    %379 = vector.load %arg11[%378, %c0_93, %c0_94] : memref<8x16x16xf32, #tpu.memory_space<vmem>>, vector<1x16x16xf32>
    %380 = vector.shape_cast %379 : vector<1x16x16xf32> to vector<16x16xf32>
    %381 = vector.shape_cast %373 : vector<16x16xf32> to vector<1x16x16xf32>
    tpu.vector_store %arg11[%378, %c0_93, %c0_94], %381 {strides = array<i32>} : memref<8x16x16xf32, #tpu.memory_space<vmem>>, vector<1x16x16xf32>,
    %382 = tpu.concatenate %357, %373 in 1 : vector<16x16xf32>, vector<16x16xf32> -> vector<16x32xf32>
    %c7_i32_95 = arith.constant 7 : i32
    %c7_i32_96 = arith.constant 7 : i32
    %383 = arith.subi %c7_i32_96, %c7_i32_95 : i32
    %cst_97 = arith.constant dense<0.000000e+00> : vector<16x128xf32>
    %384 = tpu.matmul %382, %9, %cst_97 {dimension_numbers = #tpu.dot_dimension_numbers<[1], [0], [0], [1], [0, 0, 1, 1], [], []>} : vector<16x32xf32>, vector<32x128xf32>, vector<16x128xf32> -> vector<16x128xf32>
    %385 = arith.index_cast %c7_i32_95 : i32 to index
    %c0_98 = arith.constant 0 : index
    %c0_99 = arith.constant 0 : index
    %386 = vector.load %arg9[%385, %c0_98, %c0_99] : memref<8x16x128xf32, #tpu.memory_space<vmem>>, vector<1x16x64xf32>
    %387 = vector.shape_cast %386 : vector<1x16x64xf32> to vector<16x64xf32>
    %388 = vector.extract_strided_slice %384 {offsets = [0, 0], sizes = [16, 64], strides = [1, 1]} : vector<16x128xf32> to vector<16x64xf32>
    %389 = arith.addf %387, %388 : vector<16x64xf32>
    %390 = arith.index_cast %383 : i32 to index
    %c0_100 = arith.constant 0 : index
    %c64_101 = arith.constant 64 : index
    %391 = vector.load %arg9[%390, %c0_100, %c64_101] : memref<8x16x128xf32, #tpu.memory_space<vmem>>, vector<1x16x64xf32>
    %392 = vector.shape_cast %391 : vector<1x16x64xf32> to vector<16x64xf32>
    %393 = vector.extract_strided_slice %384 {offsets = [0, 64], sizes = [16, 64], strides = [1, 1]} : vector<16x128xf32> to vector<16x64xf32>
    %394 = arith.addf %392, %393 : vector<16x64xf32>
    %395 = vector.extract_strided_slice %389 {offsets = [0, 0], sizes = [16, 48], strides = [1, 1]} : vector<16x64xf32> to vector<16x48xf32>
    %396 = arith.negf %395 : vector<16x48xf32>
    %397 = math.exp %396 : vector<16x48xf32>
    %cst_102 = arith.constant 1.000000e+00 : f32
    %398 = vector.broadcast %cst_102 : f32 to vector<16x48xf32>
    %399 = arith.addf %398, %397 : vector<16x48xf32>
    %400 = arith.divf %398, %399 : vector<16x48xf32>
    %401 = vector.extract_strided_slice %389 {offsets = [0, 48], sizes = [16, 16], strides = [1, 1]} : vector<16x64xf32> to vector<16x16xf32>
    %402 = math.tanh %401 : vector<16x16xf32>
    %403 = vector.extract_strided_slice %400 {offsets = [0, 16], sizes = [16, 16], strides = [1, 1]} : vector<16x48xf32> to vector<16x16xf32>
    %404 = arith.mulf %403, %354 : vector<16x16xf32>
    %405 = vector.extract_strided_slice %400 {offsets = [0, 0], sizes = [16, 16], strides = [1, 1]} : vector<16x48xf32> to vector<16x16xf32>
    %406 = arith.mulf %405, %402 : vector<16x16xf32>
    %407 = arith.addf %404, %406 : vector<16x16xf32>
    %408 = vector.extract_strided_slice %400 {offsets = [0, 32], sizes = [16, 16], strides = [1, 1]} : vector<16x48xf32> to vector<16x16xf32>
    %409 = math.tanh %407 : vector<16x16xf32>
    %410 = arith.mulf %408, %409 : vector<16x16xf32>
    %411 = vector.extract_strided_slice %394 {offsets = [0, 0], sizes = [16, 48], strides = [1, 1]} : vector<16x64xf32> to vector<16x48xf32>
    %412 = arith.negf %411 : vector<16x48xf32>
    %413 = math.exp %412 : vector<16x48xf32>
    %cst_103 = arith.constant 1.000000e+00 : f32
    %414 = vector.broadcast %cst_103 : f32 to vector<16x48xf32>
    %415 = arith.addf %414, %413 : vector<16x48xf32>
    %416 = arith.divf %414, %415 : vector<16x48xf32>
    %417 = vector.extract_strided_slice %394 {offsets = [0, 48], sizes = [16, 16], strides = [1, 1]} : vector<16x64xf32> to vector<16x16xf32>
    %418 = math.tanh %417 : vector<16x16xf32>
    %419 = vector.extract_strided_slice %416 {offsets = [0, 16], sizes = [16, 16], strides = [1, 1]} : vector<16x48xf32> to vector<16x16xf32>
    %420 = arith.mulf %419, %370 : vector<16x16xf32>
    %421 = vector.extract_strided_slice %416 {offsets = [0, 0], sizes = [16, 16], strides = [1, 1]} : vector<16x48xf32> to vector<16x16xf32>
    %422 = arith.mulf %421, %418 : vector<16x16xf32>
    %423 = arith.addf %420, %422 : vector<16x16xf32>
    %424 = vector.extract_strided_slice %416 {offsets = [0, 32], sizes = [16, 16], strides = [1, 1]} : vector<16x48xf32> to vector<16x16xf32>
    %425 = math.tanh %423 : vector<16x16xf32>
    %426 = arith.mulf %424, %425 : vector<16x16xf32>
    %427 = arith.index_cast %c7_i32_95 : i32 to index
    %c0_104 = arith.constant 0 : index
    %c0_105 = arith.constant 0 : index
    %428 = vector.load %arg10[%427, %c0_104, %c0_105] : memref<8x16x16xf32, #tpu.memory_space<vmem>>, vector<1x16x16xf32>
    %429 = vector.shape_cast %428 : vector<1x16x16xf32> to vector<16x16xf32>
    %430 = vector.shape_cast %410 : vector<16x16xf32> to vector<1x16x16xf32>
    tpu.vector_store %arg10[%427, %c0_104, %c0_105], %430 {strides = array<i32>} : memref<8x16x16xf32, #tpu.memory_space<vmem>>, vector<1x16x16xf32>,
    %431 = arith.index_cast %383 : i32 to index
    %c0_106 = arith.constant 0 : index
    %c0_107 = arith.constant 0 : index
    %432 = vector.load %arg11[%431, %c0_106, %c0_107] : memref<8x16x16xf32, #tpu.memory_space<vmem>>, vector<1x16x16xf32>
    %433 = vector.shape_cast %432 : vector<1x16x16xf32> to vector<16x16xf32>
    %434 = vector.shape_cast %426 : vector<16x16xf32> to vector<1x16x16xf32>
    tpu.vector_store %arg11[%431, %c0_106, %c0_107], %434 {strides = array<i32>} : memref<8x16x16xf32, #tpu.memory_space<vmem>>, vector<1x16x16xf32>,
    %435 = tpu.concatenate %410, %426 in 1 : vector<16x16xf32>, vector<16x16xf32> -> vector<16x32xf32>
    %c8_i32 = arith.constant 8 : i32
    %c0_108 = arith.constant 0 : index
    %c0_109 = arith.constant 0 : index
    %c0_110 = arith.constant 0 : index
    %436 = vector.load %arg10[%c0_108, %c0_109, %c0_110] : memref<8x16x16xf32, #tpu.memory_space<vmem>>, vector<8x16x16xf32>
    %437 = vector.shape_cast %436 : vector<8x16x16xf32> to vector<128x16xf32>
    %c0_111 = arith.constant 0 : index
    %c0_112 = arith.constant 0 : index
    %c0_113 = arith.constant 0 : index
    %438 = vector.load %arg11[%c0_111, %c0_112, %c0_113] : memref<8x16x16xf32, #tpu.memory_space<vmem>>, vector<8x16x16xf32>
    %439 = vector.shape_cast %438 : vector<8x16x16xf32> to vector<128x16xf32>
    %c0_114 = arith.constant 0 : index
    %c0_115 = arith.constant 0 : index
    %440 = vector.load %arg5[%c0_114, %c0_115] : memref<16x4xf32, #tpu.memory_space<vmem>>, vector<16x4xf32>
    %cst_116 = arith.constant dense<0.000000e+00> : vector<128x4xf32>
    %441 = tpu.matmul %437, %440, %cst_116 {dimension_numbers = #tpu.dot_dimension_numbers<[1], [0], [0], [1], [0, 0, 1, 1], [], []>} : vector<128x16xf32>, vector<16x4xf32>, vector<128x4xf32> -> vector<128x4xf32>
    %c0_117 = arith.constant 0 : index
    %c0_118 = arith.constant 0 : index
    %442 = vector.load %arg6[%c0_117, %c0_118] : memref<16x4xf32, #tpu.memory_space<vmem>>, vector<16x4xf32>
    %cst_119 = arith.constant dense<0.000000e+00> : vector<128x4xf32>
    %443 = tpu.matmul %439, %442, %cst_119 {dimension_numbers = #tpu.dot_dimension_numbers<[1], [0], [0], [1], [0, 0, 1, 1], [], []>} : vector<128x16xf32>, vector<16x4xf32>, vector<128x4xf32> -> vector<128x4xf32>
    %444 = arith.addf %441, %443 : vector<128x4xf32>
    %c0_120 = arith.constant 0 : index
    %c0_121 = arith.constant 0 : index
    %445 = vector.load %arg7[%c0_120, %c0_121] : memref<1x4xf32, #tpu.memory_space<vmem>>, vector<1x4xf32>
    %446 = vector.broadcast %445 : vector<1x4xf32> to vector<128x4xf32>
    %447 = arith.addf %444, %446 : vector<128x4xf32>
    %448 = vector.shape_cast %447 : vector<128x4xf32> to vector<8x16x4xf32>
    %c0_122 = arith.constant 0 : index
    %c0_123 = arith.constant 0 : index
    %c0_124 = arith.constant 0 : index
    %449 = vector.load %arg8[%c0_122, %c0_123, %c0_124] : memref<8x16x4xf32, #tpu.memory_space<vmem>>, vector<8x16x4xf32>
    tpu.vector_store %arg8[%c0_122, %c0_123, %c0_124], %448 {strides = array<i32>} : memref<8x16x4xf32, #tpu.memory_space<vmem>>, vector<8x16x4xf32>,
    return
  }
  func.func @transform_0(%arg0: i32) -> (i32, i32, i32) {
    %c0_i32 = arith.constant 0 : i32
    %c0_i32_0 = arith.constant 0 : i32
    %c0_i32_1 = arith.constant 0 : i32
    return %c0_i32, %arg0, %c0_i32_0 : i32, i32, i32
  }
  func.func @transform_1(%arg0: i32) -> (i32, i32) {
    %c0_i32 = arith.constant 0 : i32
    %c0_i32_0 = arith.constant 0 : i32
    %c0_i32_1 = arith.constant 0 : i32
    return %c0_i32, %c0_i32_0 : i32, i32
  }
  func.func @transform_2(%arg0: i32) -> (i32, i32) {
    %c0_i32 = arith.constant 0 : i32
    %c0_i32_0 = arith.constant 0 : i32
    %c0_i32_1 = arith.constant 0 : i32
    return %c0_i32, %c0_i32_0 : i32, i32
  }
  func.func @transform_3(%arg0: i32) -> (i32, i32) {
    %c0_i32 = arith.constant 0 : i32
    %c0_i32_0 = arith.constant 0 : i32
    %c0_i32_1 = arith.constant 0 : i32
    return %c0_i32, %c0_i32_0 : i32, i32
  }
  func.func @transform_4(%arg0: i32) -> (i32, i32) {
    %c0_i32 = arith.constant 0 : i32
    %c0_i32_0 = arith.constant 0 : i32
    %c0_i32_1 = arith.constant 0 : i32
    return %c0_i32, %c0_i32_0 : i32, i32
  }
  func.func @transform_5(%arg0: i32) -> (i32, i32) {
    %c0_i32 = arith.constant 0 : i32
    %c0_i32_0 = arith.constant 0 : i32
    %c0_i32_1 = arith.constant 0 : i32
    return %c0_i32, %c0_i32_0 : i32, i32
  }
  func.func @transform_6(%arg0: i32) -> (i32, i32) {
    %c0_i32 = arith.constant 0 : i32
    %c0_i32_0 = arith.constant 0 : i32
    %c0_i32_1 = arith.constant 0 : i32
    return %c0_i32, %c0_i32_0 : i32, i32
  }
  func.func @transform_7(%arg0: i32) -> (i32, i32, i32) {
    %c0_i32 = arith.constant 0 : i32
    %c0_i32_0 = arith.constant 0 : i32
    %c0_i32_1 = arith.constant 0 : i32
    return %c0_i32, %arg0, %c0_i32_0 : i32, i32, i32
  }
}

</mosaic_0001>

<llo_original>
// kernel: tpu_custom_call.1
$region0: #{tpu_custom_call.1}
  #allocation0 [shape = 'u32[]', space=smem, size = 0x4, offset = 0x4, fixed_abs, tag = 'smem constant byte address 0x4 - core index']
  #allocation1 [shape = 'u32[144,128]{1,0:T(1,128)}', space=vmem, size = 0x12000, scoped, tag = 'internal scratch']
  #allocation2 [shape = 'f32[8,16,128]{2,1,0:T(8,128)}', space=vmem, size = 0x10000, scoped, tag = 'scratch operand']
  #allocation3 [shape = 'f32[8,16,16]{2,1,0:T(8,128)}', space=vmem, size = 0x10000, scoped, tag = 'scratch operand']
  #allocation4 [shape = 'f32[8,16,16]{2,1,0:T(8,128)}', space=vmem, size = 0x10000, scoped, tag = 'scratch operand']
  %s0 = inlined_call_operand.hbm [shape: bf16[8,16,32], index: 0, kind: input, shape index: {}]
  %s1 = inlined_call_operand.vmem [shape: bf16[32,128], index: 1, kind: input, shape index: {}]
  %s2 = inlined_call_operand.vmem [shape: f32[1,128], index: 2, kind: input, shape index: {}]
  %s3 = inlined_call_operand.vmem [shape: f32[32,128], index: 3, kind: input, shape index: {}]
  %s4 = inlined_call_operand.vmem [shape: f32[16,4], index: 4, kind: input, shape index: {}]
  %s5 = inlined_call_operand.vmem [shape: f32[16,4], index: 5, kind: input, shape index: {}]
  %s6 = inlined_call_operand.vmem [shape: f32[1,4], index: 6, kind: input, shape index: {}]
  %s7 = inlined_call_operand.vmem [shape: f32[8,16,4], index: 7, kind: output, shape index: {}]
  %s8 = sld [smem:[#allocation0]]
  $region42: #{tpu_custom_call.1} parent=0
    _
  %s10 = ssub.s32 1, %s8
  %s11 = scalar_select 0, %s10, %s8
  $region1: #{tpu_custom_call.1} parent=0
    #allocation5 [shape = 'u8[32768]{0}', space=vmem, size = 0x8000, scoped, tag = 'input window, operand 0, single buffered']
    #allocation6 [shape = 's32[1]{0}', space=sflag, size = 0x4, scoped, tag = 'scoped memory for tpu_custom_call.1']
    %12 = vsyncpa [#allocation6], 0
    // Predicated region
    $region2: #{tpu_custom_call.1} parent=1 // pred_check
      _
    $region3: #{tpu_custom_call.1} parent=1 // pred_check_branch
      %14 = sbr.rel (0) target = $region5
    $region4: #{tpu_custom_call.1} parent=1 // pred_region
      %s16 = ssub.s32 1024, 1024
      %17 = vsyncadd [#allocation6], %s16
      %s18 = sshll.u32 [#allocation5], 4
      %s19 = int_to_ptr.vmem [resolvable:$true] %s18
      %24 = dma.hbm_to_vmem [thread:$0]  %s0, 1024, %s19, [#allocation6], 64, 64, 4
    $region5: #{tpu_custom_call.1} parent=1 // pred_fallthru
      _
    // Predicated region
    $region6: #{tpu_custom_call.1} parent=1 // pred_check
      _
    $region7: #{tpu_custom_call.1} parent=1 // pred_check_branch
      %26 = sbr.rel (0) target = $region9
    $region8: #{tpu_custom_call.1} parent=1 // pred_region
      _
    $region9: #{tpu_custom_call.1} parent=1 // pred_fallthru
      _
    // Predicated region
    $region10: #{tpu_custom_call.1} parent=1 // pred_check
      _
    $region11: #{tpu_custom_call.1} parent=1 // pred_check_branch
      %28 = sbr.rel (0) target = $region13
    $region12: #{tpu_custom_call.1} parent=1 // pred_region
      _
    $region13: #{tpu_custom_call.1} parent=1 // pred_fallthru
      _
    // Predicated region
    $region14: #{tpu_custom_call.1} parent=1 // pred_check
      _
    $region15: #{tpu_custom_call.1} parent=1 // pred_check_branch
      %30 = sbr.rel (0) target = $region17
    $region16: #{tpu_custom_call.1} parent=1 // pred_region
      _
    $region17: #{tpu_custom_call.1} parent=1 // pred_fallthru
      _
    // Predicated region
    $region18: #{tpu_custom_call.1} parent=1 // pred_check
      _
    $region19: #{tpu_custom_call.1} parent=1 // pred_check_branch
      %32 = sbr.rel (0) target = $region21
    $region20: #{tpu_custom_call.1} parent=1 // pred_region
      _
    $region21: #{tpu_custom_call.1} parent=1 // pred_fallthru
      _
    // Predicated region
    $region22: #{tpu_custom_call.1} parent=1 // pred_check
      _
    $region23: #{tpu_custom_call.1} parent=1 // pred_check_branch
      %34 = sbr.rel (0) target = $region25
    $region24: #{tpu_custom_call.1} parent=1 // pred_region
      _
    $region25: #{tpu_custom_call.1} parent=1 // pred_fallthru
      _
    // Predicated region
    $region26: #{tpu_custom_call.1} parent=1 // pred_check
      _
    $region27: #{tpu_custom_call.1} parent=1 // pred_check_branch
      %36 = sbr.rel (0) target = $region29
    $region28: #{tpu_custom_call.1} parent=1 // pred_region
      _
    $region29: #{tpu_custom_call.1} parent=1 // pred_fallthru
      _
    // Predicated region
    $region30: #{tpu_custom_call.1} parent=1 // pred_check
      _
    $region31: #{tpu_custom_call.1} parent=1 // pred_check_branch
      %38 = sbr.rel (0) target = $region33
    $region32: #{tpu_custom_call.1} parent=1 // pred_region
      %39 = dma.done [#allocation6], 1024
    $region33: #{tpu_custom_call.1} parent=1 // pred_fallthru
      _
    %v41 = vld [vmem:[#allocation5] sm:$0xf]
    %v42 = vld [vmem:[#allocation5 + $0x4] sm:$0xf]
    %v43 = vld [vmem:[#allocation5 + $0x8] sm:$0xf]
    %v44 = vld [vmem:[#allocation5 + $0xc] sm:$0xf]
    %v45 = vld [vmem:[#allocation5 + $0x10] sm:$0xf]
    %v46 = vld [vmem:[#allocation5 + $0x14] sm:$0xf]
    %v47 = vld [vmem:[#allocation5 + $0x18] sm:$0xf]
    %v48 = vld [vmem:[#allocation5 + $0x1c] sm:$0xf]
    %v49 = vld [vmem:[#allocation5 + $0x20] sm:$0xf]
    %v50 = vld [vmem:[#allocation5 + $0x24] sm:$0xf]
    %v51 = vld [vmem:[#allocation5 + $0x28] sm:$0xf]
    %v52 = vld [vmem:[#allocation5 + $0x2c] sm:$0xf]
    %v53 = vld [vmem:[#allocation5 + $0x30] sm:$0xf]
    %v54 = vld [vmem:[#allocation5 + $0x34] sm:$0xf]
    %v55 = vld [vmem:[#allocation5 + $0x38] sm:$0xf]
    %v56 = vld [vmem:[#allocation5 + $0x3c] sm:$0xf]
    %v57 = vld [vmem:[%s1] sm:$0xf]
    %v58 = vld [vmem:[%s1 + $0x4] sm:$0xf]
    %v59 = vld [vmem:[%s1 + $0x8] sm:$0xf]
    %v60 = vld [vmem:[%s1 + $0xc] sm:$0xf]
    %v61 = vld [vmem:[%s2] sm:$0x1]
    %v63 = vlaneseq
    %v64 = vshrl.u32 %v63, 7
    %v65 = vsub.s32 0, %v64
    %v66 = vrot.slane %v61, %v65
    %v84 = vunpack.c.l.b16 %v41
    %v85 = vunpack.c.l.b16 %v42
    %v86 = vunpack.c.l.b16 %v43
    %v87 = vunpack.c.l.b16 %v44
    %v88 = vunpack.c.l.b16 %v45
    %v89 = vunpack.c.l.b16 %v46
    %v90 = vunpack.c.l.b16 %v47
    %v91 = vunpack.c.l.b16 %v48
    %v92 = vunpack.c.l.b16 %v49
    %v93 = vunpack.c.l.b16 %v50
    %v94 = vunpack.c.l.b16 %v51
    %v95 = vunpack.c.l.b16 %v52
    %v96 = vunpack.c.l.b16 %v53
    %v97 = vunpack.c.l.b16 %v54
    %v98 = vunpack.c.l.b16 %v55
    %v99 = vunpack.c.l.b16 %v56
    %v100 = vpack.c.b16 %v85, %v84
    %v101 = vpack.c.b16 %v87, %v86
    %v102 = vpack.c.b16 %v89, %v88
    %v103 = vpack.c.b16 %v91, %v90
    %v104 = vpack.c.b16 %v93, %v92
    %v105 = vpack.c.b16 %v95, %v94
    %v106 = vpack.c.b16 %v97, %v96
    %v107 = vpack.c.b16 %v99, %v98
    %v112 = vunpack.c.l.b16 %v57
    %v113 = vunpack.c.l.b16 %v58
    %v114 = vunpack.c.l.b16 %v59
    %v115 = vunpack.c.l.b16 %v60
    %v116 = vpack.c.b16 %v113, %v112
    %v117 = vpack.c.b16 %v115, %v114
    %vm120 = vcmask 261120
    %v122 = vsel %vm120, %v100, 0
    %v125 = vsel %vm120, %v101, 0
    %v128 = vsel %vm120, %v102, 0
    %v131 = vsel %vm120, %v103, 0
    %v134 = vsel %vm120, %v104, 0
    %v137 = vsel %vm120, %v105, 0
    %v140 = vsel %vm120, %v106, 0
    %v143 = vsel %vm120, %v107, 0
    %145 = vmatprep.subr.bf16.mxu0 0
    %146 = vmatpush1.bf16.msra.mxu0 %v116
    %147 = vmatprep.subr.bf16.mxu0 0
    %148 = vmatpush1.bf16.msra.mxu0 %v117
    %149 = vmatprep.subr.bf16.mxu0 0
    %150 = vmatpush1.bf16.msra.mxu0 0
    %151 = vmatprep.subr.bf16.mxu0 0
    %152 = vmatpush1.bf16.msra.mxu0 0
    %153 = vmatprep.subr.bf16.mxu0 0
    %154 = vmatpush1.bf16.msra.mxu0 0
    %155 = vmatprep.subr.bf16.mxu0 0
    %156 = vmatpush1.bf16.msra.mxu0 0
    %157 = vmatprep.subr.bf16.mxu0 0
    %158 = vmatpush1.bf16.msra.mxu0 0
    %159 = vmatprep.subr.bf16.mxu0 0
    %160 = vmatpush1.bf16.msra.mxu0 0
    %161 = vmatprep.subr.bf16.mxu0 0
    %162 = vmatpush1.bf16.msra.mxu0 0
    %163 = vmatprep.subr.bf16.mxu0 0
    %164 = vmatpush1.bf16.msra.mxu0 0
    %165 = vmatprep.subr.bf16.mxu0 0
    %166 = vmatpush1.bf16.msra.mxu0 0
    %167 = vmatprep.subr.bf16.mxu0 0
    %168 = vmatpush1.bf16.msra.mxu0 0
    %169 = vmatprep.subr.bf16.mxu0 0
    %170 = vmatpush1.bf16.msra.mxu0 0
    %171 = vmatprep.subr.bf16.mxu0 0
    %172 = vmatpush1.bf16.msra.mxu0 0
    %173 = vmatprep.subr.bf16.mxu0 0
    %174 = vmatpush1.bf16.msra.mxu0 0
    %175 = vmatprep.subr.bf16.mxu0 0
    %176 = vmatpush1.bf16.msra.mxu0 0
    %177 = vmatprep.mubr.bf16.mxu0 0
    %178 = vmatmul.mubr.bf16.gmra.mrb[0].mxu0 %v122
    %v179 = vpop.f32.mrb[0].mxu0
    %v180 = vadd.f32 %v66, %v179
    %v181 = vpop.f32.mrb[0].mxu0
    %v182 = vpop.f32.mrb[0].mxu0
    %v183 = vadd.f32 %v66, %v182
    %v184 = vpop.f32.mrb[0].mxu0
    %185 = vmatprep.mubr.bf16.mxu0 0
    %186 = vmatmul.mubr.bf16.gmra.mrb[0].mxu0 %v125
    %v187 = vpop.f32.mrb[0].mxu0
    %v188 = vadd.f32 %v66, %v187
    %v189 = vpop.f32.mrb[0].mxu0
    %v190 = vpop.f32.mrb[0].mxu0
    %v191 = vadd.f32 %v66, %v190
    %v192 = vpop.f32.mrb[0].mxu0
    %193 = vmatprep.mubr.bf16.mxu0 0
    %194 = vmatmul.mubr.bf16.gmra.mrb[0].mxu0 %v128
    %v195 = vpop.f32.mrb[0].mxu0
    %v196 = vadd.f32 %v66, %v195
    %v197 = vpop.f32.mrb[0].mxu0
    %v198 = vpop.f32.mrb[0].mxu0
    %v199 = vadd.f32 %v66, %v198
    %v200 = vpop.f32.mrb[0].mxu0
    %201 = vmatprep.mubr.bf16.mxu0 0
    %202 = vmatmul.mubr.bf16.gmra.mrb[0].mxu0 %v131
    %v203 = vpop.f32.mrb[0].mxu0
    %v204 = vadd.f32 %v66, %v203
    %v205 = vpop.f32.mrb[0].mxu0
    %v206 = vpop.f32.mrb[0].mxu0
    %v207 = vadd.f32 %v66, %v206
    %v208 = vpop.f32.mrb[0].mxu0
    %209 = vmatprep.mubr.bf16.mxu0 0
    %210 = vmatmul.mubr.bf16.gmra.mrb[0].mxu0 %v134
    %v211 = vpop.f32.mrb[0].mxu0
    %v212 = vadd.f32 %v66, %v211
    %v213 = vpop.f32.mrb[0].mxu0
    %v214 = vpop.f32.mrb[0].mxu0
    %v215 = vadd.f32 %v66, %v214
    %v216 = vpop.f32.mrb[0].mxu0
    %217 = vmatprep.mubr.bf16.mxu0 0
    %218 = vmatmul.mubr.bf16.gmra.mrb[0].mxu0 %v137
    %v219 = vpop.f32.mrb[0].mxu0
    %v220 = vadd.f32 %v66, %v219
    %v221 = vpop.f32.mrb[0].mxu0
    %v222 = vpop.f32.mrb[0].mxu0
    %v223 = vadd.f32 %v66, %v222
    %v224 = vpop.f32.mrb[0].mxu0
    %225 = vmatprep.mubr.bf16.mxu0 0
    %226 = vmatmul.mubr.bf16.gmra.mrb[0].mxu0 %v140
    %v227 = vpop.f32.mrb[0].mxu0
    %v228 = vadd.f32 %v66, %v227
    %v229 = vpop.f32.mrb[0].mxu0
    %v230 = vpop.f32.mrb[0].mxu0
    %v231 = vadd.f32 %v66, %v230
    %v232 = vpop.f32.mrb[0].mxu0
    %233 = vmatprep.mubr.bf16.mxu0 0
    %234 = vmatmul.mubr.bf16.gmra.mrb[0].mxu0 %v143
    %v235 = vpop.f32.mrb[0].mxu0
    %v236 = vadd.f32 %v66, %v235
    %v237 = vpop.f32.mrb[0].mxu0
    %v238 = vpop.f32.mrb[0].mxu0
    %v239 = vadd.f32 %v66, %v238
    %v240 = vpop.f32.mrb[0].mxu0
    %241 = vdwg.mxu0
    %242 = vst [vmem:[#allocation2] sm:$0xff] %v180
    %243 = vst [vmem:[#allocation2 + $0x8] sm:$0xff] %v183
    %244 = vst [vmem:[#allocation2 + $0x10] sm:$0xff] %v188
    %245 = vst [vmem:[#allocation2 + $0x18] sm:$0xff] %v191
    %246 = vst [vmem:[#allocation2 + $0x20] sm:$0xff] %v196
    %247 = vst [vmem:[#allocation2 + $0x28] sm:$0xff] %v199
    %248 = vst [vmem:[#allocation2 + $0x30] sm:$0xff] %v204
    %249 = vst [vmem:[#allocation2 + $0x38] sm:$0xff] %v207
    %250 = vst [vmem:[#allocation2 + $0x40] sm:$0xff] %v212
    %251 = vst [vmem:[#allocation2 + $0x48] sm:$0xff] %v215
    %252 = vst [vmem:[#allocation2 + $0x50] sm:$0xff] %v220
    %253 = vst [vmem:[#allocation2 + $0x58] sm:$0xff] %v223
    %254 = vst [vmem:[#allocation2 + $0x60] sm:$0xff] %v228
    %255 = vst [vmem:[#allocation2 + $0x68] sm:$0xff] %v231
    %256 = vst [vmem:[#allocation2 + $0x70] sm:$0xff] %v236
    %257 = vst [vmem:[#allocation2 + $0x78] sm:$0xff] %v239
    %v258 = vld [vmem:[%s3] sm:$0xff]
    %v259 = vld [vmem:[%s3 + $0x8] sm:$0xff]
    %v260 = vld [vmem:[%s3 + $0x10] sm:$0xff]
    %v261 = vld [vmem:[%s3 + $0x18] sm:$0xff]
    %v263 = vsel %vm120, 0.0, 0
    %265 = vmatprep.subr.mxu0 0.0
    %266 = vmatpush1.msra.mxu0 %v258
    %267 = vmatprep.subr.mxu0 0.0
    %268 = vmatpush1.msra.mxu0 %v259
    %269 = vmatprep.subr.mxu0 0.0
    %270 = vmatpush1.msra.mxu0 %v260
    %271 = vmatprep.subr.mxu0 0.0
    %272 = vmatpush1.msra.mxu0 %v261
    %273 = vmatprep.subr.mxu0 0.0
    %274 = vmatpush1.msra.mxu0 0.0
    %275 = vmatprep.subr.mxu0 0.0
    %276 = vmatpush1.msra.mxu0 0.0
    %277 = vmatprep.subr.mxu0 0.0
    %278 = vmatpush1.msra.mxu0 0.0
    %279 = vmatprep.subr.mxu0 0.0
    %280 = vmatpush1.msra.mxu0 0.0
    %281 = vmatprep.subr.mxu0 0.0
    %282 = vmatpush1.msra.mxu0 0.0
    %283 = vmatprep.subr.mxu0 0.0
    %284 = vmatpush1.msra.mxu0 0.0
    %285 = vmatprep.subr.mxu0 0.0
    %286 = vmatpush1.msra.mxu0 0.0
    %287 = vmatprep.subr.mxu0 0.0
    %288 = vmatpush1.msra.mxu0 0.0
    %289 = vmatprep.subr.mxu0 0.0
    %290 = vmatpush1.msra.mxu0 0.0
    %291 = vmatprep.subr.mxu0 0.0
    %292 = vmatpush1.msra.mxu0 0.0
    %293 = vmatprep.subr.mxu0 0.0
    %294 = vmatpush1.msra.mxu0 0.0
    %295 = vmatprep.subr.mxu0 0.0
    %296 = vmatpush1.msra.mxu0 0.0
    %297 = vmatprep.subr.mxu0 0.0
    %298 = vmatpush1.msra.mxu0 0.0
    %299 = vmatprep.subr.mxu0 0.0
    %300 = vmatpush1.msra.mxu0 0.0
    %301 = vmatprep.subr.mxu0 0.0
    %302 = vmatpush1.msra.mxu0 0.0
    %303 = vmatprep.subr.mxu0 0.0
    %304 = vmatpush1.msra.mxu0 0.0
    %305 = vmatprep.subr.mxu0 0.0
    %306 = vmatpush1.msra.mxu0 0.0
    %307 = vmatprep.subr.mxu0 0.0
    %308 = vmatpush1.msra.mxu0 0.0
    %309 = vmatprep.subr.mxu0 0.0
    %310 = vmatpush1.msra.mxu0 0.0
    %311 = vmatprep.subr.mxu0 0.0
    %312 = vmatpush1.msra.mxu0 0.0
    %313 = vmatprep.subr.mxu0 0.0
    %314 = vmatpush1.msra.mxu0 0.0
    %315 = vmatprep.subr.mxu0 0.0
    %316 = vmatpush1.msra.mxu0 0.0
    %317 = vmatprep.subr.mxu0 0.0
    %318 = vmatpush1.msra.mxu0 0.0
    %319 = vmatprep.subr.mxu0 0.0
    %320 = vmatpush1.msra.mxu0 0.0
    %321 = vmatprep.subr.mxu0 0.0
    %322 = vmatpush1.msra.mxu0 0.0
    %323 = vmatprep.subr.mxu0 0.0
    %324 = vmatpush1.msra.mxu0 0.0
    %325 = vmatprep.subr.mxu0 0.0
    %326 = vmatpush1.msra.mxu0 0.0
    %327 = vmatprep.subr.mxu0 0.0
    %328 = vmatpush1.msra.mxu0 0.0
    %329 = vmatprep.mubr.f32.mxu0 0.0
    %330 = vmatmul.mubr.f32.gmra.mrb[0].mxu0 %v263
    %v331 = vpop.f32.mrb[0].mxu0
    %v332 = vadd.f32 0.0, %v331
    %v333 = vpop.f32.mrb[0].mxu0
    %334 = vmatprep.mubr.f32.mxu0 0.0
    %335 = vmatmul.mubr.f32.gmra.mrb[0].mxu0 %v263
    %v336 = vpop.f32.mrb[0].mxu0
    %v337 = vadd.f32 0.0, %v336
    %v338 = vpop.f32.mrb[0].mxu0
    %339 = vdwg.mxu0
    %v340 = vld [vmem:[#allocation2] sm:$0xff]
    %v341 = vld [vmem:[#allocation2 + $0x8] sm:$0xff]
    %v342 = vadd.f32 %v340, %v332
    %v343 = vadd.f32 %v341, %v337
    %s344 = scalar_lea.vmem [#allocation2], 112
    %v345 = vld [vmem:[%s344] sm:$0xff]
    %v346 = vld [vmem:[%s344 + $0x8] sm:$0xff]
    %v347 = vadd.f32 %v345, %v332
    %v348 = vadd.f32 %v346, %v337
    %v349 = vxor.u32 %v342, 2147483648
    %v350 = vxor.u32 %v343, 2147483648
    %v351 = vmul.f32 %v349, 1.442695
    %v352 = vpow.pop %v351
    %v353 = vmul.f32 %v350, 1.442695
    %v354 = vpow.pop %v353
    %v355 = vadd.f32 %v352, 1.0
    %v356 = vadd.f32 %v354, 1.0
    %v357 = vrcp.pop %v355
    %v358 = vmul.f32 1.0, %v357
    %v359 = vrcp.pop %v356
    %v360 = vmul.f32 1.0, %v359
    %v361 = vtanh.pop %v342
    %v362 = vtanh.pop %v343
    %v363 = vmul.f32 %v358, 0.0
    %v364 = vmul.f32 %v360, 0.0
    %367 = vrot.lane.b32.xlu0 %v361, 80
    %v368 = vpop.permute.xlu0 %367
    %369 = vrot.lane.b32.xlu0 %v362, 80
    %v370 = vpop.permute.xlu0 %369
    %v373 = vmul.f32 %v358, %v368
    %v374 = vmul.f32 %v360, %v370
    %377 = vrot.lane.b32.xlu0 %v373, 16
    %v378 = vpop.permute.xlu0 %377
    %379 = vrot.lane.b32.xlu0 %v374, 16
    %v380 = vpop.permute.xlu0 %379
    %v383 = vadd.f32 %v363, %v378
    %v384 = vadd.f32 %v364, %v380
    %v385 = vtanh.pop %v383
    %v386 = vtanh.pop %v384
    %389 = vrot.lane.b32.xlu0 %v385, 16
    %v390 = vpop.permute.xlu0 %389
    %391 = vrot.lane.b32.xlu0 %v386, 16
    %v392 = vpop.permute.xlu0 %391
    %v395 = vmul.f32 %v358, %v390
    %v396 = vmul.f32 %v360, %v392
    %v397 = vxor.u32 %v347, 2147483648
    %v398 = vxor.u32 %v348, 2147483648
    %v399 = vmul.f32 %v397, 1.442695
    %v400 = vpow.pop %v399
    %v401 = vmul.f32 %v398, 1.442695
    %v402 = vpow.pop %v401
    %v403 = vadd.f32 %v400, 1.0
    %v404 = vadd.f32 %v402, 1.0
    %v405 = vrcp.pop %v403
    %v406 = vmul.f32 1.0, %v405
    %v407 = vrcp.pop %v404
    %v408 = vmul.f32 1.0, %v407
    %v409 = vtanh.pop %v347
    %v410 = vtanh.pop %v348
    %v411 = vmul.f32 %v406, 0.0
    %v412 = vmul.f32 %v408, 0.0
    %415 = vrot.lane.b32.xlu0 %v409, 80
    %v416 = vpop.permute.xlu0 %415
    %417 = vrot.lane.b32.xlu0 %v410, 80
    %v418 = vpop.permute.xlu0 %417
    %v421 = vmul.f32 %v406, %v416
    %v422 = vmul.f32 %v408, %v418
    %425 = vrot.lane.b32.xlu0 %v421, 16
    %v426 = vpop.permute.xlu0 %425
    %427 = vrot.lane.b32.xlu0 %v422, 16
    %v428 = vpop.permute.xlu0 %427
    %v431 = vadd.f32 %v411, %v426
    %v432 = vadd.f32 %v412, %v428
    %v433 = vtanh.pop %v431
    %v434 = vtanh.pop %v432
    %437 = vrot.lane.b32.xlu0 %v433, 16
    %v438 = vpop.permute.xlu0 %437
    %439 = vrot.lane.b32.xlu0 %v434, 16
    %v440 = vpop.permute.xlu0 %439
    %v443 = vmul.f32 %v406, %v438
    %v444 = vmul.f32 %v408, %v440
    %447 = vrot.lane.b32.xlu0 %v395, 96
    %v448 = vpop.permute.xlu0 %447
    %449 = vrot.lane.b32.xlu0 %v396, 96
    %v450 = vpop.permute.xlu0 %449
    %vm453 = vcmask 130048
    %454 = vst.msk [vmem:[#allocation3] sm:$0xff] %vm453, %v448
    %455 = vst.msk [vmem:[#allocation3 + $0x8] sm:$0xff] %vm453, %v450
    %458 = vrot.lane.b32.xlu0 %v443, 32
    %v459 = vpop.permute.xlu0 %458
    %460 = vrot.lane.b32.xlu0 %v444, 32
    %v461 = vpop.permute.xlu0 %460
    %s464 = scalar_lea.vmem [#allocation4], 112
    %465 = vst.msk [vmem:[%s464] sm:$0xff] %vm453, %v459
    %466 = vst.msk [vmem:[%s464 + $0x8] sm:$0xff] %vm453, %v461
    %467 = vrot.lane.b32.xlu0 %v443, 48
    %v468 = vpop.permute.xlu0 %467
    %469 = vrot.lane.b32.xlu0 %v444, 48
    %v470 = vpop.permute.xlu0 %469
    %v473 = vsel %vm453, %v448, %v468
    %v474 = vsel %vm453, %v450, %v470
    %v476 = vsel %vm120, %v473, 0
    %v479 = vsel %vm120, %v474, 0
    %481 = vmatprep.subr.mxu0 0.0
    %482 = vmatpush1.msra.mxu0 %v258
    %483 = vmatprep.subr.mxu0 0.0
    %484 = vmatpush1.msra.mxu0 %v259
    %485 = vmatprep.subr.mxu0 0.0
    %486 = vmatpush1.msra.mxu0 %v260
    %487 = vmatprep.subr.mxu0 0.0
    %488 = vmatpush1.msra.mxu0 %v261
    %489 = vmatprep.subr.mxu0 0.0
    %490 = vmatpush1.msra.mxu0 0.0
    %491 = vmatprep.subr.mxu0 0.0
    %492 = vmatpush1.msra.mxu0 0.0
    %493 = vmatprep.subr.mxu0 0.0
    %494 = vmatpush1.msra.mxu0 0.0
    %495 = vmatprep.subr.mxu0 0.0
    %496 = vmatpush1.msra.mxu0 0.0
    %497 = vmatprep.subr.mxu0 0.0
    %498 = vmatpush1.msra.mxu0 0.0
    %499 = vmatprep.subr.mxu0 0.0
    %500 = vmatpush1.msra.mxu0 0.0
    %501 = vmatprep.subr.mxu0 0.0
    %502 = vmatpush1.msra.mxu0 0.0
    %503 = vmatprep.subr.mxu0 0.0
    %504 = vmatpush1.msra.mxu0 0.0
    %505 = vmatprep.subr.mxu0 0.0
    %506 = vmatpush1.msra.mxu0 0.0
    %507 = vmatprep.subr.mxu0 0.0
    %508 = vmatpush1.msra.mxu0 0.0
    %509 = vmatprep.subr.mxu0 0.0
    %510 = vmatpush1.msra.mxu0 0.0
    %511 = vmatprep.subr.mxu0 0.0
    %512 = vmatpush1.msra.mxu0 0.0
    %513 = vmatprep.subr.mxu0 0.0
    %514 = vmatpush1.msra.mxu0 0.0
    %515 = vmatprep.subr.mxu0 0.0
    %516 = vmatpush1.msra.mxu0 0.0
    %517 = vmatprep.subr.mxu0 0.0
    %518 = vmatpush1.msra.mxu0 0.0
    %519 = vmatprep.subr.mxu0 0.0
    %520 = vmatpush1.msra.mxu0 0.0
    %521 = vmatprep.subr.mxu0 0.0
    %522 = vmatpush1.msra.mxu0 0.0
    %523 = vmatprep.subr.mxu0 0.0
    %524 = vmatpush1.msra.mxu0 0.0
    %525 = vmatprep.subr.mxu0 0.0
    %526 = vmatpush1.msra.mxu0 0.0
    %527 = vmatprep.subr.mxu0 0.0
    %528 = vmatpush1.msra.mxu0 0.0
    %529 = vmatprep.subr.mxu0 0.0
    %530 = vmatpush1.msra.mxu0 0.0
    %531 = vmatprep.subr.mxu0 0.0
    %532 = vmatpush1.msra.mxu0 0.0
    %533 = vmatprep.subr.mxu0 0.0
    %534 = vmatpush1.msra.mxu0 0.0
    %535 = vmatprep.subr.mxu0 0.0
    %536 = vmatpush1.msra.mxu0 0.0
    %537 = vmatprep.subr.mxu0 0.0
    %538 = vmatpush1.msra.mxu0 0.0
    %539 = vmatprep.subr.mxu0 0.0
    %540 = vmatpush1.msra.mxu0 0.0
    %541 = vmatprep.subr.mxu0 0.0
    %542 = vmatpush1.msra.mxu0 0.0
    %543 = vmatprep.subr.mxu0 0.0
    %544 = vmatpush1.msra.mxu0 0.0
    %545 = vmatprep.mubr.f32.mxu0 0.0
    %546 = vmatmul.mubr.f32.gmra.mrb[0].mxu0 %v476
    %v547 = vpop.f32.mrb[0].mxu0
    %v548 = vadd.f32 0.0, %v547
    %v549 = vpop.f32.mrb[0].mxu0
    %550 = vmatprep.mubr.f32.mxu0 0.0
    %551 = vmatmul.mubr.f32.gmra.mrb[0].mxu0 %v479
    %v552 = vpop.f32.mrb[0].mxu0
    %v553 = vadd.f32 0.0, %v552
    %v554 = vpop.f32.mrb[0].mxu0
    %555 = vdwg.mxu0
    %s556 = scalar_lea.vmem [#allocation2], 16
    %v557 = vld [vmem:[%s556] sm:$0xff]
    %v558 = vld [vmem:[%s556 + $0x8] sm:$0xff]
    %v559 = vadd.f32 %v557, %v548
    %v560 = vadd.f32 %v558, %v553
    %s561 = scalar_lea.vmem [#allocation2], 96
    %v562 = vld [vmem:[%s561] sm:$0xff]
    %v563 = vld [vmem:[%s561 + $0x8] sm:$0xff]
    %v564 = vadd.f32 %v562, %v548
    %v565 = vadd.f32 %v563, %v553
    %v566 = vxor.u32 %v559, 2147483648
    %v567 = vxor.u32 %v560, 2147483648
    %v568 = vmul.f32 %v566, 1.442695
    %v569 = vpow.pop %v568
    %v570 = vmul.f32 %v567, 1.442695
    %v571 = vpow.pop %v570
    %v572 = vadd.f32 %v569, 1.0
    %v573 = vadd.f32 %v571, 1.0
    %v574 = vrcp.pop %v572
    %v575 = vmul.f32 1.0, %v574
    %v576 = vrcp.pop %v573
    %v577 = vmul.f32 1.0, %v576
    %v578 = vtanh.pop %v559
    %v579 = vtanh.pop %v560
    %v580 = vmul.f32 %v575, %v383
    %v581 = vmul.f32 %v577, %v384
    %584 = vrot.lane.b32.xlu0 %v578, 80
    %v585 = vpop.permute.xlu0 %584
    %586 = vrot.lane.b32.xlu0 %v579, 80
    %v587 = vpop.permute.xlu0 %586
    %v590 = vmul.f32 %v575, %v585
    %v591 = vmul.f32 %v577, %v587
    %594 = vrot.lane.b32.xlu0 %v590, 16
    %v595 = vpop.permute.xlu0 %594
    %596 = vrot.lane.b32.xlu0 %v591, 16
    %v597 = vpop.permute.xlu0 %596
    %v600 = vadd.f32 %v580, %v595
    %v601 = vadd.f32 %v581, %v597
    %v602 = vtanh.pop %v600
    %v603 = vtanh.pop %v601
    %606 = vrot.lane.b32.xlu0 %v602, 16
    %v607 = vpop.permute.xlu0 %606
    %608 = vrot.lane.b32.xlu0 %v603, 16
    %v609 = vpop.permute.xlu0 %608
    %v612 = vmul.f32 %v575, %v607
    %v613 = vmul.f32 %v577, %v609
    %v614 = vxor.u32 %v564, 2147483648
    %v615 = vxor.u32 %v565, 2147483648
    %v616 = vmul.f32 %v614, 1.442695
    %v617 = vpow.pop %v616
    %v618 = vmul.f32 %v615, 1.442695
    %v619 = vpow.pop %v618
    %v620 = vadd.f32 %v617, 1.0
    %v621 = vadd.f32 %v619, 1.0
    %v622 = vrcp.pop %v620
    %v623 = vmul.f32 1.0, %v622
    %v624 = vrcp.pop %v621
    %v625 = vmul.f32 1.0, %v624
    %v626 = vtanh.pop %v564
    %v627 = vtanh.pop %v565
    %v628 = vmul.f32 %v623, %v431
    %v629 = vmul.f32 %v625, %v432
    %632 = vrot.lane.b32.xlu0 %v626, 80
    %v633 = vpop.permute.xlu0 %632
    %634 = vrot.lane.b32.xlu0 %v627, 80
    %v635 = vpop.permute.xlu0 %634
    %v638 = vmul.f32 %v623, %v633
    %v639 = vmul.f32 %v625, %v635
    %642 = vrot.lane.b32.xlu0 %v638, 16
    %v643 = vpop.permute.xlu0 %642
    %644 = vrot.lane.b32.xlu0 %v639, 16
    %v645 = vpop.permute.xlu0 %644
    %v648 = vadd.f32 %v628, %v643
    %v649 = vadd.f32 %v629, %v645
    %v650 = vtanh.pop %v648
    %v651 = vtanh.pop %v649
    %654 = vrot.lane.b32.xlu0 %v650, 16
    %v655 = vpop.permute.xlu0 %654
    %656 = vrot.lane.b32.xlu0 %v651, 16
    %v657 = vpop.permute.xlu0 %656
    %v660 = vmul.f32 %v623, %v655
    %v661 = vmul.f32 %v625, %v657
    %664 = vrot.lane.b32.xlu0 %v612, 96
    %v665 = vpop.permute.xlu0 %664
    %666 = vrot.lane.b32.xlu0 %v613, 96
    %v667 = vpop.permute.xlu0 %666
    %s670 = scalar_lea.vmem [#allocation3], 16
    %671 = vst.msk [vmem:[%s670] sm:$0xff] %vm453, %v665
    %672 = vst.msk [vmem:[%s670 + $0x8] sm:$0xff] %vm453, %v667
    %675 = vrot.lane.b32.xlu0 %v660, 32
    %v676 = vpop.permute.xlu0 %675
    %677 = vrot.lane.b32.xlu0 %v661, 32
    %v678 = vpop.permute.xlu0 %677
    %s681 = scalar_lea.vmem [#allocation4], 96
    %682 = vst.msk [vmem:[%s681] sm:$0xff] %vm453, %v676
    %683 = vst.msk [vmem:[%s681 + $0x8] sm:$0xff] %vm453, %v678
    %684 = vrot.lane.b32.xlu0 %v660, 48
    %v685 = vpop.permute.xlu0 %684
    %686 = vrot.lane.b32.xlu0 %v661, 48
    %v687 = vpop.permute.xlu0 %686
    %v690 = vsel %vm453, %v665, %v685
    %v691 = vsel %vm453, %v667, %v687
    %v693 = vsel %vm120, %v690, 0
    %v696 = vsel %vm120, %v691, 0
    %698 = vmatprep.subr.mxu0 0.0
    %699 = vmatpush1.msra.mxu0 %v258
    %700 = vmatprep.subr.mxu0 0.0
    %701 = vmatpush1.msra.mxu0 %v259
    %702 = vmatprep.subr.mxu0 0.0
    %703 = vmatpush1.msra.mxu0 %v260
    %704 = vmatprep.subr.mxu0 0.0
    %705 = vmatpush1.msra.mxu0 %v261
    %706 = vmatprep.subr.mxu0 0.0
    %707 = vmatpush1.msra.mxu0 0.0
    %708 = vmatprep.subr.mxu0 0.0
    %709 = vmatpush1.msra.mxu0 0.0
    %710 = vmatprep.subr.mxu0 0.0
    %711 = vmatpush1.msra.mxu0 0.0
    %712 = vmatprep.subr.mxu0 0.0
    %713 = vmatpush1.msra.mxu0 0.0
    %714 = vmatprep.subr.mxu0 0.0
    %715 = vmatpush1.msra.mxu0 0.0
    %716 = vmatprep.subr.mxu0 0.0
    %717 = vmatpush1.msra.mxu0 0.0
    %718 = vmatprep.subr.mxu0 0.0
    %719 = vmatpush1.msra.mxu0 0.0
    %720 = vmatprep.subr.mxu0 0.0
    %721 = vmatpush1.msra.mxu0 0.0
    %722 = vmatprep.subr.mxu0 0.0
    %723 = vmatpush1.msra.mxu0 0.0
    %724 = vmatprep.subr.mxu0 0.0
    %725 = vmatpush1.msra.mxu0 0.0
    %726 = vmatprep.subr.mxu0 0.0
    %727 = vmatpush1.msra.mxu0 0.0
    %728 = vmatprep.subr.mxu0 0.0
    %729 = vmatpush1.msra.mxu0 0.0
    %730 = vmatprep.subr.mxu0 0.0
    %731 = vmatpush1.msra.mxu0 0.0
    %732 = vmatprep.subr.mxu0 0.0
    %733 = vmatpush1.msra.mxu0 0.0
    %734 = vmatprep.subr.mxu0 0.0
    %735 = vmatpush1.msra.mxu0 0.0
    %736 = vmatprep.subr.mxu0 0.0
    %737 = vmatpush1.msra.mxu0 0.0
    %738 = vmatprep.subr.mxu0 0.0
    %739 = vmatpush1.msra.mxu0 0.0
    %740 = vmatprep.subr.mxu0 0.0
    %741 = vmatpush1.msra.mxu0 0.0
    %742 = vmatprep.subr.mxu0 0.0
    %743 = vmatpush1.msra.mxu0 0.0
    %744 = vmatprep.subr.mxu0 0.0
    %745 = vmatpush1.msra.mxu0 0.0
    %746 = vmatprep.subr.mxu0 0.0
    %747 = vmatpush1.msra.mxu0 0.0
    %748 = vmatprep.subr.mxu0 0.0
    %749 = vmatpush1.msra.mxu0 0.0
    %750 = vmatprep.subr.mxu0 0.0
    %751 = vmatpush1.msra.mxu0 0.0
    %752 = vmatprep.subr.mxu0 0.0
    %753 = vmatpush1.msra.mxu0 0.0
    %754 = vmatprep.subr.mxu0 0.0
    %755 = vmatpush1.msra.mxu0 0.0
    %756 = vmatprep.subr.mxu0 0.0
    %757 = vmatpush1.msra.mxu0 0.0
    %758 = vmatprep.subr.mxu0 0.0
    %759 = vmatpush1.msra.mxu0 0.0
    %760 = vmatprep.subr.mxu0 0.0
    %761 = vmatpush1.msra.mxu0 0.0
    %762 = vmatprep.mubr.f32.mxu0 0.0
    %763 = vmatmul.mubr.f32.gmra.mrb[0].mxu0 %v693
    %v764 = vpop.f32.mrb[0].mxu0
    %v765 = vadd.f32 0.0, %v764
    %v766 = vpop.f32.mrb[0].mxu0
    %767 = vmatprep.mubr.f32.mxu0 0.0
    %768 = vmatmul.mubr.f32.gmra.mrb[0].mxu0 %v696
    %v769 = vpop.f32.mrb[0].mxu0
    %v770 = vadd.f32 0.0, %v769
    %v771 = vpop.f32.mrb[0].mxu0
    %772 = vdwg.mxu0
    %s773 = scalar_lea.vmem [#allocation2], 32
    %v774 = vld [vmem:[%s773] sm:$0xff]
    %v775 = vld [vmem:[%s773 + $0x8] sm:$0xff]
    %v776 = vadd.f32 %v774, %v765
    %v777 = vadd.f32 %v775, %v770
    %s778 = scalar_lea.vmem [#allocation2], 80
    %v779 = vld [vmem:[%s778] sm:$0xff]
    %v780 = vld [vmem:[%s778 + $0x8] sm:$0xff]
    %v781 = vadd.f32 %v779, %v765
    %v782 = vadd.f32 %v780, %v770
    %v783 = vxor.u32 %v776, 2147483648
    %v784 = vxor.u32 %v777, 2147483648
    %v785 = vmul.f32 %v783, 1.442695
    %v786 = vpow.pop %v785
    %v787 = vmul.f32 %v784, 1.442695
    %v788 = vpow.pop %v787
    %v789 = vadd.f32 %v786, 1.0
    %v790 = vadd.f32 %v788, 1.0
    %v791 = vrcp.pop %v789
    %v792 = vmul.f32 1.0, %v791
    %v793 = vrcp.pop %v790
    %v794 = vmul.f32 1.0, %v793
    %v795 = vtanh.pop %v776
    %v796 = vtanh.pop %v777
    %v797 = vmul.f32 %v792, %v600
    %v798 = vmul.f32 %v794, %v601
    %801 = vrot.lane.b32.xlu0 %v795, 80
    %v802 = vpop.permute.xlu0 %801
    %803 = vrot.lane.b32.xlu0 %v796, 80
    %v804 = vpop.permute.xlu0 %803
    %v807 = vmul.f32 %v792, %v802
    %v808 = vmul.f32 %v794, %v804
    %811 = vrot.lane.b32.xlu0 %v807, 16
    %v812 = vpop.permute.xlu0 %811
    %813 = vrot.lane.b32.xlu0 %v808, 16
    %v814 = vpop.permute.xlu0 %813
    %v817 = vadd.f32 %v797, %v812
    %v818 = vadd.f32 %v798, %v814
    %v819 = vtanh.pop %v817
    %v820 = vtanh.pop %v818
    %823 = vrot.lane.b32.xlu0 %v819, 16
    %v824 = vpop.permute.xlu0 %823
    %825 = vrot.lane.b32.xlu0 %v820, 16
    %v826 = vpop.permute.xlu0 %825
    %v829 = vmul.f32 %v792, %v824
    %v830 = vmul.f32 %v794, %v826
    %v831 = vxor.u32 %v781, 2147483648
    %v832 = vxor.u32 %v782, 2147483648
    %v833 = vmul.f32 %v831, 1.442695
    %v834 = vpow.pop %v833
    %v835 = vmul.f32 %v832, 1.442695
    %v836 = vpow.pop %v835
    %v837 = vadd.f32 %v834, 1.0
    %v838 = vadd.f32 %v836, 1.0
    %v839 = vrcp.pop %v837
    %v840 = vmul.f32 1.0, %v839
    %v841 = vrcp.pop %v838
    %v842 = vmul.f32 1.0, %v841
    %v843 = vtanh.pop %v781
    %v844 = vtanh.pop %v782
    %v845 = vmul.f32 %v840, %v648
    %v846 = vmul.f32 %v842, %v649
    %849 = vrot.lane.b32.xlu0 %v843, 80
    %v850 = vpop.permute.xlu0 %849
    %851 = vrot.lane.b32.xlu0 %v844, 80
    %v852 = vpop.permute.xlu0 %851
    %v855 = vmul.f32 %v840, %v850
    %v856 = vmul.f32 %v842, %v852
    %859 = vrot.lane.b32.xlu0 %v855, 16
    %v860 = vpop.permute.xlu0 %859
    %861 = vrot.lane.b32.xlu0 %v856, 16
    %v862 = vpop.permute.xlu0 %861
    %v865 = vadd.f32 %v845, %v860
    %v866 = vadd.f32 %v846, %v862
    %v867 = vtanh.pop %v865
    %v868 = vtanh.pop %v866
    %871 = vrot.lane.b32.xlu0 %v867, 16
    %v872 = vpop.permute.xlu0 %871
    %873 = vrot.lane.b32.xlu0 %v868, 16
    %v874 = vpop.permute.xlu0 %873
    %v877 = vmul.f32 %v840, %v872
    %v878 = vmul.f32 %v842, %v874
    %881 = vrot.lane.b32.xlu0 %v829, 96
    %v882 = vpop.permute.xlu0 %881
    %883 = vrot.lane.b32.xlu0 %v830, 96
    %v884 = vpop.permute.xlu0 %883
    %s887 = scalar_lea.vmem [#allocation3], 32
    %888 = vst.msk [vmem:[%s887] sm:$0xff] %vm453, %v882
    %889 = vst.msk [vmem:[%s887 + $0x8] sm:$0xff] %vm453, %v884
    %892 = vrot.lane.b32.xlu0 %v877, 32
    %v893 = vpop.permute.xlu0 %892
    %894 = vrot.lane.b32.xlu0 %v878, 32
    %v895 = vpop.permute.xlu0 %894
    %s898 = scalar_lea.vmem [#allocation4], 80
    %899 = vst.msk [vmem:[%s898] sm:$0xff] %vm453, %v893
    %900 = vst.msk [vmem:[%s898 + $0x8] sm:$0xff] %vm453, %v895
    %901 = vrot.lane.b32.xlu0 %v877, 48
    %v902 = vpop.permute.xlu0 %901
    %903 = vrot.lane.b32.xlu0 %v878, 48
    %v904 = vpop.permute.xlu0 %903
    %v907 = vsel %vm453, %v882, %v902
    %v908 = vsel %vm453, %v884, %v904
    %v910 = vsel %vm120, %v907, 0
    %v913 = vsel %vm120, %v908, 0
    %915 = vmatprep.subr.mxu0 0.0
    %916 = vmatpush1.msra.mxu0 %v258
    %917 = vmatprep.subr.mxu0 0.0
    %918 = vmatpush1.msra.mxu0 %v259
    %919 = vmatprep.subr.mxu0 0.0
    %920 = vmatpush1.msra.mxu0 %v260
    %921 = vmatprep.subr.mxu0 0.0
    %922 = vmatpush1.msra.mxu0 %v261
    %923 = vmatprep.subr.mxu0 0.0
    %924 = vmatpush1.msra.mxu0 0.0
    %925 = vmatprep.subr.mxu0 0.0
    %926 = vmatpush1.msra.mxu0 0.0
    %927 = vmatprep.subr.mxu0 0.0
    %928 = vmatpush1.msra.mxu0 0.0
    %929 = vmatprep.subr.mxu0 0.0
    %930 = vmatpush1.msra.mxu0 0.0
    %931 = vmatprep.subr.mxu0 0.0
    %932 = vmatpush1.msra.mxu0 0.0
    %933 = vmatprep.subr.mxu0 0.0
    %934 = vmatpush1.msra.mxu0 0.0
    %935 = vmatprep.subr.mxu0 0.0
    %936 = vmatpush1.msra.mxu0 0.0
    %937 = vmatprep.subr.mxu0 0.0
    %938 = vmatpush1.msra.mxu0 0.0
    %939 = vmatprep.subr.mxu0 0.0
    %940 = vmatpush1.msra.mxu0 0.0
    %941 = vmatprep.subr.mxu0 0.0
    %942 = vmatpush1.msra.mxu0 0.0
    %943 = vmatprep.subr.mxu0 0.0
    %944 = vmatpush1.msra.mxu0 0.0
    %945 = vmatprep.subr.mxu0 0.0
    %946 = vmatpush1.msra.mxu0 0.0
    %947 = vmatprep.subr.mxu0 0.0
    %948 = vmatpush1.msra.mxu0 0.0
    %949 = vmatprep.subr.mxu0 0.0
    %950 = vmatpush1.msra.mxu0 0.0
    %951 = vmatprep.subr.mxu0 0.0
    %952 = vmatpush1.msra.mxu0 0.0
    %953 = vmatprep.subr.mxu0 0.0
    %954 = vmatpush1.msra.mxu0 0.0
    %955 = vmatprep.subr.mxu0 0.0
    %956 = vmatpush1.msra.mxu0 0.0
    %957 = vmatprep.subr.mxu0 0.0
    %958 = vmatpush1.msra.mxu0 0.0
    %959 = vmatprep.subr.mxu0 0.0
    %960 = vmatpush1.msra.mxu0 0.0
    %961 = vmatprep.subr.mxu0 0.0
    %962 = vmatpush1.msra.mxu0 0.0
    %963 = vmatprep.subr.mxu0 0.0
    %964 = vmatpush1.msra.mxu0 0.0
    %965 = vmatprep.subr.mxu0 0.0
    %966 = vmatpush1.msra.mxu0 0.0
    %967 = vmatprep.subr.mxu0 0.0
    %968 = vmatpush1.msra.mxu0 0.0
    %969 = vmatprep.subr.mxu0 0.0
    %970 = vmatpush1.msra.mxu0 0.0
    %971 = vmatprep.subr.mxu0 0.0
    %972 = vmatpush1.msra.mxu0 0.0
    %973 = vmatprep.subr.mxu0 0.0
    %974 = vmatpush1.msra.mxu0 0.0
    %975 = vmatprep.subr.mxu0 0.0
    %976 = vmatpush1.msra.mxu0 0.0
    %977 = vmatprep.subr.mxu0 0.0
    %978 = vmatpush1.msra.mxu0 0.0
    %979 = vmatprep.mubr.f32.mxu0 0.0
    %980 = vmatmul.mubr.f32.gmra.mrb[0].mxu0 %v910
    %v981 = vpop.f32.mrb[0].mxu0
    %v982 = vadd.f32 0.0, %v981
    %v983 = vpop.f32.mrb[0].mxu0
    %984 = vmatprep.mubr.f32.mxu0 0.0
    %985 = vmatmul.mubr.f32.gmra.mrb[0].mxu0 %v913
    %v986 = vpop.f32.mrb[0].mxu0
    %v987 = vadd.f32 0.0, %v986
    %v988 = vpop.f32.mrb[0].mxu0
    %989 = vdwg.mxu0
    %s990 = scalar_lea.vmem [#allocation2], 48
    %v991 = vld [vmem:[%s990] sm:$0xff]
    %v992 = vld [vmem:[%s990 + $0x8] sm:$0xff]
    %v993 = vadd.f32 %v991, %v982
    %v994 = vadd.f32 %v992, %v987
    %s995 = scalar_lea.vmem [#allocation2], 64
    %v996 = vld [vmem:[%s995] sm:$0xff]
    %v997 = vld [vmem:[%s995 + $0x8] sm:$0xff]
    %v998 = vadd.f32 %v996, %v982
    %v999 = vadd.f32 %v997, %v987
    %v1000 = vxor.u32 %v993, 2147483648
    %v1001 = vxor.u32 %v994, 2147483648
    %v1002 = vmul.f32 %v1000, 1.442695
    %v1003 = vpow.pop %v1002
    %v1004 = vmul.f32 %v1001, 1.442695
    %v1005 = vpow.pop %v1004
    %v1006 = vadd.f32 %v1003, 1.0
    %v1007 = vadd.f32 %v1005, 1.0
    %v1008 = vrcp.pop %v1006
    %v1009 = vmul.f32 1.0, %v1008
    %v1010 = vrcp.pop %v1007
    %v1011 = vmul.f32 1.0, %v1010
    %v1012 = vtanh.pop %v993
    %v1013 = vtanh.pop %v994
    %v1014 = vmul.f32 %v1009, %v817
    %v1015 = vmul.f32 %v1011, %v818
    %1018 = vrot.lane.b32.xlu0 %v1012, 80
    %v1019 = vpop.permute.xlu0 %1018
    %1020 = vrot.lane.b32.xlu0 %v1013, 80
    %v1021 = vpop.permute.xlu0 %1020
    %v1024 = vmul.f32 %v1009, %v1019
    %v1025 = vmul.f32 %v1011, %v1021
    %1028 = vrot.lane.b32.xlu0 %v1024, 16
    %v1029 = vpop.permute.xlu0 %1028
    %1030 = vrot.lane.b32.xlu0 %v1025, 16
    %v1031 = vpop.permute.xlu0 %1030
    %v1034 = vadd.f32 %v1014, %v1029
    %v1035 = vadd.f32 %v1015, %v1031
    %v1036 = vtanh.pop %v1034
    %v1037 = vtanh.pop %v1035
    %1040 = vrot.lane.b32.xlu0 %v1036, 16
    %v1041 = vpop.permute.xlu0 %1040
    %1042 = vrot.lane.b32.xlu0 %v1037, 16
    %v1043 = vpop.permute.xlu0 %1042
    %v1046 = vmul.f32 %v1009, %v1041
    %v1047 = vmul.f32 %v1011, %v1043
    %v1048 = vxor.u32 %v998, 2147483648
    %v1049 = vxor.u32 %v999, 2147483648
    %v1050 = vmul.f32 %v1048, 1.442695
    %v1051 = vpow.pop %v1050
    %v1052 = vmul.f32 %v1049, 1.442695
    %v1053 = vpow.pop %v1052
    %v1054 = vadd.f32 %v1051, 1.0
    %v1055 = vadd.f32 %v1053, 1.0
    %v1056 = vrcp.pop %v1054
    %v1057 = vmul.f32 1.0, %v1056
    %v1058 = vrcp.pop %v1055
    %v1059 = vmul.f32 1.0, %v1058
    %v1060 = vtanh.pop %v998
    %v1061 = vtanh.pop %v999
    %v1062 = vmul.f32 %v1057, %v865
    %v1063 = vmul.f32 %v1059, %v866
    %1066 = vrot.lane.b32.xlu0 %v1060, 80
    %v1067 = vpop.permute.xlu0 %1066
    %1068 = vrot.lane.b32.xlu0 %v1061, 80
    %v1069 = vpop.permute.xlu0 %1068
    %v1072 = vmul.f32 %v1057, %v1067
    %v1073 = vmul.f32 %v1059, %v1069
    %1076 = vrot.lane.b32.xlu0 %v1072, 16
    %v1077 = vpop.permute.xlu0 %1076
    %1078 = vrot.lane.b32.xlu0 %v1073, 16
    %v1079 = vpop.permute.xlu0 %1078
    %v1082 = vadd.f32 %v1062, %v1077
    %v1083 = vadd.f32 %v1063, %v1079
    %v1084 = vtanh.pop %v1082
    %v1085 = vtanh.pop %v1083
    %1088 = vrot.lane.b32.xlu0 %v1084, 16
    %v1089 = vpop.permute.xlu0 %1088
    %1090 = vrot.lane.b32.xlu0 %v1085, 16
    %v1091 = vpop.permute.xlu0 %1090
    %v1094 = vmul.f32 %v1057, %v1089
    %v1095 = vmul.f32 %v1059, %v1091
    %1098 = vrot.lane.b32.xlu0 %v1046, 96
    %v1099 = vpop.permute.xlu0 %1098
    %1100 = vrot.lane.b32.xlu0 %v1047, 96
    %v1101 = vpop.permute.xlu0 %1100
    %s1104 = scalar_lea.vmem [#allocation3], 48
    %1105 = vst.msk [vmem:[%s1104] sm:$0xff] %vm453, %v1099
    %1106 = vst.msk [vmem:[%s1104 + $0x8] sm:$0xff] %vm453, %v1101
    %1109 = vrot.lane.b32.xlu0 %v1094, 32
    %v1110 = vpop.permute.xlu0 %1109
    %1111 = vrot.lane.b32.xlu0 %v1095, 32
    %v1112 = vpop.permute.xlu0 %1111
    %s1115 = scalar_lea.vmem [#allocation4], 64
    %1116 = vst.msk [vmem:[%s1115] sm:$0xff] %vm453, %v1110
    %1117 = vst.msk [vmem:[%s1115 + $0x8] sm:$0xff] %vm453, %v1112
    %1118 = vrot.lane.b32.xlu0 %v1094, 48
    %v1119 = vpop.permute.xlu0 %1118
    %1120 = vrot.lane.b32.xlu0 %v1095, 48
    %v1121 = vpop.permute.xlu0 %1120
    %v1124 = vsel %vm453, %v1099, %v1119
    %v1125 = vsel %vm453, %v1101, %v1121
    %v1127 = vsel %vm120, %v1124, 0
    %v1130 = vsel %vm120, %v1125, 0
    %1132 = vmatprep.subr.mxu0 0.0
    %1133 = vmatpush1.msra.mxu0 %v258
    %1134 = vmatprep.subr.mxu0 0.0
    %1135 = vmatpush1.msra.mxu0 %v259
    %1136 = vmatprep.subr.mxu0 0.0
    %1137 = vmatpush1.msra.mxu0 %v260
    %1138 = vmatprep.subr.mxu0 0.0
    %1139 = vmatpush1.msra.mxu0 %v261
    %1140 = vmatprep.subr.mxu0 0.0
    %1141 = vmatpush1.msra.mxu0 0.0
    %1142 = vmatprep.subr.mxu0 0.0
    %1143 = vmatpush1.msra.mxu0 0.0
    %1144 = vmatprep.subr.mxu0 0.0
    %1145 = vmatpush1.msra.mxu0 0.0
    %1146 = vmatprep.subr.mxu0 0.0
    %1147 = vmatpush1.msra.mxu0 0.0
    %1148 = vmatprep.subr.mxu0 0.0
    %1149 = vmatpush1.msra.mxu0 0.0
    %1150 = vmatprep.subr.mxu0 0.0
    %1151 = vmatpush1.msra.mxu0 0.0
    %1152 = vmatprep.subr.mxu0 0.0
    %1153 = vmatpush1.msra.mxu0 0.0
    %1154 = vmatprep.subr.mxu0 0.0
    %1155 = vmatpush1.msra.mxu0 0.0
    %1156 = vmatprep.subr.mxu0 0.0
    %1157 = vmatpush1.msra.mxu0 0.0
    %1158 = vmatprep.subr.mxu0 0.0
    %1159 = vmatpush1.msra.mxu0 0.0
    %1160 = vmatprep.subr.mxu0 0.0
    %1161 = vmatpush1.msra.mxu0 0.0
    %1162 = vmatprep.subr.mxu0 0.0
    %1163 = vmatpush1.msra.mxu0 0.0
    %1164 = vmatprep.subr.mxu0 0.0
    %1165 = vmatpush1.msra.mxu0 0.0
    %1166 = vmatprep.subr.mxu0 0.0
    %1167 = vmatpush1.msra.mxu0 0.0
    %1168 = vmatprep.subr.mxu0 0.0
    %1169 = vmatpush1.msra.mxu0 0.0
    %1170 = vmatprep.subr.mxu0 0.0
    %1171 = vmatpush1.msra.mxu0 0.0
    %1172 = vmatprep.subr.mxu0 0.0
    %1173 = vmatpush1.msra.mxu0 0.0
    %1174 = vmatprep.subr.mxu0 0.0
    %1175 = vmatpush1.msra.mxu0 0.0
    %1176 = vmatprep.subr.mxu0 0.0
    %1177 = vmatpush1.msra.mxu0 0.0
    %1178 = vmatprep.subr.mxu0 0.0
    %1179 = vmatpush1.msra.mxu0 0.0
    %1180 = vmatprep.subr.mxu0 0.0
    %1181 = vmatpush1.msra.mxu0 0.0
    %1182 = vmatprep.subr.mxu0 0.0
    %1183 = vmatpush1.msra.mxu0 0.0
    %1184 = vmatprep.subr.mxu0 0.0
    %1185 = vmatpush1.msra.mxu0 0.0
    %1186 = vmatprep.subr.mxu0 0.0
    %1187 = vmatpush1.msra.mxu0 0.0
    %1188 = vmatprep.subr.mxu0 0.0
    %1189 = vmatpush1.msra.mxu0 0.0
    %1190 = vmatprep.subr.mxu0 0.0
    %1191 = vmatpush1.msra.mxu0 0.0
    %1192 = vmatprep.subr.mxu0 0.0
    %1193 = vmatpush1.msra.mxu0 0.0
    %1194 = vmatprep.subr.mxu0 0.0
    %1195 = vmatpush1.msra.mxu0 0.0
    %1196 = vmatprep.mubr.f32.mxu0 0.0
    %1197 = vmatmul.mubr.f32.gmra.mrb[0].mxu0 %v1127
    %v1198 = vpop.f32.mrb[0].mxu0
    %v1199 = vadd.f32 0.0, %v1198
    %v1200 = vpop.f32.mrb[0].mxu0
    %1201 = vmatprep.mubr.f32.mxu0 0.0
    %1202 = vmatmul.mubr.f32.gmra.mrb[0].mxu0 %v1130
    %v1203 = vpop.f32.mrb[0].mxu0
    %v1204 = vadd.f32 0.0, %v1203
    %v1205 = vpop.f32.mrb[0].mxu0
    %1206 = vdwg.mxu0
    %v1207 = vld [vmem:[%s995] sm:$0xff]
    %v1208 = vld [vmem:[%s995 + $0x8] sm:$0xff]
    %v1209 = vadd.f32 %v1207, %v1199
    %v1210 = vadd.f32 %v1208, %v1204
    %v1211 = vld [vmem:[%s990] sm:$0xff]
    %v1212 = vld [vmem:[%s990 + $0x8] sm:$0xff]
    %v1213 = vadd.f32 %v1211, %v1199
    %v1214 = vadd.f32 %v1212, %v1204
    %v1215 = vxor.u32 %v1209, 2147483648
    %v1216 = vxor.u32 %v1210, 2147483648
    %v1217 = vmul.f32 %v1215, 1.442695
    %v1218 = vpow.pop %v1217
    %v1219 = vmul.f32 %v1216, 1.442695
    %v1220 = vpow.pop %v1219
    %v1221 = vadd.f32 %v1218, 1.0
    %v1222 = vadd.f32 %v1220, 1.0
    %v1223 = vrcp.pop %v1221
    %v1224 = vmul.f32 1.0, %v1223
    %v1225 = vrcp.pop %v1222
    %v1226 = vmul.f32 1.0, %v1225
    %v1227 = vtanh.pop %v1209
    %v1228 = vtanh.pop %v1210
    %v1229 = vmul.f32 %v1224, %v1034
    %v1230 = vmul.f32 %v1226, %v1035
    %1233 = vrot.lane.b32.xlu0 %v1227, 80
    %v1234 = vpop.permute.xlu0 %1233
    %1235 = vrot.lane.b32.xlu0 %v1228, 80
    %v1236 = vpop.permute.xlu0 %1235
    %v1239 = vmul.f32 %v1224, %v1234
    %v1240 = vmul.f32 %v1226, %v1236
    %1243 = vrot.lane.b32.xlu0 %v1239, 16
    %v1244 = vpop.permute.xlu0 %1243
    %1245 = vrot.lane.b32.xlu0 %v1240, 16
    %v1246 = vpop.permute.xlu0 %1245
    %v1249 = vadd.f32 %v1229, %v1244
    %v1250 = vadd.f32 %v1230, %v1246
    %v1251 = vtanh.pop %v1249
    %v1252 = vtanh.pop %v1250
    %1255 = vrot.lane.b32.xlu0 %v1251, 16
    %v1256 = vpop.permute.xlu0 %1255
    %1257 = vrot.lane.b32.xlu0 %v1252, 16
    %v1258 = vpop.permute.xlu0 %1257
    %v1261 = vmul.f32 %v1224, %v1256
    %v1262 = vmul.f32 %v1226, %v1258
    %v1263 = vxor.u32 %v1213, 2147483648
    %v1264 = vxor.u32 %v1214, 2147483648
    %v1265 = vmul.f32 %v1263, 1.442695
    %v1266 = vpow.pop %v1265
    %v1267 = vmul.f32 %v1264, 1.442695
    %v1268 = vpow.pop %v1267
    %v1269 = vadd.f32 %v1266, 1.0
    %v1270 = vadd.f32 %v1268, 1.0
    %v1271 = vrcp.pop %v1269
    %v1272 = vmul.f32 1.0, %v1271
    %v1273 = vrcp.pop %v1270
    %v1274 = vmul.f32 1.0, %v1273
    %v1275 = vtanh.pop %v1213
    %v1276 = vtanh.pop %v1214
    %v1277 = vmul.f32 %v1272, %v1082
    %v1278 = vmul.f32 %v1274, %v1083
    %1281 = vrot.lane.b32.xlu0 %v1275, 80
    %v1282 = vpop.permute.xlu0 %1281
    %1283 = vrot.lane.b32.xlu0 %v1276, 80
    %v1284 = vpop.permute.xlu0 %1283
    %v1287 = vmul.f32 %v1272, %v1282
    %v1288 = vmul.f32 %v1274, %v1284
    %1291 = vrot.lane.b32.xlu0 %v1287, 16
    %v1292 = vpop.permute.xlu0 %1291
    %1293 = vrot.lane.b32.xlu0 %v1288, 16
    %v1294 = vpop.permute.xlu0 %1293
    %v1297 = vadd.f32 %v1277, %v1292
    %v1298 = vadd.f32 %v1278, %v1294
    %v1299 = vtanh.pop %v1297
    %v1300 = vtanh.pop %v1298
    %1303 = vrot.lane.b32.xlu0 %v1299, 16
    %v1304 = vpop.permute.xlu0 %1303
    %1305 = vrot.lane.b32.xlu0 %v1300, 16
    %v1306 = vpop.permute.xlu0 %1305
    %v1309 = vmul.f32 %v1272, %v1304
    %v1310 = vmul.f32 %v1274, %v1306
    %1313 = vrot.lane.b32.xlu0 %v1261, 96
    %v1314 = vpop.permute.xlu0 %1313
    %1315 = vrot.lane.b32.xlu0 %v1262, 96
    %v1316 = vpop.permute.xlu0 %1315
    %s1319 = scalar_lea.vmem [#allocation3], 64
    %1320 = vst.msk [vmem:[%s1319] sm:$0xff] %vm453, %v1314
    %1321 = vst.msk [vmem:[%s1319 + $0x8] sm:$0xff] %vm453, %v1316
    %1324 = vrot.lane.b32.xlu0 %v1309, 32
    %v1325 = vpop.permute.xlu0 %1324
    %1326 = vrot.lane.b32.xlu0 %v1310, 32
    %v1327 = vpop.permute.xlu0 %1326
    %s1330 = scalar_lea.vmem [#allocation4], 48
    %1331 = vst.msk [vmem:[%s1330] sm:$0xff] %vm453, %v1325
    %1332 = vst.msk [vmem:[%s1330 + $0x8] sm:$0xff] %vm453, %v1327
    %1333 = vrot.lane.b32.xlu0 %v1309, 48
    %v1334 = vpop.permute.xlu0 %1333
    %1335 = vrot.lane.b32.xlu0 %v1310, 48
    %v1336 = vpop.permute.xlu0 %1335
    %v1339 = vsel %vm453, %v1314, %v1334
    %v1340 = vsel %vm453, %v1316, %v1336
    %v1342 = vsel %vm120, %v1339, 0
    %v1345 = vsel %vm120, %v1340, 0
    %1347 = vmatprep.subr.mxu0 0.0
    %1348 = vmatpush1.msra.mxu0 %v258
    %1349 = vmatprep.subr.mxu0 0.0
    %1350 = vmatpush1.msra.mxu0 %v259
    %1351 = vmatprep.subr.mxu0 0.0
    %1352 = vmatpush1.msra.mxu0 %v260
    %1353 = vmatprep.subr.mxu0 0.0
    %1354 = vmatpush1.msra.mxu0 %v261
    %1355 = vmatprep.subr.mxu0 0.0
    %1356 = vmatpush1.msra.mxu0 0.0
    %1357 = vmatprep.subr.mxu0 0.0
    %1358 = vmatpush1.msra.mxu0 0.0
    %1359 = vmatprep.subr.mxu0 0.0
    %1360 = vmatpush1.msra.mxu0 0.0
    %1361 = vmatprep.subr.mxu0 0.0
    %1362 = vmatpush1.msra.mxu0 0.0
    %1363 = vmatprep.subr.mxu0 0.0
    %1364 = vmatpush1.msra.mxu0 0.0
    %1365 = vmatprep.subr.mxu0 0.0
    %1366 = vmatpush1.msra.mxu0 0.0
    %1367 = vmatprep.subr.mxu0 0.0
    %1368 = vmatpush1.msra.mxu0 0.0
    %1369 = vmatprep.subr.mxu0 0.0
    %1370 = vmatpush1.msra.mxu0 0.0
    %1371 = vmatprep.subr.mxu0 0.0
    %1372 = vmatpush1.msra.mxu0 0.0
    %1373 = vmatprep.subr.mxu0 0.0
    %1374 = vmatpush1.msra.mxu0 0.0
    %1375 = vmatprep.subr.mxu0 0.0
    %1376 = vmatpush1.msra.mxu0 0.0
    %1377 = vmatprep.subr.mxu0 0.0
    %1378 = vmatpush1.msra.mxu0 0.0
    %1379 = vmatprep.subr.mxu0 0.0
    %1380 = vmatpush1.msra.mxu0 0.0
    %1381 = vmatprep.subr.mxu0 0.0
    %1382 = vmatpush1.msra.mxu0 0.0
    %1383 = vmatprep.subr.mxu0 0.0
    %1384 = vmatpush1.msra.mxu0 0.0
    %1385 = vmatprep.subr.mxu0 0.0
    %1386 = vmatpush1.msra.mxu0 0.0
    %1387 = vmatprep.subr.mxu0 0.0
    %1388 = vmatpush1.msra.mxu0 0.0
    %1389 = vmatprep.subr.mxu0 0.0
    %1390 = vmatpush1.msra.mxu0 0.0
    %1391 = vmatprep.subr.mxu0 0.0
    %1392 = vmatpush1.msra.mxu0 0.0
    %1393 = vmatprep.subr.mxu0 0.0
    %1394 = vmatpush1.msra.mxu0 0.0
    %1395 = vmatprep.subr.mxu0 0.0
    %1396 = vmatpush1.msra.mxu0 0.0
    %1397 = vmatprep.subr.mxu0 0.0
    %1398 = vmatpush1.msra.mxu0 0.0
    %1399 = vmatprep.subr.mxu0 0.0
    %1400 = vmatpush1.msra.mxu0 0.0
    %1401 = vmatprep.subr.mxu0 0.0
    %1402 = vmatpush1.msra.mxu0 0.0
    %1403 = vmatprep.subr.mxu0 0.0
    %1404 = vmatpush1.msra.mxu0 0.0
    %1405 = vmatprep.subr.mxu0 0.0
    %1406 = vmatpush1.msra.mxu0 0.0
    %1407 = vmatprep.subr.mxu0 0.0
    %1408 = vmatpush1.msra.mxu0 0.0
    %1409 = vmatprep.subr.mxu0 0.0
    %1410 = vmatpush1.msra.mxu0 0.0
    %1411 = vmatprep.mubr.f32.mxu0 0.0
    %1412 = vmatmul.mubr.f32.gmra.mrb[0].mxu0 %v1342
    %v1413 = vpop.f32.mrb[0].mxu0
    %v1414 = vadd.f32 0.0, %v1413
    %v1415 = vpop.f32.mrb[0].mxu0
    %1416 = vmatprep.mubr.f32.mxu0 0.0
    %1417 = vmatmul.mubr.f32.gmra.mrb[0].mxu0 %v1345
    %v1418 = vpop.f32.mrb[0].mxu0
    %v1419 = vadd.f32 0.0, %v1418
    %v1420 = vpop.f32.mrb[0].mxu0
    %1421 = vdwg.mxu0
    %v1422 = vld [vmem:[%s778] sm:$0xff]
    %v1423 = vld [vmem:[%s778 + $0x8] sm:$0xff]
    %v1424 = vadd.f32 %v1422, %v1414
    %v1425 = vadd.f32 %v1423, %v1419
    %v1426 = vld [vmem:[%s773] sm:$0xff]
    %v1427 = vld [vmem:[%s773 + $0x8] sm:$0xff]
    %v1428 = vadd.f32 %v1426, %v1414
    %v1429 = vadd.f32 %v1427, %v1419
    %v1430 = vxor.u32 %v1424, 2147483648
    %v1431 = vxor.u32 %v1425, 2147483648
    %v1432 = vmul.f32 %v1430, 1.442695
    %v1433 = vpow.pop %v1432
    %v1434 = vmul.f32 %v1431, 1.442695
    %v1435 = vpow.pop %v1434
    %v1436 = vadd.f32 %v1433, 1.0
    %v1437 = vadd.f32 %v1435, 1.0
    %v1438 = vrcp.pop %v1436
    %v1439 = vmul.f32 1.0, %v1438
    %v1440 = vrcp.pop %v1437
    %v1441 = vmul.f32 1.0, %v1440
    %v1442 = vtanh.pop %v1424
    %v1443 = vtanh.pop %v1425
    %v1444 = vmul.f32 %v1439, %v1249
    %v1445 = vmul.f32 %v1441, %v1250
    %1448 = vrot.lane.b32.xlu0 %v1442, 80
    %v1449 = vpop.permute.xlu0 %1448
    %1450 = vrot.lane.b32.xlu0 %v1443, 80
    %v1451 = vpop.permute.xlu0 %1450
    %v1454 = vmul.f32 %v1439, %v1449
    %v1455 = vmul.f32 %v1441, %v1451
    %1458 = vrot.lane.b32.xlu0 %v1454, 16
    %v1459 = vpop.permute.xlu0 %1458
    %1460 = vrot.lane.b32.xlu0 %v1455, 16
    %v1461 = vpop.permute.xlu0 %1460
    %v1464 = vadd.f32 %v1444, %v1459
    %v1465 = vadd.f32 %v1445, %v1461
    %v1466 = vtanh.pop %v1464
    %v1467 = vtanh.pop %v1465
    %1470 = vrot.lane.b32.xlu0 %v1466, 16
    %v1471 = vpop.permute.xlu0 %1470
    %1472 = vrot.lane.b32.xlu0 %v1467, 16
    %v1473 = vpop.permute.xlu0 %1472
    %v1476 = vmul.f32 %v1439, %v1471
    %v1477 = vmul.f32 %v1441, %v1473
    %v1478 = vxor.u32 %v1428, 2147483648
    %v1479 = vxor.u32 %v1429, 2147483648
    %v1480 = vmul.f32 %v1478, 1.442695
    %v1481 = vpow.pop %v1480
    %v1482 = vmul.f32 %v1479, 1.442695
    %v1483 = vpow.pop %v1482
    %v1484 = vadd.f32 %v1481, 1.0
    %v1485 = vadd.f32 %v1483, 1.0
    %v1486 = vrcp.pop %v1484
    %v1487 = vmul.f32 1.0, %v1486
    %v1488 = vrcp.pop %v1485
    %v1489 = vmul.f32 1.0, %v1488
    %v1490 = vtanh.pop %v1428
    %v1491 = vtanh.pop %v1429
    %v1492 = vmul.f32 %v1487, %v1297
    %v1493 = vmul.f32 %v1489, %v1298
    %1496 = vrot.lane.b32.xlu0 %v1490, 80
    %v1497 = vpop.permute.xlu0 %1496
    %1498 = vrot.lane.b32.xlu0 %v1491, 80
    %v1499 = vpop.permute.xlu0 %1498
    %v1502 = vmul.f32 %v1487, %v1497
    %v1503 = vmul.f32 %v1489, %v1499
    %1506 = vrot.lane.b32.xlu0 %v1502, 16
    %v1507 = vpop.permute.xlu0 %1506
    %1508 = vrot.lane.b32.xlu0 %v1503, 16
    %v1509 = vpop.permute.xlu0 %1508
    %v1512 = vadd.f32 %v1492, %v1507
    %v1513 = vadd.f32 %v1493, %v1509
    %v1514 = vtanh.pop %v1512
    %v1515 = vtanh.pop %v1513
    %1518 = vrot.lane.b32.xlu0 %v1514, 16
    %v1519 = vpop.permute.xlu0 %1518
    %1520 = vrot.lane.b32.xlu0 %v1515, 16
    %v1521 = vpop.permute.xlu0 %1520
    %v1524 = vmul.f32 %v1487, %v1519
    %v1525 = vmul.f32 %v1489, %v1521
    %1528 = vrot.lane.b32.xlu0 %v1476, 96
    %v1529 = vpop.permute.xlu0 %1528
    %1530 = vrot.lane.b32.xlu0 %v1477, 96
    %v1531 = vpop.permute.xlu0 %1530
    %s1534 = scalar_lea.vmem [#allocation3], 80
    %1535 = vst.msk [vmem:[%s1534] sm:$0xff] %vm453, %v1529
    %1536 = vst.msk [vmem:[%s1534 + $0x8] sm:$0xff] %vm453, %v1531
    %1539 = vrot.lane.b32.xlu0 %v1524, 32
    %v1540 = vpop.permute.xlu0 %1539
    %1541 = vrot.lane.b32.xlu0 %v1525, 32
    %v1542 = vpop.permute.xlu0 %1541
    %s1545 = scalar_lea.vmem [#allocation4], 32
    %1546 = vst.msk [vmem:[%s1545] sm:$0xff] %vm453, %v1540
    %1547 = vst.msk [vmem:[%s1545 + $0x8] sm:$0xff] %vm453, %v1542
    %1548 = vrot.lane.b32.xlu0 %v1524, 48
    %v1549 = vpop.permute.xlu0 %1548
    %1550 = vrot.lane.b32.xlu0 %v1525, 48
    %v1551 = vpop.permute.xlu0 %1550
    %v1554 = vsel %vm453, %v1529, %v1549
    %v1555 = vsel %vm453, %v1531, %v1551
    %v1557 = vsel %vm120, %v1554, 0
    %v1560 = vsel %vm120, %v1555, 0
    %1562 = vmatprep.subr.mxu0 0.0
    %1563 = vmatpush1.msra.mxu0 %v258
    %1564 = vmatprep.subr.mxu0 0.0
    %1565 = vmatpush1.msra.mxu0 %v259
    %1566 = vmatprep.subr.mxu0 0.0
    %1567 = vmatpush1.msra.mxu0 %v260
    %1568 = vmatprep.subr.mxu0 0.0
    %1569 = vmatpush1.msra.mxu0 %v261
    %1570 = vmatprep.subr.mxu0 0.0
    %1571 = vmatpush1.msra.mxu0 0.0
    %1572 = vmatprep.subr.mxu0 0.0
    %1573 = vmatpush1.msra.mxu0 0.0
    %1574 = vmatprep.subr.mxu0 0.0
    %1575 = vmatpush1.msra.mxu0 0.0
    %1576 = vmatprep.subr.mxu0 0.0
    %1577 = vmatpush1.msra.mxu0 0.0
    %1578 = vmatprep.subr.mxu0 0.0
    %1579 = vmatpush1.msra.mxu0 0.0
    %1580 = vmatprep.subr.mxu0 0.0
    %1581 = vmatpush1.msra.mxu0 0.0
    %1582 = vmatprep.subr.mxu0 0.0
    %1583 = vmatpush1.msra.mxu0 0.0
    %1584 = vmatprep.subr.mxu0 0.0
    %1585 = vmatpush1.msra.mxu0 0.0
    %1586 = vmatprep.subr.mxu0 0.0
    %1587 = vmatpush1.msra.mxu0 0.0
    %1588 = vmatprep.subr.mxu0 0.0
    %1589 = vmatpush1.msra.mxu0 0.0
    %1590 = vmatprep.subr.mxu0 0.0
    %1591 = vmatpush1.msra.mxu0 0.0
    %1592 = vmatprep.subr.mxu0 0.0
    %1593 = vmatpush1.msra.mxu0 0.0
    %1594 = vmatprep.subr.mxu0 0.0
    %1595 = vmatpush1.msra.mxu0 0.0
    %1596 = vmatprep.subr.mxu0 0.0
    %1597 = vmatpush1.msra.mxu0 0.0
    %1598 = vmatprep.subr.mxu0 0.0
    %1599 = vmatpush1.msra.mxu0 0.0
    %1600 = vmatprep.subr.mxu0 0.0
    %1601 = vmatpush1.msra.mxu0 0.0
    %1602 = vmatprep.subr.mxu0 0.0
    %1603 = vmatpush1.msra.mxu0 0.0
    %1604 = vmatprep.subr.mxu0 0.0
    %1605 = vmatpush1.msra.mxu0 0.0
    %1606 = vmatprep.subr.mxu0 0.0
    %1607 = vmatpush1.msra.mxu0 0.0
    %1608 = vmatprep.subr.mxu0 0.0
    %1609 = vmatpush1.msra.mxu0 0.0
    %1610 = vmatprep.subr.mxu0 0.0
    %1611 = vmatpush1.msra.mxu0 0.0
    %1612 = vmatprep.subr.mxu0 0.0
    %1613 = vmatpush1.msra.mxu0 0.0
    %1614 = vmatprep.subr.mxu0 0.0
    %1615 = vmatpush1.msra.mxu0 0.0
    %1616 = vmatprep.subr.mxu0 0.0
    %1617 = vmatpush1.msra.mxu0 0.0
    %1618 = vmatprep.subr.mxu0 0.0
    %1619 = vmatpush1.msra.mxu0 0.0
    %1620 = vmatprep.subr.mxu0 0.0
    %1621 = vmatpush1.msra.mxu0 0.0
    %1622 = vmatprep.subr.mxu0 0.0
    %1623 = vmatpush1.msra.mxu0 0.0
    %1624 = vmatprep.subr.mxu0 0.0
    %1625 = vmatpush1.msra.mxu0 0.0
    %1626 = vmatprep.mubr.f32.mxu0 0.0
    %1627 = vmatmul.mubr.f32.gmra.mrb[0].mxu0 %v1557
    %v1628 = vpop.f32.mrb[0].mxu0
    %v1629 = vadd.f32 0.0, %v1628
    %v1630 = vpop.f32.mrb[0].mxu0
    %1631 = vmatprep.mubr.f32.mxu0 0.0
    %1632 = vmatmul.mubr.f32.gmra.mrb[0].mxu0 %v1560
    %v1633 = vpop.f32.mrb[0].mxu0
    %v1634 = vadd.f32 0.0, %v1633
    %v1635 = vpop.f32.mrb[0].mxu0
    %1636 = vdwg.mxu0
    %v1637 = vld [vmem:[%s561] sm:$0xff]
    %v1638 = vld [vmem:[%s561 + $0x8] sm:$0xff]
    %v1639 = vadd.f32 %v1637, %v1629
    %v1640 = vadd.f32 %v1638, %v1634
    %v1641 = vld [vmem:[%s556] sm:$0xff]
    %v1642 = vld [vmem:[%s556 + $0x8] sm:$0xff]
    %v1643 = vadd.f32 %v1641, %v1629
    %v1644 = vadd.f32 %v1642, %v1634
    %v1645 = vxor.u32 %v1639, 2147483648
    %v1646 = vxor.u32 %v1640, 2147483648
    %v1647 = vmul.f32 %v1645, 1.442695
    %v1648 = vpow.pop %v1647
    %v1649 = vmul.f32 %v1646, 1.442695
    %v1650 = vpow.pop %v1649
    %v1651 = vadd.f32 %v1648, 1.0
    %v1652 = vadd.f32 %v1650, 1.0
    %v1653 = vrcp.pop %v1651
    %v1654 = vmul.f32 1.0, %v1653
    %v1655 = vrcp.pop %v1652
    %v1656 = vmul.f32 1.0, %v1655
    %v1657 = vtanh.pop %v1639
    %v1658 = vtanh.pop %v1640
    %v1659 = vmul.f32 %v1654, %v1464
    %v1660 = vmul.f32 %v1656, %v1465
    %1663 = vrot.lane.b32.xlu0 %v1657, 80
    %v1664 = vpop.permute.xlu0 %1663
    %1665 = vrot.lane.b32.xlu0 %v1658, 80
    %v1666 = vpop.permute.xlu0 %1665
    %v1669 = vmul.f32 %v1654, %v1664
    %v1670 = vmul.f32 %v1656, %v1666
    %1673 = vrot.lane.b32.xlu0 %v1669, 16
    %v1674 = vpop.permute.xlu0 %1673
    %1675 = vrot.lane.b32.xlu0 %v1670, 16
    %v1676 = vpop.permute.xlu0 %1675
    %v1679 = vadd.f32 %v1659, %v1674
    %v1680 = vadd.f32 %v1660, %v1676
    %v1681 = vtanh.pop %v1679
    %v1682 = vtanh.pop %v1680
    %1685 = vrot.lane.b32.xlu0 %v1681, 16
    %v1686 = vpop.permute.xlu0 %1685
    %1687 = vrot.lane.b32.xlu0 %v1682, 16
    %v1688 = vpop.permute.xlu0 %1687
    %v1691 = vmul.f32 %v1654, %v1686
    %v1692 = vmul.f32 %v1656, %v1688
    %v1693 = vxor.u32 %v1643, 2147483648
    %v1694 = vxor.u32 %v1644, 2147483648
    %v1695 = vmul.f32 %v1693, 1.442695
    %v1696 = vpow.pop %v1695
    %v1697 = vmul.f32 %v1694, 1.442695
    %v1698 = vpow.pop %v1697
    %v1699 = vadd.f32 %v1696, 1.0
    %v1700 = vadd.f32 %v1698, 1.0
    %v1701 = vrcp.pop %v1699
    %v1702 = vmul.f32 1.0, %v1701
    %v1703 = vrcp.pop %v1700
    %v1704 = vmul.f32 1.0, %v1703
    %v1705 = vtanh.pop %v1643
    %v1706 = vtanh.pop %v1644
    %v1707 = vmul.f32 %v1702, %v1512
    %v1708 = vmul.f32 %v1704, %v1513
    %1711 = vrot.lane.b32.xlu0 %v1705, 80
    %v1712 = vpop.permute.xlu0 %1711
    %1713 = vrot.lane.b32.xlu0 %v1706, 80
    %v1714 = vpop.permute.xlu0 %1713
    %v1717 = vmul.f32 %v1702, %v1712
    %v1718 = vmul.f32 %v1704, %v1714
    %1721 = vrot.lane.b32.xlu0 %v1717, 16
    %v1722 = vpop.permute.xlu0 %1721
    %1723 = vrot.lane.b32.xlu0 %v1718, 16
    %v1724 = vpop.permute.xlu0 %1723
    %v1727 = vadd.f32 %v1707, %v1722
    %v1728 = vadd.f32 %v1708, %v1724
    %v1729 = vtanh.pop %v1727
    %v1730 = vtanh.pop %v1728
    %1733 = vrot.lane.b32.xlu0 %v1729, 16
    %v1734 = vpop.permute.xlu0 %1733
    %1735 = vrot.lane.b32.xlu0 %v1730, 16
    %v1736 = vpop.permute.xlu0 %1735
    %v1739 = vmul.f32 %v1702, %v1734
    %v1740 = vmul.f32 %v1704, %v1736
    %1743 = vrot.lane.b32.xlu0 %v1691, 96
    %v1744 = vpop.permute.xlu0 %1743
    %1745 = vrot.lane.b32.xlu0 %v1692, 96
    %v1746 = vpop.permute.xlu0 %1745
    %s1749 = scalar_lea.vmem [#allocation3], 96
    %1750 = vst.msk [vmem:[%s1749] sm:$0xff] %vm453, %v1744
    %1751 = vst.msk [vmem:[%s1749 + $0x8] sm:$0xff] %vm453, %v1746
    %1754 = vrot.lane.b32.xlu0 %v1739, 32
    %v1755 = vpop.permute.xlu0 %1754
    %1756 = vrot.lane.b32.xlu0 %v1740, 32
    %v1757 = vpop.permute.xlu0 %1756
    %s1760 = scalar_lea.vmem [#allocation4], 16
    %1761 = vst.msk [vmem:[%s1760] sm:$0xff] %vm453, %v1755
    %1762 = vst.msk [vmem:[%s1760 + $0x8] sm:$0xff] %vm453, %v1757
    %1763 = vrot.lane.b32.xlu0 %v1739, 48
    %v1764 = vpop.permute.xlu0 %1763
    %1765 = vrot.lane.b32.xlu0 %v1740, 48
    %v1766 = vpop.permute.xlu0 %1765
    %v1769 = vsel %vm453, %v1744, %v1764
    %v1770 = vsel %vm453, %v1746, %v1766
    %v1772 = vsel %vm120, %v1769, 0
    %v1775 = vsel %vm120, %v1770, 0
    %1777 = vmatprep.subr.mxu0 0.0
    %1778 = vmatpush1.msra.mxu0 %v258
    %1779 = vmatprep.subr.mxu0 0.0
    %1780 = vmatpush1.msra.mxu0 %v259
    %1781 = vmatprep.subr.mxu0 0.0
    %1782 = vmatpush1.msra.mxu0 %v260
    %1783 = vmatprep.subr.mxu0 0.0
    %1784 = vmatpush1.msra.mxu0 %v261
    %1785 = vmatprep.subr.mxu0 0.0
    %1786 = vmatpush1.msra.mxu0 0.0
    %1787 = vmatprep.subr.mxu0 0.0
    %1788 = vmatpush1.msra.mxu0 0.0
    %1789 = vmatprep.subr.mxu0 0.0
    %1790 = vmatpush1.msra.mxu0 0.0
    %1791 = vmatprep.subr.mxu0 0.0
    %1792 = vmatpush1.msra.mxu0 0.0
    %1793 = vmatprep.subr.mxu0 0.0
    %1794 = vmatpush1.msra.mxu0 0.0
    %1795 = vmatprep.subr.mxu0 0.0
    %1796 = vmatpush1.msra.mxu0 0.0
    %1797 = vmatprep.subr.mxu0 0.0
    %1798 = vmatpush1.msra.mxu0 0.0
    %1799 = vmatprep.subr.mxu0 0.0
    %1800 = vmatpush1.msra.mxu0 0.0
    %1801 = vmatprep.subr.mxu0 0.0
    %1802 = vmatpush1.msra.mxu0 0.0
    %1803 = vmatprep.subr.mxu0 0.0
    %1804 = vmatpush1.msra.mxu0 0.0
    %1805 = vmatprep.subr.mxu0 0.0
    %1806 = vmatpush1.msra.mxu0 0.0
    %1807 = vmatprep.subr.mxu0 0.0
    %1808 = vmatpush1.msra.mxu0 0.0
    %1809 = vmatprep.subr.mxu0 0.0
    %1810 = vmatpush1.msra.mxu0 0.0
    %1811 = vmatprep.subr.mxu0 0.0
    %1812 = vmatpush1.msra.mxu0 0.0
    %1813 = vmatprep.subr.mxu0 0.0
    %1814 = vmatpush1.msra.mxu0 0.0
    %1815 = vmatprep.subr.mxu0 0.0
    %1816 = vmatpush1.msra.mxu0 0.0
    %1817 = vmatprep.subr.mxu0 0.0
    %1818 = vmatpush1.msra.mxu0 0.0
    %1819 = vmatprep.subr.mxu0 0.0
    %1820 = vmatpush1.msra.mxu0 0.0
    %1821 = vmatprep.subr.mxu0 0.0
    %1822 = vmatpush1.msra.mxu0 0.0
    %1823 = vmatprep.subr.mxu0 0.0
    %1824 = vmatpush1.msra.mxu0 0.0
    %1825 = vmatprep.subr.mxu0 0.0
    %1826 = vmatpush1.msra.mxu0 0.0
    %1827 = vmatprep.subr.mxu0 0.0
    %1828 = vmatpush1.msra.mxu0 0.0
    %1829 = vmatprep.subr.mxu0 0.0
    %1830 = vmatpush1.msra.mxu0 0.0
    %1831 = vmatprep.subr.mxu0 0.0
    %1832 = vmatpush1.msra.mxu0 0.0
    %1833 = vmatprep.subr.mxu0 0.0
    %1834 = vmatpush1.msra.mxu0 0.0
    %1835 = vmatprep.subr.mxu0 0.0
    %1836 = vmatpush1.msra.mxu0 0.0
    %1837 = vmatprep.subr.mxu0 0.0
    %1838 = vmatpush1.msra.mxu0 0.0
    %1839 = vmatprep.subr.mxu0 0.0
    %1840 = vmatpush1.msra.mxu0 0.0
    %1841 = vmatprep.mubr.f32.mxu0 0.0
    %1842 = vmatmul.mubr.f32.gmra.mrb[0].mxu0 %v1772
    %v1843 = vpop.f32.mrb[0].mxu0
    %v1844 = vadd.f32 0.0, %v1843
    %v1845 = vpop.f32.mrb[0].mxu0
    %1846 = vmatprep.mubr.f32.mxu0 0.0
    %1847 = vmatmul.mubr.f32.gmra.mrb[0].mxu0 %v1775
    %v1848 = vpop.f32.mrb[0].mxu0
    %v1849 = vadd.f32 0.0, %v1848
    %v1850 = vpop.f32.mrb[0].mxu0
    %1851 = vdwg.mxu0
    %v1852 = vld [vmem:[%s344] sm:$0xff]
    %v1853 = vld [vmem:[%s344 + $0x8] sm:$0xff]
    %v1854 = vadd.f32 %v1852, %v1844
    %v1855 = vadd.f32 %v1853, %v1849
    %v1856 = vld [vmem:[#allocation2] sm:$0xff]
    %v1857 = vld [vmem:[#allocation2 + $0x8] sm:$0xff]
    %v1858 = vadd.f32 %v1856, %v1844
    %v1859 = vadd.f32 %v1857, %v1849
    %v1860 = vxor.u32 %v1854, 2147483648
    %v1861 = vxor.u32 %v1855, 2147483648
    %v1862 = vmul.f32 %v1860, 1.442695
    %v1863 = vpow.pop %v1862
    %v1864 = vmul.f32 %v1861, 1.442695
    %v1865 = vpow.pop %v1864
    %v1866 = vadd.f32 %v1863, 1.0
    %v1867 = vadd.f32 %v1865, 1.0
    %v1868 = vrcp.pop %v1866
    %v1869 = vmul.f32 1.0, %v1868
    %v1870 = vrcp.pop %v1867
    %v1871 = vmul.f32 1.0, %v1870
    %v1872 = vtanh.pop %v1854
    %v1873 = vtanh.pop %v1855
    %v1874 = vmul.f32 %v1869, %v1679
    %v1875 = vmul.f32 %v1871, %v1680
    %1878 = vrot.lane.b32.xlu0 %v1872, 80
    %v1879 = vpop.permute.xlu0 %1878
    %1880 = vrot.lane.b32.xlu0 %v1873, 80
    %v1881 = vpop.permute.xlu0 %1880
    %v1884 = vmul.f32 %v1869, %v1879
    %v1885 = vmul.f32 %v1871, %v1881
    %1888 = vrot.lane.b32.xlu0 %v1884, 16
    %v1889 = vpop.permute.xlu0 %1888
    %1890 = vrot.lane.b32.xlu0 %v1885, 16
    %v1891 = vpop.permute.xlu0 %1890
    %v1894 = vadd.f32 %v1874, %v1889
    %v1895 = vadd.f32 %v1875, %v1891
    %v1896 = vtanh.pop %v1894
    %v1897 = vtanh.pop %v1895
    %1900 = vrot.lane.b32.xlu0 %v1896, 16
    %v1901 = vpop.permute.xlu0 %1900
    %1902 = vrot.lane.b32.xlu0 %v1897, 16
    %v1903 = vpop.permute.xlu0 %1902
    %v1906 = vmul.f32 %v1869, %v1901
    %v1907 = vmul.f32 %v1871, %v1903
    %v1908 = vxor.u32 %v1858, 2147483648
    %v1909 = vxor.u32 %v1859, 2147483648
    %v1910 = vmul.f32 %v1908, 1.442695
    %v1911 = vpow.pop %v1910
    %v1912 = vmul.f32 %v1909, 1.442695
    %v1913 = vpow.pop %v1912
    %v1914 = vadd.f32 %v1911, 1.0
    %v1915 = vadd.f32 %v1913, 1.0
    %v1916 = vrcp.pop %v1914
    %v1917 = vmul.f32 1.0, %v1916
    %v1918 = vrcp.pop %v1915
    %v1919 = vmul.f32 1.0, %v1918
    %v1920 = vtanh.pop %v1858
    %v1921 = vtanh.pop %v1859
    %v1922 = vmul.f32 %v1917, %v1727
    %v1923 = vmul.f32 %v1919, %v1728
    %1926 = vrot.lane.b32.xlu0 %v1920, 80
    %v1927 = vpop.permute.xlu0 %1926
    %1928 = vrot.lane.b32.xlu0 %v1921, 80
    %v1929 = vpop.permute.xlu0 %1928
    %v1932 = vmul.f32 %v1917, %v1927
    %v1933 = vmul.f32 %v1919, %v1929
    %1936 = vrot.lane.b32.xlu0 %v1932, 16
    %v1937 = vpop.permute.xlu0 %1936
    %1938 = vrot.lane.b32.xlu0 %v1933, 16
    %v1939 = vpop.permute.xlu0 %1938
    %v1942 = vadd.f32 %v1922, %v1937
    %v1943 = vadd.f32 %v1923, %v1939
    %v1944 = vtanh.pop %v1942
    %v1945 = vtanh.pop %v1943
    %1948 = vrot.lane.b32.xlu0 %v1944, 16
    %v1949 = vpop.permute.xlu0 %1948
    %1950 = vrot.lane.b32.xlu0 %v1945, 16
    %v1951 = vpop.permute.xlu0 %1950
    %v1954 = vmul.f32 %v1917, %v1949
    %v1955 = vmul.f32 %v1919, %v1951
    %1958 = vrot.lane.b32.xlu0 %v1906, 96
    %v1959 = vpop.permute.xlu0 %1958
    %1960 = vrot.lane.b32.xlu0 %v1907, 96
    %v1961 = vpop.permute.xlu0 %1960
    %s1964 = scalar_lea.vmem [#allocation3], 112
    %1965 = vst.msk [vmem:[%s1964] sm:$0xff] %vm453, %v1959
    %1966 = vst.msk [vmem:[%s1964 + $0x8] sm:$0xff] %vm453, %v1961
    %1969 = vrot.lane.b32.xlu0 %v1954, 32
    %v1970 = vpop.permute.xlu0 %1969
    %1971 = vrot.lane.b32.xlu0 %v1955, 32
    %v1972 = vpop.permute.xlu0 %1971
    %1975 = vst.msk [vmem:[#allocation4] sm:$0xff] %vm453, %v1970
    %1976 = vst.msk [vmem:[#allocation4 + $0x8] sm:$0xff] %vm453, %v1972
    %v1977 = vld [vmem:[#allocation3] sm:$0xff]
    %v1978 = vld [vmem:[#allocation3 + $0x8] sm:$0xff]
    %v1979 = vld [vmem:[#allocation3 + $0x10] sm:$0xff]
    %v1980 = vld [vmem:[#allocation3 + $0x18] sm:$0xff]
    %v1981 = vld [vmem:[#allocation3 + $0x20] sm:$0xff]
    %v1982 = vld [vmem:[#allocation3 + $0x28] sm:$0xff]
    %v1983 = vld [vmem:[#allocation3 + $0x30] sm:$0xff]
    %v1984 = vld [vmem:[#allocation3 + $0x38] sm:$0xff]
    %v1985 = vld [vmem:[#allocation3 + $0x40] sm:$0xff]
    %v1986 = vld [vmem:[#allocation3 + $0x48] sm:$0xff]
    %v1987 = vld [vmem:[#allocation3 + $0x50] sm:$0xff]
    %v1988 = vld [vmem:[#allocation3 + $0x58] sm:$0xff]
    %v1989 = vld [vmem:[#allocation3 + $0x60] sm:$0xff]
    %v1990 = vld [vmem:[#allocation3 + $0x68] sm:$0xff]
    %v1991 = vld [vmem:[#allocation3 + $0x70] sm:$0xff]
    %v1992 = vld [vmem:[#allocation3 + $0x78] sm:$0xff]
    %v1993 = vld [vmem:[#allocation4] sm:$0xff]
    %v1994 = vld [vmem:[#allocation4 + $0x8] sm:$0xff]
    %v1995 = vld [vmem:[#allocation4 + $0x10] sm:$0xff]
    %v1996 = vld [vmem:[#allocation4 + $0x18] sm:$0xff]
    %v1997 = vld [vmem:[#allocation4 + $0x20] sm:$0xff]
    %v1998 = vld [vmem:[#allocation4 + $0x28] sm:$0xff]
    %v1999 = vld [vmem:[#allocation4 + $0x30] sm:$0xff]
    %v2000 = vld [vmem:[#allocation4 + $0x38] sm:$0xff]
    %v2001 = vld [vmem:[#allocation4 + $0x40] sm:$0xff]
    %v2002 = vld [vmem:[#allocation4 + $0x48] sm:$0xff]
    %v2003 = vld [vmem:[#allocation4 + $0x50] sm:$0xff]
    %v2004 = vld [vmem:[#allocation4 + $0x58] sm:$0xff]
    %v2005 = vld [vmem:[#allocation4 + $0x60] sm:$0xff]
    %v2006 = vld [vmem:[#allocation4 + $0x68] sm:$0xff]
    %v2007 = vld [vmem:[#allocation4 + $0x70] sm:$0xff]
    %v2008 = vld [vmem:[#allocation4 + $0x78] sm:$0xff]
    %v2009 = vld [vmem:[%s4] sm:$0xff]
    %v2010 = vld [vmem:[%s4 + $0x8] sm:$0xff]
    %v2011 = vld [vmem:[%s5] sm:$0xff]
    %v2012 = vld [vmem:[%s5 + $0x8] sm:$0xff]
    %v2014 = vsel %vm453, %v1993, 0
    %v2017 = vsel %vm453, %v1994, 0
    %v2020 = vsel %vm453, %v1995, 0
    %v2023 = vsel %vm453, %v1996, 0
    %v2026 = vsel %vm453, %v1997, 0
    %v2029 = vsel %vm453, %v1998, 0
    %v2032 = vsel %vm453, %v1999, 0
    %v2035 = vsel %vm453, %v2000, 0
    %v2038 = vsel %vm453, %v2001, 0
    %v2041 = vsel %vm453, %v2002, 0
    %v2044 = vsel %vm453, %v2003, 0
    %v2047 = vsel %vm453, %v2004, 0
    %v2050 = vsel %vm453, %v2005, 0
    %v2053 = vsel %vm453, %v2006, 0
    %v2056 = vsel %vm453, %v2007, 0
    %v2059 = vsel %vm453, %v2008, 0
    %2061 = vmatprep.subr.mxu0 0.0
    %2062 = vmatpush1.msra.mxu0 %v2011
    %2063 = vmatprep.subr.mxu0 0.0
    %2064 = vmatpush1.msra.mxu0 %v2012
    %2065 = vmatprep.subr.mxu0 0.0
    %2066 = vmatpush1.msra.mxu0 0.0
    %2067 = vmatprep.subr.mxu0 0.0
    %2068 = vmatpush1.msra.mxu0 0.0
    %2069 = vmatprep.subr.mxu0 0.0
    %2070 = vmatpush1.msra.mxu0 0.0
    %2071 = vmatprep.subr.mxu0 0.0
    %2072 = vmatpush1.msra.mxu0 0.0
    %2073 = vmatprep.subr.mxu0 0.0
    %2074 = vmatpush1.msra.mxu0 0.0
    %2075 = vmatprep.subr.mxu0 0.0
    %2076 = vmatpush1.msra.mxu0 0.0
    %2077 = vmatprep.subr.mxu0 0.0
    %2078 = vmatpush1.msra.mxu0 0.0
    %2079 = vmatprep.subr.mxu0 0.0
    %2080 = vmatpush1.msra.mxu0 0.0
    %2081 = vmatprep.subr.mxu0 0.0
    %2082 = vmatpush1.msra.mxu0 0.0
    %2083 = vmatprep.subr.mxu0 0.0
    %2084 = vmatpush1.msra.mxu0 0.0
    %2085 = vmatprep.subr.mxu0 0.0
    %2086 = vmatpush1.msra.mxu0 0.0
    %2087 = vmatprep.subr.mxu0 0.0
    %2088 = vmatpush1.msra.mxu0 0.0
    %2089 = vmatprep.subr.mxu0 0.0
    %2090 = vmatpush1.msra.mxu0 0.0
    %2091 = vmatprep.subr.mxu0 0.0
    %2092 = vmatpush1.msra.mxu0 0.0
    %2093 = vmatprep.subr.mxu0 0.0
    %2094 = vmatpush1.msra.mxu0 0.0
    %2095 = vmatprep.subr.mxu0 0.0
    %2096 = vmatpush1.msra.mxu0 0.0
    %2097 = vmatprep.subr.mxu0 0.0
    %2098 = vmatpush1.msra.mxu0 0.0
    %2099 = vmatprep.subr.mxu0 0.0
    %2100 = vmatpush1.msra.mxu0 0.0
    %2101 = vmatprep.subr.mxu0 0.0
    %2102 = vmatpush1.msra.mxu0 0.0
    %2103 = vmatprep.subr.mxu0 0.0
    %2104 = vmatpush1.msra.mxu0 0.0
    %2105 = vmatprep.subr.mxu0 0.0
    %2106 = vmatpush1.msra.mxu0 0.0
    %2107 = vmatprep.subr.mxu0 0.0
    %2108 = vmatpush1.msra.mxu0 0.0
    %2109 = vmatprep.subr.mxu0 0.0
    %2110 = vmatpush1.msra.mxu0 0.0
    %2111 = vmatprep.subr.mxu0 0.0
    %2112 = vmatpush1.msra.mxu0 0.0
    %2113 = vmatprep.subr.mxu0 0.0
    %2114 = vmatpush1.msra.mxu0 0.0
    %2115 = vmatprep.subr.mxu0 0.0
    %2116 = vmatpush1.msra.mxu0 0.0
    %2117 = vmatprep.subr.mxu0 0.0
    %2118 = vmatpush1.msra.mxu0 0.0
    %2119 = vmatprep.subr.mxu0 0.0
    %2120 = vmatpush1.msra.mxu0 0.0
    %2121 = vmatprep.subr.mxu0 0.0
    %2122 = vmatpush1.msra.mxu0 0.0
    %2123 = vmatprep.subr.mxu0 0.0
    %2124 = vmatpush1.msra.mxu0 0.0
    %2125 = vmatprep.mubr.f32.mxu0 0.0
    %2126 = vmatmul.mubr.f32.gmra.mrb[0].mxu0 %v2014
    %v2127 = vpop.f32.mrb[0].mxu0
    %v2128 = vadd.f32 0.0, %v2127
    %v2129 = vpop.f32.mrb[0].mxu0
    %2130 = vmatprep.mubr.f32.mxu0 0.0
    %2131 = vmatmul.mubr.f32.gmra.mrb[0].mxu0 %v2017
    %v2132 = vpop.f32.mrb[0].mxu0
    %v2133 = vadd.f32 0.0, %v2132
    %v2134 = vpop.f32.mrb[0].mxu0
    %2135 = vmatprep.mubr.f32.mxu0 0.0
    %2136 = vmatmul.mubr.f32.gmra.mrb[0].mxu0 %v2020
    %v2137 = vpop.f32.mrb[0].mxu0
    %v2138 = vadd.f32 0.0, %v2137
    %v2139 = vpop.f32.mrb[0].mxu0
    %2140 = vmatprep.mubr.f32.mxu0 0.0
    %2141 = vmatmul.mubr.f32.gmra.mrb[0].mxu0 %v2023
    %v2142 = vpop.f32.mrb[0].mxu0
    %v2143 = vadd.f32 0.0, %v2142
    %v2144 = vpop.f32.mrb[0].mxu0
    %2145 = vmatprep.mubr.f32.mxu0 0.0
    %2146 = vmatmul.mubr.f32.gmra.mrb[0].mxu0 %v2026
    %v2147 = vpop.f32.mrb[0].mxu0
    %v2148 = vadd.f32 0.0, %v2147
    %v2149 = vpop.f32.mrb[0].mxu0
    %2150 = vmatprep.mubr.f32.mxu0 0.0
    %2151 = vmatmul.mubr.f32.gmra.mrb[0].mxu0 %v2029
    %v2152 = vpop.f32.mrb[0].mxu0
    %v2153 = vadd.f32 0.0, %v2152
    %v2154 = vpop.f32.mrb[0].mxu0
    %2155 = vmatprep.mubr.f32.mxu0 0.0
    %2156 = vmatmul.mubr.f32.gmra.mrb[0].mxu0 %v2032
    %v2157 = vpop.f32.mrb[0].mxu0
    %v2158 = vadd.f32 0.0, %v2157
    %v2159 = vpop.f32.mrb[0].mxu0
    %2160 = vmatprep.mubr.f32.mxu0 0.0
    %2161 = vmatmul.mubr.f32.gmra.mrb[0].mxu0 %v2035
    %v2162 = vpop.f32.mrb[0].mxu0
    %v2163 = vadd.f32 0.0, %v2162
    %v2164 = vpop.f32.mrb[0].mxu0
    %2165 = vmatprep.mubr.f32.mxu0 0.0
    %2166 = vmatmul.mubr.f32.gmra.mrb[0].mxu0 %v2038
    %v2167 = vpop.f32.mrb[0].mxu0
    %v2168 = vadd.f32 0.0, %v2167
    %v2169 = vpop.f32.mrb[0].mxu0
    %2170 = vmatprep.mubr.f32.mxu0 0.0
    %2171 = vmatmul.mubr.f32.gmra.mrb[0].mxu0 %v2041
    %v2172 = vpop.f32.mrb[0].mxu0
    %v2173 = vadd.f32 0.0, %v2172
    %v2174 = vpop.f32.mrb[0].mxu0
    %2175 = vmatprep.mubr.f32.mxu0 0.0
    %2176 = vmatmul.mubr.f32.gmra.mrb[0].mxu0 %v2044
    %v2177 = vpop.f32.mrb[0].mxu0
    %v2178 = vadd.f32 0.0, %v2177
    %v2179 = vpop.f32.mrb[0].mxu0
    %2180 = vmatprep.mubr.f32.mxu0 0.0
    %2181 = vmatmul.mubr.f32.gmra.mrb[0].mxu0 %v2047
    %v2182 = vpop.f32.mrb[0].mxu0
    %v2183 = vadd.f32 0.0, %v2182
    %v2184 = vpop.f32.mrb[0].mxu0
    %2185 = vmatprep.mubr.f32.mxu0 0.0
    %2186 = vmatmul.mubr.f32.gmra.mrb[0].mxu0 %v2050
    %v2187 = vpop.f32.mrb[0].mxu0
    %v2188 = vadd.f32 0.0, %v2187
    %v2189 = vpop.f32.mrb[0].mxu0
    %2190 = vmatprep.mubr.f32.mxu0 0.0
    %2191 = vmatmul.mubr.f32.gmra.mrb[0].mxu0 %v2053
    %v2192 = vpop.f32.mrb[0].mxu0
    %v2193 = vadd.f32 0.0, %v2192
    %v2194 = vpop.f32.mrb[0].mxu0
    %2195 = vmatprep.mubr.f32.mxu0 0.0
    %2196 = vmatmul.mubr.f32.gmra.mrb[0].mxu0 %v2056
    %v2197 = vpop.f32.mrb[0].mxu0
    %v2198 = vadd.f32 0.0, %v2197
    %v2199 = vpop.f32.mrb[0].mxu0
    %2200 = vmatprep.mubr.f32.mxu0 0.0
    %2201 = vmatmul.mubr.f32.gmra.mrb[0].mxu0 %v2059
    %v2202 = vpop.f32.mrb[0].mxu0
    %v2203 = vadd.f32 0.0, %v2202
    %v2204 = vpop.f32.mrb[0].mxu0
    %2205 = vdwg.mxu0
    %v2207 = vsel %vm453, %v1977, 0
    %v2210 = vsel %vm453, %v1978, 0
    %v2213 = vsel %vm453, %v1979, 0
    %v2216 = vsel %vm453, %v1980, 0
    %v2219 = vsel %vm453, %v1981, 0
    %v2222 = vsel %vm453, %v1982, 0
    %v2225 = vsel %vm453, %v1983, 0
    %v2228 = vsel %vm453, %v1984, 0
    %v2231 = vsel %vm453, %v1985, 0
    %v2234 = vsel %vm453, %v1986, 0
    %v2237 = vsel %vm453, %v1987, 0
    %v2240 = vsel %vm453, %v1988, 0
    %v2243 = vsel %vm453, %v1989, 0
    %v2246 = vsel %vm453, %v1990, 0
    %v2249 = vsel %vm453, %v1991, 0
    %v2252 = vsel %vm453, %v1992, 0
    %2254 = vmatprep.subr.mxu0 0.0
    %2255 = vmatpush1.msra.mxu0 %v2009
    %2256 = vmatprep.subr.mxu0 0.0
    %2257 = vmatpush1.msra.mxu0 %v2010
    %2258 = vmatprep.subr.mxu0 0.0
    %2259 = vmatpush1.msra.mxu0 0.0
    %2260 = vmatprep.subr.mxu0 0.0
    %2261 = vmatpush1.msra.mxu0 0.0
    %2262 = vmatprep.subr.mxu0 0.0
    %2263 = vmatpush1.msra.mxu0 0.0
    %2264 = vmatprep.subr.mxu0 0.0
    %2265 = vmatpush1.msra.mxu0 0.0
    %2266 = vmatprep.subr.mxu0 0.0
    %2267 = vmatpush1.msra.mxu0 0.0
    %2268 = vmatprep.subr.mxu0 0.0
    %2269 = vmatpush1.msra.mxu0 0.0
    %2270 = vmatprep.subr.mxu0 0.0
    %2271 = vmatpush1.msra.mxu0 0.0
    %2272 = vmatprep.subr.mxu0 0.0
    %2273 = vmatpush1.msra.mxu0 0.0
    %2274 = vmatprep.subr.mxu0 0.0
    %2275 = vmatpush1.msra.mxu0 0.0
    %2276 = vmatprep.subr.mxu0 0.0
    %2277 = vmatpush1.msra.mxu0 0.0
    %2278 = vmatprep.subr.mxu0 0.0
    %2279 = vmatpush1.msra.mxu0 0.0
    %2280 = vmatprep.subr.mxu0 0.0
    %2281 = vmatpush1.msra.mxu0 0.0
    %2282 = vmatprep.subr.mxu0 0.0
    %2283 = vmatpush1.msra.mxu0 0.0
    %2284 = vmatprep.subr.mxu0 0.0
    %2285 = vmatpush1.msra.mxu0 0.0
    %2286 = vmatprep.subr.mxu0 0.0
    %2287 = vmatpush1.msra.mxu0 0.0
    %2288 = vmatprep.subr.mxu0 0.0
    %2289 = vmatpush1.msra.mxu0 0.0
    %2290 = vmatprep.subr.mxu0 0.0
    %2291 = vmatpush1.msra.mxu0 0.0
    %2292 = vmatprep.subr.mxu0 0.0
    %2293 = vmatpush1.msra.mxu0 0.0
    %2294 = vmatprep.subr.mxu0 0.0
    %2295 = vmatpush1.msra.mxu0 0.0
    %2296 = vmatprep.subr.mxu0 0.0
    %2297 = vmatpush1.msra.mxu0 0.0
    %2298 = vmatprep.subr.mxu0 0.0
    %2299 = vmatpush1.msra.mxu0 0.0
    %2300 = vmatprep.subr.mxu0 0.0
    %2301 = vmatpush1.msra.mxu0 0.0
    %2302 = vmatprep.subr.mxu0 0.0
    %2303 = vmatpush1.msra.mxu0 0.0
    %2304 = vmatprep.subr.mxu0 0.0
    %2305 = vmatpush1.msra.mxu0 0.0
    %2306 = vmatprep.subr.mxu0 0.0
    %2307 = vmatpush1.msra.mxu0 0.0
    %2308 = vmatprep.subr.mxu0 0.0
    %2309 = vmatpush1.msra.mxu0 0.0
    %2310 = vmatprep.subr.mxu0 0.0
    %2311 = vmatpush1.msra.mxu0 0.0
    %2312 = vmatprep.subr.mxu0 0.0
    %2313 = vmatpush1.msra.mxu0 0.0
    %2314 = vmatprep.subr.mxu0 0.0
    %2315 = vmatpush1.msra.mxu0 0.0
    %2316 = vmatprep.subr.mxu0 0.0
    %2317 = vmatpush1.msra.mxu0 0.0
    %2318 = vmatprep.mubr.f32.mxu0 0.0
    %2319 = vmatmul.mubr.f32.gmra.mrb[0].mxu0 %v2207
    %v2320 = vpop.f32.mrb[0].mxu0
    %v2321 = vadd.f32 %v2128, %v2320
    %v2322 = vpop.f32.mrb[0].mxu0
    %2323 = vmatprep.mubr.f32.mxu0 0.0
    %2324 = vmatmul.mubr.f32.gmra.mrb[0].mxu0 %v2210
    %v2325 = vpop.f32.mrb[0].mxu0
    %v2326 = vadd.f32 %v2133, %v2325
    %v2327 = vpop.f32.mrb[0].mxu0
    %2328 = vmatprep.mubr.f32.mxu0 0.0
    %2329 = vmatmul.mubr.f32.gmra.mrb[0].mxu0 %v2213
    %v2330 = vpop.f32.mrb[0].mxu0
    %v2331 = vadd.f32 %v2138, %v2330
    %v2332 = vpop.f32.mrb[0].mxu0
    %2333 = vmatprep.mubr.f32.mxu0 0.0
    %2334 = vmatmul.mubr.f32.gmra.mrb[0].mxu0 %v2216
    %v2335 = vpop.f32.mrb[0].mxu0
    %v2336 = vadd.f32 %v2143, %v2335
    %v2337 = vpop.f32.mrb[0].mxu0
    %2338 = vmatprep.mubr.f32.mxu0 0.0
    %2339 = vmatmul.mubr.f32.gmra.mrb[0].mxu0 %v2219
    %v2340 = vpop.f32.mrb[0].mxu0
    %v2341 = vadd.f32 %v2148, %v2340
    %v2342 = vpop.f32.mrb[0].mxu0
    %2343 = vmatprep.mubr.f32.mxu0 0.0
    %2344 = vmatmul.mubr.f32.gmra.mrb[0].mxu0 %v2222
    %v2345 = vpop.f32.mrb[0].mxu0
    %v2346 = vadd.f32 %v2153, %v2345
    %v2347 = vpop.f32.mrb[0].mxu0
    %2348 = vmatprep.mubr.f32.mxu0 0.0
    %2349 = vmatmul.mubr.f32.gmra.mrb[0].mxu0 %v2225
    %v2350 = vpop.f32.mrb[0].mxu0
    %v2351 = vadd.f32 %v2158, %v2350
    %v2352 = vpop.f32.mrb[0].mxu0
    %2353 = vmatprep.mubr.f32.mxu0 0.0
    %2354 = vmatmul.mubr.f32.gmra.mrb[0].mxu0 %v2228
    %v2355 = vpop.f32.mrb[0].mxu0
    %v2356 = vadd.f32 %v2163, %v2355
    %v2357 = vpop.f32.mrb[0].mxu0
    %2358 = vmatprep.mubr.f32.mxu0 0.0
    %2359 = vmatmul.mubr.f32.gmra.mrb[0].mxu0 %v2231
    %v2360 = vpop.f32.mrb[0].mxu0
    %v2361 = vadd.f32 %v2168, %v2360
    %v2362 = vpop.f32.mrb[0].mxu0
    %2363 = vmatprep.mubr.f32.mxu0 0.0
    %2364 = vmatmul.mubr.f32.gmra.mrb[0].mxu0 %v2234
    %v2365 = vpop.f32.mrb[0].mxu0
    %v2366 = vadd.f32 %v2173, %v2365
    %v2367 = vpop.f32.mrb[0].mxu0
    %2368 = vmatprep.mubr.f32.mxu0 0.0
    %2369 = vmatmul.mubr.f32.gmra.mrb[0].mxu0 %v2237
    %v2370 = vpop.f32.mrb[0].mxu0
    %v2371 = vadd.f32 %v2178, %v2370
    %v2372 = vpop.f32.mrb[0].mxu0
    %2373 = vmatprep.mubr.f32.mxu0 0.0
    %2374 = vmatmul.mubr.f32.gmra.mrb[0].mxu0 %v2240
    %v2375 = vpop.f32.mrb[0].mxu0
    %v2376 = vadd.f32 %v2183, %v2375
    %v2377 = vpop.f32.mrb[0].mxu0
    %2378 = vmatprep.mubr.f32.mxu0 0.0
    %2379 = vmatmul.mubr.f32.gmra.mrb[0].mxu0 %v2243
    %v2380 = vpop.f32.mrb[0].mxu0
    %v2381 = vadd.f32 %v2188, %v2380
    %v2382 = vpop.f32.mrb[0].mxu0
    %2383 = vmatprep.mubr.f32.mxu0 0.0
    %2384 = vmatmul.mubr.f32.gmra.mrb[0].mxu0 %v2246
    %v2385 = vpop.f32.mrb[0].mxu0
    %v2386 = vadd.f32 %v2193, %v2385
    %v2387 = vpop.f32.mrb[0].mxu0
    %2388 = vmatprep.mubr.f32.mxu0 0.0
    %2389 = vmatmul.mubr.f32.gmra.mrb[0].mxu0 %v2249
    %v2390 = vpop.f32.mrb[0].mxu0
    %v2391 = vadd.f32 %v2198, %v2390
    %v2392 = vpop.f32.mrb[0].mxu0
    %2393 = vmatprep.mubr.f32.mxu0 0.0
    %2394 = vmatmul.mubr.f32.gmra.mrb[0].mxu0 %v2252
    %v2395 = vpop.f32.mrb[0].mxu0
    %v2396 = vadd.f32 %v2203, %v2395
    %v2397 = vpop.f32.mrb[0].mxu0
    %2398 = vdwg.mxu0
    %v2399 = vld [vmem:[%s6] sm:$0x1]
    %v2401 = vlaneseq
    %v2402 = vshrl.u32 %v2401, 7
    %v2403 = vsub.s32 0, %v2402
    %v2404 = vrot.slane %v2399, %v2403
    %v2406 = vadd.f32 %v2321, %v2404
    %v2407 = vadd.f32 %v2326, %v2404
    %v2408 = vadd.f32 %v2331, %v2404
    %v2409 = vadd.f32 %v2336, %v2404
    %v2410 = vadd.f32 %v2341, %v2404
    %v2411 = vadd.f32 %v2346, %v2404
    %v2412 = vadd.f32 %v2351, %v2404
    %v2413 = vadd.f32 %v2356, %v2404
    %v2414 = vadd.f32 %v2361, %v2404
    %v2415 = vadd.f32 %v2366, %v2404
    %v2416 = vadd.f32 %v2371, %v2404
    %v2417 = vadd.f32 %v2376, %v2404
    %v2418 = vadd.f32 %v2381, %v2404
    %v2419 = vadd.f32 %v2386, %v2404
    %v2420 = vadd.f32 %v2391, %v2404
    %v2421 = vadd.f32 %v2396, %v2404
    %vm2422 = vcmask 31744
    %2423 = vst.msk [vmem:[%s7] sm:$0xff] %vm2422, %v2406
    %2424 = vst.msk [vmem:[%s7 + $0x8] sm:$0xff] %vm2422, %v2407
    %2425 = vst.msk [vmem:[%s7 + $0x10] sm:$0xff] %vm2422, %v2408
    %2426 = vst.msk [vmem:[%s7 + $0x18] sm:$0xff] %vm2422, %v2409
    %2427 = vst.msk [vmem:[%s7 + $0x20] sm:$0xff] %vm2422, %v2410
    %2428 = vst.msk [vmem:[%s7 + $0x28] sm:$0xff] %vm2422, %v2411
    %2429 = vst.msk [vmem:[%s7 + $0x30] sm:$0xff] %vm2422, %v2412
    %2430 = vst.msk [vmem:[%s7 + $0x38] sm:$0xff] %vm2422, %v2413
    %2431 = vst.msk [vmem:[%s7 + $0x40] sm:$0xff] %vm2422, %v2414
    %2432 = vst.msk [vmem:[%s7 + $0x48] sm:$0xff] %vm2422, %v2415
    %2433 = vst.msk [vmem:[%s7 + $0x50] sm:$0xff] %vm2422, %v2416
    %2434 = vst.msk [vmem:[%s7 + $0x58] sm:$0xff] %vm2422, %v2417
    %2435 = vst.msk [vmem:[%s7 + $0x60] sm:$0xff] %vm2422, %v2418
    %2436 = vst.msk [vmem:[%s7 + $0x68] sm:$0xff] %vm2422, %v2419
    %2437 = vst.msk [vmem:[%s7 + $0x70] sm:$0xff] %vm2422, %v2420
    %2438 = vst.msk [vmem:[%s7 + $0x78] sm:$0xff] %vm2422, %v2421
    // Predicated region
    $region34: #{tpu_custom_call.1} parent=1 // pred_check
      _
    $region35: #{tpu_custom_call.1} parent=1 // pred_check_branch
      %2440 = sbr.rel (0) target = $region37
    $region36: #{tpu_custom_call.1} parent=1 // pred_region
      _
    $region37: #{tpu_custom_call.1} parent=1 // pred_fallthru
      _
    // Predicated region
    $region38: #{tpu_custom_call.1} parent=1 // pred_check
      _
    $region39: #{tpu_custom_call.1} parent=1 // pred_check_branch
      %2442 = sbr.rel (0) target = $region41
    $region40: #{tpu_custom_call.1} parent=1 // pred_region
      _
    $region41: #{tpu_custom_call.1} parent=1 // pred_fallthru
      _
    %2443 = vsyncpa [#allocation6], 1

</llo_original>
